<compile_context>
chip_gen: v6e
topology: v6e:2x2x1
jax: 0.10.0
libtpu: 0.0.40
codegen_flags: <defaults>
</compile_context>

<pallas_src>
import functools

import jax
import jax.numpy as jnp
import numpy as np
from jax.experimental import pallas as pl
from jax.experimental.pallas import tpu as pltpu


def _round_up(x, m):
    return ((x + m - 1) // m) * m


# ----------------------------------------------------------------------------
# One-time host-side weight folding (Conv / ConvTranspose -> Toeplitz GEMMs)
# ----------------------------------------------------------------------------
def _conv_toeplitz(w, H, W, stride, pad):
    """w: (Co, Ci, kh, kw) torch Conv2d weight. Returns (Ci*H*W, Co*Ho*Wo), Ho, Wo."""
    Co, Ci, kh, kw = w.shape
    Ho = (H + 2 * pad - kh) // stride + 1
    Wo = (W + 2 * pad - kw) // stride + 1
    T = np.zeros((Ci * H * W, Co * Ho * Wo), np.float32)
    for co in range(Co):
        for y in range(Ho):
            for x in range(Wo):
                of = co * Ho * Wo + y * Wo + x
                for ci in range(Ci):
                    for ky in range(kh):
                        iy = stride * y + ky - pad
                        if iy < 0 or iy >= H:
                            continue
                        for kx in range(kw):
                            ix = stride * x + kx - pad
                            if ix < 0 or ix >= W:
                                continue
                            T[ci * H * W + iy * W + ix, of] += w[co, ci, ky, kx]
    return T, Ho, Wo


def _convT_toeplitz(w, H, W, stride, pad):
    """w: (Ci, Co, kh, kw) torch ConvTranspose2d weight (input H x W).
    PyTorch semantics: out[oy, ox] += in[iy, ix] * w[ci, co, ky, kx] where
    oy = s*iy + ky - p, ox = s*ix + kx - p.  Returns (Ci*H*W, Co*Ho*Wo), Ho, Wo."""
    Ci, Co, kh, kw = w.shape
    Ho = (H - 1) * stride - 2 * pad + kh
    Wo = (W - 1) * stride - 2 * pad + kw
    T = np.zeros((Ci * H * W, Co * Ho * Wo), np.float32)
    for ci in range(Ci):
        for iy in range(H):
            for ix in range(W):
                inf = ci * H * W + iy * W + ix
                for co in range(Co):
                    for ky in range(kh):
                        oy = stride * iy + ky - pad
                        if oy < 0 or oy >= Ho:
                            continue
                        for kx in range(kw):
                            ox = stride * ix + kx - pad
                            if ox < 0 or ox >= Wo:
                                continue
                            T[inf, co * Ho * Wo + oy * Wo + ox] += w[ci, co, ky, kx]
    return T, Ho, Wo


def init_params(key, latent_dims):
    """Parameters in the original torch layouts."""
    keys = jax.random.split(key, 14)
    s = 0.1

    def w(k, shape):
        return (s * jax.random.normal(k, shape)).astype(jnp.float32)

    return {
        "conv1_w": w(keys[0], (5, 1, 3, 3)),   "conv1_b": w(keys[1], (5,)),
        "conv2_w": w(keys[2], (10, 5, 4, 4)),  "conv2_b": w(keys[3], (10,)),
        "fc1_w":   w(keys[4], (latent_dims, 490)), "fc1_b": w(keys[5], (latent_dims,)),
        "fc2_w":   w(keys[6], (latent_dims, 490)), "fc2_b": w(keys[7], (latent_dims,)),
        "defc_w":  w(keys[8], (490, latent_dims)), "defc_b": w(keys[9], (490,)),
        "deT2_w":  w(keys[10], (10, 5, 4, 4)), "deT2_b": w(keys[11], (5,)),
        "deT1_w":  w(keys[12], (5, 1, 3, 3)),  "deT1_b": w(keys[13], (1,)),
    }


def prepare_kernel_params(p):
    """Hoist ALL layout work out of the per-step forward: fold each conv /
    transposed conv into a Toeplitz GEMM weight and broadcast its bias over the
    flattened output features.  Pure host-side, one-time."""
    f = lambda a: np.asarray(a, np.float32)
    t1, h1, w1 = _conv_toeplitz(f(p["conv1_w"]), 14, 14, 1, 1)   # (196, 980)
    t2, h2, w2 = _conv_toeplitz(f(p["conv2_w"]), 14, 14, 2, 1)   # (980, 490)
    t3, h3, w3 = _convT_toeplitz(f(p["deT2_w"]), 7, 7, 2, 1)     # (490, 980)
    t4, h4, w4 = _convT_toeplitz(f(p["deT1_w"]), 14, 14, 1, 1)   # (980, 196)
    kp = {
        "t1": t1, "b1": np.repeat(f(p["conv1_b"]), h1 * w1)[None, :],
        "t2": t2, "b2": np.repeat(f(p["conv2_b"]), h2 * w2)[None, :],
        # fc1 | fc2 fused into one (490, 2L) weight -> single MXU pass for h.
        "w12": np.concatenate([f(p["fc1_w"]).T, f(p["fc2_w"]).T], axis=1),
        "b12": np.concatenate([f(p["fc1_b"]), f(p["fc2_b"])])[None, :],
        "wd": f(p["defc_w"]).T, "bd": f(p["defc_b"])[None, :],
        "t3": t3, "b3": np.repeat(f(p["deT2_b"]), h3 * w3)[None, :],
        "t4": t4, "b4": np.repeat(f(p["deT1_b"]), h4 * w4)[None, :],
    }
    return {k: jnp.asarray(v) for k, v in kp.items()}


# ----------------------------------------------------------------------------
# The single fused Pallas kernel
# ----------------------------------------------------------------------------
def _fused_vae_kernel(x_ref, eps_ref,
                      t1_ref, b1_ref, t2_ref, b2_ref,
                      w12_ref, b12_ref, wd_ref, bd_ref,
                      t3_ref, b3_ref, t4_ref, b4_ref,
                      h_ref, rec_ref, *, latent):
    f32 = jnp.float32
    # ---- encoder convs (dense Toeplitz GEMMs, weights resident in VMEM) ----
    a1 = jnp.maximum(
        jnp.dot(x_ref[...], t1_ref[...], preferred_element_type=f32) + b1_ref[...], 0.0)
    a2 = jnp.maximum(
        jnp.dot(a1, t2_ref[...], preferred_element_type=f32) + b2_ref[...], 0.0)
    # ---- en_fc1 | en_fc2 as one matmul -> h = mean || log_sigma ----
    h = jnp.dot(a2, w12_ref[...], preferred_element_type=f32) + b12_ref[...]
    h_ref[...] = h.astype(h_ref.dtype)           # one lane-dense (tb, 2L) store
    # ---- reparametrization ----
    mean = h[:, :latent]
    log_sigma = h[:, latent:]
    sample = mean + jnp.exp(log_sigma) * eps_ref[...]
    # ---- decoder ----
    a3 = jnp.dot(sample, wd_ref[...], preferred_element_type=f32) + bd_ref[...]
    a4 = jnp.maximum(
        jnp.dot(a3, t3_ref[...], preferred_element_type=f32) + b3_ref[...], 0.0)
    a5 = jnp.maximum(
        jnp.dot(a4, t4_ref[...], preferred_element_type=f32) + b4_ref[...], 0.0)
    rec_ref[...] = a5.astype(rec_ref.dtype)


def vae_forward(kp, inputs, epsilon, ns, latent):
    """inputs: (ns, 1, 14, 14) NCHW, epsilon: (ns, latent).
    Returns (mean, log_sigma, output NCHW) -- one fused pallas_call."""
    x = inputs.astype(jnp.float32).reshape(ns, 14 * 14)
    eps = epsilon.astype(jnp.float32)
    ns_pad = _round_up(ns, 8)
    tb = min(256, ns_pad)            # batch-row tile; >=2 grid steps once ns grows
    ns_pad = _round_up(ns_pad, tb)
    if ns_pad != ns:
        x = jnp.pad(x, ((0, ns_pad - ns), (0, 0)))
        eps = jnp.pad(eps, ((0, ns_pad - ns), (0, 0)))

    def row_spec(f):
        return pl.BlockSpec((tb, f), lambda i: (i, 0))

    def resident(shape):
        return pl.BlockSpec(shape, lambda i: (0, 0))

    h, rec = pl.pallas_call(
        functools.partial(_fused_vae_kernel, latent=latent),
        out_shape=(jax.ShapeDtypeStruct((ns_pad, 2 * latent), jnp.float32),
                   jax.ShapeDtypeStruct((ns_pad, 14 * 14), jnp.float32)),
        grid=(ns_pad // tb,),
        in_specs=[
            row_spec(14 * 14),                 # x
            row_spec(latent),                  # epsilon
            resident((196, 980)),  resident((1, 980)),        # conv1
            resident((980, 490)),  resident((1, 490)),        # conv2
            resident((490, 2 * latent)), resident((1, 2 * latent)),   # fc1|fc2
            resident((latent, 490)), resident((1, 490)),      # de_fc
            resident((490, 980)),  resident((1, 980)),        # convT2
            resident((980, 196)),  resident((1, 196)),        # convT1
        ],
        out_specs=(row_spec(2 * latent), row_spec(14 * 14)),
        compiler_params=pltpu.CompilerParams(
            dimension_semantics=("parallel",),
            vmem_limit_bytes=32 * 1024 * 1024),
    )(x, eps, kp["t1"], kp["b1"], kp["t2"], kp["b2"],
      kp["w12"], kp["b12"], kp["wd"], kp["bd"],
      kp["t3"], kp["b3"], kp["t4"], kp["b4"])

    mean = h[:ns, :latent]
    log_sigma = h[:ns, latent:]
    output = rec[:ns].reshape(ns, 1, 14, 14)
    return mean, log_sigma, output


# ----------------------------------------------------------------------------
# Pure-JAX reference (lax conv) for a correctness cross-check
# ----------------------------------------------------------------------------
def _reference_forward(params, inputs, epsilon, ns):
    dn = jax.lax.conv_dimension_numbers(inputs.shape, (5, 1, 3, 3),
                                        ("NCHW", "OIHW", "NCHW"))
    relu = lambda z: jnp.maximum(z, 0.0)
    c1 = relu(jax.lax.conv_general_dilated(
        inputs, params["conv1_w"], (1, 1), [(1, 1), (1, 1)],
        dimension_numbers=dn) + params["conv1_b"][None, :, None, None])
    c2 = relu(jax.lax.conv_general_dilated(
        c1, params["conv2_w"], (2, 2), [(1, 1), (1, 1)],
        dimension_numbers=dn) + params["conv2_b"][None, :, None, None])
    flat = c2.reshape(ns, -1)
    mean = flat @ params["fc1_w"].T + params["fc1_b"]
    log_sigma = flat @ params["fc2_w"].T + params["fc2_b"]
    sample = mean + jnp.exp(log_sigma) * epsilon
    inv = sample @ params["defc_w"].T + params["defc_b"]
    un = inv.reshape(ns, 10, 7, 7)
    w2 = jnp.flip(params["deT2_w"], axis=(-2, -1)).transpose(1, 0, 2, 3)
    t2 = relu(jax.lax.conv_general_dilated(
        un, w2, (1, 1), [(2, 2), (2, 2)], lhs_dilation=(2, 2),
        dimension_numbers=dn) + params["deT2_b"][None, :, None, None])
    w1 = jnp.flip(params["deT1_w"], axis=(-2, -1)).transpose(1, 0, 2, 3)
    t1 = relu(jax.lax.conv_general_dilated(
        t2, w1, (1, 1), [(1, 1), (1, 1)],
        dimension_numbers=dn) + params["deT1_b"][None, :, None, None])
    return mean, log_sigma, t1


if __name__ == "__main__":
    ns = 2
    latent_dims = 8
    key = jax.random.PRNGKey(0)
    k_in, k_eps, k_par = jax.random.split(key, 3)

    inputs = jax.random.uniform(k_in, (ns, 1, 14, 14), dtype=jnp.float32)
    # NOTE: the torch module draws epsilon internally with torch.randn; here it
    # is an explicit input so the forward stays a pure, checkable function.
    epsilon = jax.random.normal(k_eps, (ns, latent_dims), dtype=jnp.float32)
    params = init_params(k_par, latent_dims)
    kparams = prepare_kernel_params(params)

    fwd = jax.jit(vae_forward, static_argnums=(3, 4))
    mean, log_sigma, output = fwd(kparams, inputs, epsilon, ns, latent_dims)
    jax.block_until_ready((mean, log_sigma, output))

    assert mean.shape == (ns, latent_dims)
    assert log_sigma.shape == (ns, latent_dims)
    assert output.shape == (ns, 1, 14, 14)

    # cross-check against pure-JAX reference
    r_mean, r_logsig, r_out = _reference_forward(params, inputs, epsilon, ns)
    np.testing.assert_allclose(np.asarray(mean), np.asarray(r_mean),
                               rtol=1e-3, atol=1e-5)
    np.testing.assert_allclose(np.asarray(log_sigma), np.asarray(r_logsig),
                               rtol=1e-3, atol=1e-5)
    np.testing.assert_allclose(np.asarray(output), np.asarray(r_out),
                               rtol=1e-3, atol=1e-5)

    print("KERNEL_OK")
</pallas_src>

<mosaic_0001>
module attributes {stable_mosaic.version = 11 : i64} {
  func.func @_fused_vae_kernel(%arg0: i32, %arg1: memref<8x196xf32, #tpu.memory_space<vmem>>, %arg2: memref<8x8xf32, #tpu.memory_space<vmem>>, %arg3: memref<196x980xf32, #tpu.memory_space<vmem>>, %arg4: memref<1x980xf32, #tpu.memory_space<vmem>>, %arg5: memref<980x490xf32, #tpu.memory_space<vmem>>, %arg6: memref<1x490xf32, #tpu.memory_space<vmem>>, %arg7: memref<490x16xf32, #tpu.memory_space<vmem>>, %arg8: memref<1x16xf32, #tpu.memory_space<vmem>>, %arg9: memref<8x490xf32, #tpu.memory_space<vmem>>, %arg10: memref<1x490xf32, #tpu.memory_space<vmem>>, %arg11: memref<490x980xf32, #tpu.memory_space<vmem>>, %arg12: memref<1x980xf32, #tpu.memory_space<vmem>>, %arg13: memref<980x196xf32, #tpu.memory_space<vmem>>, %arg14: memref<1x196xf32, #tpu.memory_space<vmem>>, %arg15: memref<8x16xf32, #tpu.memory_space<vmem>>, %arg16: memref<8x196xf32, #tpu.memory_space<vmem>>) attributes {dimension_semantics = [#tpu.dimension_semantics<parallel>], iteration_bounds = array<i64: 1>, scalar_prefetch = 0 : i64, scratch_operands = 0 : i64, tpu.core_type = #tpu.core_type<tc>, window_params = [{transform_indices = @transform_0, window_bounds = array<i64: 8, 196>}, {transform_indices = @transform_1, window_bounds = array<i64: 8, 8>}, {pipeline_mode = #tpu.pipeline_mode<synchronous>, transform_indices = @transform_2, window_bounds = array<i64: 196, 980>}, {pipeline_mode = #tpu.pipeline_mode<synchronous>, transform_indices = @transform_3, window_bounds = array<i64: 1, 980>}, {pipeline_mode = #tpu.pipeline_mode<synchronous>, transform_indices = @transform_4, window_bounds = array<i64: 980, 490>}, {pipeline_mode = #tpu.pipeline_mode<synchronous>, transform_indices = @transform_5, window_bounds = array<i64: 1, 490>}, {pipeline_mode = #tpu.pipeline_mode<synchronous>, transform_indices = @transform_6, window_bounds = array<i64: 490, 16>}, {pipeline_mode = #tpu.pipeline_mode<synchronous>, transform_indices = @transform_7, window_bounds = array<i64: 1, 16>}, {pipeline_mode = #tpu.pipeline_mode<synchronous>, transform_indices = @transform_8, window_bounds = array<i64: 8, 490>}, {pipeline_mode = #tpu.pipeline_mode<synchronous>, transform_indices = @transform_9, window_bounds = array<i64: 1, 490>}, {pipeline_mode = #tpu.pipeline_mode<synchronous>, transform_indices = @transform_10, window_bounds = array<i64: 490, 980>}, {pipeline_mode = #tpu.pipeline_mode<synchronous>, transform_indices = @transform_11, window_bounds = array<i64: 1, 980>}, {pipeline_mode = #tpu.pipeline_mode<synchronous>, transform_indices = @transform_12, window_bounds = array<i64: 980, 196>}, {pipeline_mode = #tpu.pipeline_mode<synchronous>, transform_indices = @transform_13, window_bounds = array<i64: 1, 196>}, {transform_indices = @transform_14, window_bounds = array<i64: 8, 16>}, {transform_indices = @transform_15, window_bounds = array<i64: 8, 196>}]} {
    %c0 = arith.constant 0 : index
    %c0_0 = arith.constant 0 : index
    %0 = vector.load %arg1[%c0, %c0_0] : memref<8x196xf32, #tpu.memory_space<vmem>>, vector<8x196xf32>
    %c0_1 = arith.constant 0 : index
    %c0_2 = arith.constant 0 : index
    %1 = vector.load %arg3[%c0_1, %c0_2] : memref<196x980xf32, #tpu.memory_space<vmem>>, vector<196x980xf32>
    %cst = arith.constant dense<0.000000e+00> : vector<8x980xf32>
    %2 = tpu.matmul %0, %1, %cst {dimension_numbers = #tpu.dot_dimension_numbers<[1], [0], [0], [1], [0, 0, 1, 1], [], []>} : vector<8x196xf32>, vector<196x980xf32>, vector<8x980xf32> -> vector<8x980xf32>
    %c0_3 = arith.constant 0 : index
    %c0_4 = arith.constant 0 : index
    %3 = vector.load %arg4[%c0_3, %c0_4] : memref<1x980xf32, #tpu.memory_space<vmem>>, vector<1x980xf32>
    %4 = vector.broadcast %3 : vector<1x980xf32> to vector<8x980xf32>
    %5 = arith.addf %2, %4 : vector<8x980xf32>
    %cst_5 = arith.constant 0.000000e+00 : f32
    %6 = vector.broadcast %cst_5 : f32 to vector<8x980xf32>
    %7 = arith.maximumf %5, %6 : vector<8x980xf32>
    %c0_6 = arith.constant 0 : index
    %c0_7 = arith.constant 0 : index
    %8 = vector.load %arg5[%c0_6, %c0_7] : memref<980x490xf32, #tpu.memory_space<vmem>>, vector<980x490xf32>
    %cst_8 = arith.constant dense<0.000000e+00> : vector<8x490xf32>
    %9 = tpu.matmul %7, %8, %cst_8 {dimension_numbers = #tpu.dot_dimension_numbers<[1], [0], [0], [1], [0, 0, 1, 1], [], []>} : vector<8x980xf32>, vector<980x490xf32>, vector<8x490xf32> -> vector<8x490xf32>
    %c0_9 = arith.constant 0 : index
    %c0_10 = arith.constant 0 : index
    %10 = vector.load %arg6[%c0_9, %c0_10] : memref<1x490xf32, #tpu.memory_space<vmem>>, vector<1x490xf32>
    %11 = vector.broadcast %10 : vector<1x490xf32> to vector<8x490xf32>
    %12 = arith.addf %9, %11 : vector<8x490xf32>
    %cst_11 = arith.constant 0.000000e+00 : f32
    %13 = vector.broadcast %cst_11 : f32 to vector<8x490xf32>
    %14 = arith.maximumf %12, %13 : vector<8x490xf32>
    %c0_12 = arith.constant 0 : index
    %c0_13 = arith.constant 0 : index
    %15 = vector.load %arg7[%c0_12, %c0_13] : memref<490x16xf32, #tpu.memory_space<vmem>>, vector<490x16xf32>
    %cst_14 = arith.constant dense<0.000000e+00> : vector<8x16xf32>
    %16 = tpu.matmul %14, %15, %cst_14 {dimension_numbers = #tpu.dot_dimension_numbers<[1], [0], [0], [1], [0, 0, 1, 1], [], []>} : vector<8x490xf32>, vector<490x16xf32>, vector<8x16xf32> -> vector<8x16xf32>
    %c0_15 = arith.constant 0 : index
    %c0_16 = arith.constant 0 : index
    %17 = vector.load %arg8[%c0_15, %c0_16] : memref<1x16xf32, #tpu.memory_space<vmem>>, vector<1x16xf32>
    %18 = vector.broadcast %17 : vector<1x16xf32> to vector<8x16xf32>
    %19 = arith.addf %16, %18 : vector<8x16xf32>
    %c0_17 = arith.constant 0 : index
    %c0_18 = arith.constant 0 : index
    %20 = vector.load %arg15[%c0_17, %c0_18] : memref<8x16xf32, #tpu.memory_space<vmem>>, vector<8x16xf32>
    tpu.vector_store %arg15[%c0_17, %c0_18], %19 {strides = array<i32>} : memref<8x16xf32, #tpu.memory_space<vmem>>, vector<8x16xf32>,
    %21 = vector.extract_strided_slice %19 {offsets = [0, 0], sizes = [8, 8], strides = [1, 1]} : vector<8x16xf32> to vector<8x8xf32>
    %22 = vector.extract_strided_slice %19 {offsets = [0, 8], sizes = [8, 8], strides = [1, 1]} : vector<8x16xf32> to vector<8x8xf32>
    %23 = math.exp %22 : vector<8x8xf32>
    %c0_19 = arith.constant 0 : index
    %c0_20 = arith.constant 0 : index
    %24 = vector.load %arg2[%c0_19, %c0_20] : memref<8x8xf32, #tpu.memory_space<vmem>>, vector<8x8xf32>
    %25 = arith.mulf %23, %24 : vector<8x8xf32>
    %26 = arith.addf %21, %25 : vector<8x8xf32>
    %c0_21 = arith.constant 0 : index
    %c0_22 = arith.constant 0 : index
    %27 = vector.load %arg9[%c0_21, %c0_22] : memref<8x490xf32, #tpu.memory_space<vmem>>, vector<8x490xf32>
    %cst_23 = arith.constant dense<0.000000e+00> : vector<8x490xf32>
    %28 = tpu.matmul %26, %27, %cst_23 {dimension_numbers = #tpu.dot_dimension_numbers<[1], [0], [0], [1], [0, 0, 1, 1], [], []>} : vector<8x8xf32>, vector<8x490xf32>, vector<8x490xf32> -> vector<8x490xf32>
    %c0_24 = arith.constant 0 : index
    %c0_25 = arith.constant 0 : index
    %29 = vector.load %arg10[%c0_24, %c0_25] : memref<1x490xf32, #tpu.memory_space<vmem>>, vector<1x490xf32>
    %30 = vector.broadcast %29 : vector<1x490xf32> to vector<8x490xf32>
    %31 = arith.addf %28, %30 : vector<8x490xf32>
    %c0_26 = arith.constant 0 : index
    %c0_27 = arith.constant 0 : index
    %32 = vector.load %arg11[%c0_26, %c0_27] : memref<490x980xf32, #tpu.memory_space<vmem>>, vector<490x980xf32>
    %cst_28 = arith.constant dense<0.000000e+00> : vector<8x980xf32>
    %33 = tpu.matmul %31, %32, %cst_28 {dimension_numbers = #tpu.dot_dimension_numbers<[1], [0], [0], [1], [0, 0, 1, 1], [], []>} : vector<8x490xf32>, vector<490x980xf32>, vector<8x980xf32> -> vector<8x980xf32>
    %c0_29 = arith.constant 0 : index
    %c0_30 = arith.constant 0 : index
    %34 = vector.load %arg12[%c0_29, %c0_30] : memref<1x980xf32, #tpu.memory_space<vmem>>, vector<1x980xf32>
    %35 = vector.broadcast %34 : vector<1x980xf32> to vector<8x980xf32>
    %36 = arith.addf %33, %35 : vector<8x980xf32>
    %cst_31 = arith.constant 0.000000e+00 : f32
    %37 = vector.broadcast %cst_31 : f32 to vector<8x980xf32>
    %38 = arith.maximumf %36, %37 : vector<8x980xf32>
    %c0_32 = arith.constant 0 : index
    %c0_33 = arith.constant 0 : index
    %39 = vector.load %arg13[%c0_32, %c0_33] : memref<980x196xf32, #tpu.memory_space<vmem>>, vector<980x196xf32>
    %cst_34 = arith.constant dense<0.000000e+00> : vector<8x196xf32>
    %40 = tpu.matmul %38, %39, %cst_34 {dimension_numbers = #tpu.dot_dimension_numbers<[1], [0], [0], [1], [0, 0, 1, 1], [], []>} : vector<8x980xf32>, vector<980x196xf32>, vector<8x196xf32> -> vector<8x196xf32>
    %c0_35 = arith.constant 0 : index
    %c0_36 = arith.constant 0 : index
    %41 = vector.load %arg14[%c0_35, %c0_36] : memref<1x196xf32, #tpu.memory_space<vmem>>, vector<1x196xf32>
    %42 = vector.broadcast %41 : vector<1x196xf32> to vector<8x196xf32>
    %43 = arith.addf %40, %42 : vector<8x196xf32>
    %cst_37 = arith.constant 0.000000e+00 : f32
    %44 = vector.broadcast %cst_37 : f32 to vector<8x196xf32>
    %45 = arith.maximumf %43, %44 : vector<8x196xf32>
    %c0_38 = arith.constant 0 : index
    %c0_39 = arith.constant 0 : index
    %46 = vector.load %arg16[%c0_38, %c0_39] : memref<8x196xf32, #tpu.memory_space<vmem>>, vector<8x196xf32>
    tpu.vector_store %arg16[%c0_38, %c0_39], %45 {strides = array<i32>} : memref<8x196xf32, #tpu.memory_space<vmem>>, vector<8x196xf32>,
    return
  }
  func.func @transform_0(%arg0: i32) -> (i32, i32) {
    %c0_i32 = arith.constant 0 : i32
    %c0_i32_0 = arith.constant 0 : i32
    return %arg0, %c0_i32 : i32, i32
  }
  func.func @transform_1(%arg0: i32) -> (i32, i32) {
    %c0_i32 = arith.constant 0 : i32
    %c0_i32_0 = arith.constant 0 : i32
    return %arg0, %c0_i32 : i32, i32
  }
  func.func @transform_2(%arg0: i32) -> (i32, i32) {
    %c0_i32 = arith.constant 0 : i32
    %c0_i32_0 = arith.constant 0 : i32
    %c0_i32_1 = arith.constant 0 : i32
    return %c0_i32, %c0_i32_0 : i32, i32
  }
  func.func @transform_3(%arg0: i32) -> (i32, i32) {
    %c0_i32 = arith.constant 0 : i32
    %c0_i32_0 = arith.constant 0 : i32
    %c0_i32_1 = arith.constant 0 : i32
    return %c0_i32, %c0_i32_0 : i32, i32
  }
  func.func @transform_4(%arg0: i32) -> (i32, i32) {
    %c0_i32 = arith.constant 0 : i32
    %c0_i32_0 = arith.constant 0 : i32
    %c0_i32_1 = arith.constant 0 : i32
    return %c0_i32, %c0_i32_0 : i32, i32
  }
  func.func @transform_5(%arg0: i32) -> (i32, i32) {
    %c0_i32 = arith.constant 0 : i32
    %c0_i32_0 = arith.constant 0 : i32
    %c0_i32_1 = arith.constant 0 : i32
    return %c0_i32, %c0_i32_0 : i32, i32
  }
  func.func @transform_6(%arg0: i32) -> (i32, i32) {
    %c0_i32 = arith.constant 0 : i32
    %c0_i32_0 = arith.constant 0 : i32
    %c0_i32_1 = arith.constant 0 : i32
    return %c0_i32, %c0_i32_0 : i32, i32
  }
  func.func @transform_7(%arg0: i32) -> (i32, i32) {
    %c0_i32 = arith.constant 0 : i32
    %c0_i32_0 = arith.constant 0 : i32
    %c0_i32_1 = arith.constant 0 : i32
    return %c0_i32, %c0_i32_0 : i32, i32
  }
  func.func @transform_8(%arg0: i32) -> (i32, i32) {
    %c0_i32 = arith.constant 0 : i32
    %c0_i32_0 = arith.constant 0 : i32
    %c0_i32_1 = arith.constant 0 : i32
    return %c0_i32, %c0_i32_0 : i32, i32
  }
  func.func @transform_9(%arg0: i32) -> (i32, i32) {
    %c0_i32 = arith.constant 0 : i32
    %c0_i32_0 = arith.constant 0 : i32
    %c0_i32_1 = arith.constant 0 : i32
    return %c0_i32, %c0_i32_0 : i32, i32
  }
  func.func @transform_10(%arg0: i32) -> (i32, i32) {
    %c0_i32 = arith.constant 0 : i32
    %c0_i32_0 = arith.constant 0 : i32
    %c0_i32_1 = arith.constant 0 : i32
    return %c0_i32, %c0_i32_0 : i32, i32
  }
  func.func @transform_11(%arg0: i32) -> (i32, i32) {
    %c0_i32 = arith.constant 0 : i32
    %c0_i32_0 = arith.constant 0 : i32
    %c0_i32_1 = arith.constant 0 : i32
    return %c0_i32, %c0_i32_0 : i32, i32
  }
  func.func @transform_12(%arg0: i32) -> (i32, i32) {
    %c0_i32 = arith.constant 0 : i32
    %c0_i32_0 = arith.constant 0 : i32
    %c0_i32_1 = arith.constant 0 : i32
    return %c0_i32, %c0_i32_0 : i32, i32
  }
  func.func @transform_13(%arg0: i32) -> (i32, i32) {
    %c0_i32 = arith.constant 0 : i32
    %c0_i32_0 = arith.constant 0 : i32
    %c0_i32_1 = arith.constant 0 : i32
    return %c0_i32, %c0_i32_0 : i32, i32
  }
  func.func @transform_14(%arg0: i32) -> (i32, i32) {
    %c0_i32 = arith.constant 0 : i32
    %c0_i32_0 = arith.constant 0 : i32
    return %arg0, %c0_i32 : i32, i32
  }
  func.func @transform_15(%arg0: i32) -> (i32, i32) {
    %c0_i32 = arith.constant 0 : i32
    %c0_i32_0 = arith.constant 0 : i32
    return %arg0, %c0_i32 : i32, i32
  }
}

</mosaic_0001>

<llo_original>
// kernel: vae_forward.1
$region0: #{vae_forward.1}
  #allocation0 [shape = 'u32[]', space=smem, size = 0x4, offset = 0x4, fixed_abs, tag = 'smem constant byte address 0x4 - core index']
  #allocation1 [shape = 'u32[144,128]{1,0:T(1,128)}', space=vmem, size = 0x12000, scoped, tag = 'internal scratch']
  %s0 = inlined_call_operand.vmem [shape: f32[8,196], index: 0, kind: input, shape index: {}]
  %s1 = inlined_call_operand.vmem [shape: f32[8,8], index: 1, kind: input, shape index: {}]
  %s2 = inlined_call_operand.vmem [shape: f32[196,980], index: 2, kind: input, shape index: {}]
  %s3 = inlined_call_operand.vmem [shape: f32[1,980], index: 3, kind: input, shape index: {}]
  %s4 = inlined_call_operand.vmem [shape: f32[980,490], index: 4, kind: input, shape index: {}]
  %s5 = inlined_call_operand.vmem [shape: f32[1,490], index: 5, kind: input, shape index: {}]
  %s6 = inlined_call_operand.vmem [shape: f32[490,16], index: 6, kind: input, shape index: {}]
  %s7 = inlined_call_operand.vmem [shape: f32[1,16], index: 7, kind: input, shape index: {}]
  %s8 = inlined_call_operand.vmem [shape: f32[8,490], index: 8, kind: input, shape index: {}]
  %s9 = inlined_call_operand.vmem [shape: f32[1,490], index: 9, kind: input, shape index: {}]
  %s10 = inlined_call_operand.vmem [shape: f32[490,980], index: 10, kind: input, shape index: {}]
  %s11 = inlined_call_operand.vmem [shape: f32[1,980], index: 11, kind: input, shape index: {}]
  %s12 = inlined_call_operand.vmem [shape: f32[980,196], index: 12, kind: input, shape index: {}]
  %s13 = inlined_call_operand.vmem [shape: f32[1,196], index: 13, kind: input, shape index: {}]
  %s14 = inlined_call_operand.vmem [shape: f32[8,16], index: 14, kind: output, shape index: {0}]
  %s15 = inlined_call_operand.vmem [shape: f32[8,196], index: 15, kind: output, shape index: {1}]
  %16 = xla_tuple %s14, %s15
  %s17 = sld [smem:[#allocation0]]
  $region74: #{vae_forward.1} parent=0
    _
  %s19 = ssub.s32 1, %s17
  %s20 = scalar_select 0, %s19, %s17
  // Predicated region
  $region2: #{vae_forward.1} parent=0 // pred_check
    _
  $region3: #{vae_forward.1} parent=0 // pred_check_branch
    %22 = sbr.rel (0) target = $region5
  $region4: #{vae_forward.1} parent=0 // pred_region
    _
  $region5: #{vae_forward.1} parent=0 // pred_fallthru
    _
  // Predicated region
  $region6: #{vae_forward.1} parent=0 // pred_check
    _
  $region7: #{vae_forward.1} parent=0 // pred_check_branch
    %24 = sbr.rel (0) target = $region9
  $region8: #{vae_forward.1} parent=0 // pred_region
    _
  $region9: #{vae_forward.1} parent=0 // pred_fallthru
    _
  // Predicated region
  $region10: #{vae_forward.1} parent=0 // pred_check
    _
  $region11: #{vae_forward.1} parent=0 // pred_check_branch
    %26 = sbr.rel (0) target = $region13
  $region12: #{vae_forward.1} parent=0 // pred_region
    _
  $region13: #{vae_forward.1} parent=0 // pred_fallthru
    _
  // Predicated region
  $region14: #{vae_forward.1} parent=0 // pred_check
    _
  $region15: #{vae_forward.1} parent=0 // pred_check_branch
    %28 = sbr.rel (0) target = $region17
  $region16: #{vae_forward.1} parent=0 // pred_region
    _
  $region17: #{vae_forward.1} parent=0 // pred_fallthru
    _
  // Predicated region
  $region18: #{vae_forward.1} parent=0 // pred_check
    _
  $region19: #{vae_forward.1} parent=0 // pred_check_branch
    %30 = sbr.rel (0) target = $region21
  $region20: #{vae_forward.1} parent=0 // pred_region
    _
  $region21: #{vae_forward.1} parent=0 // pred_fallthru
    _
  // Predicated region
  $region22: #{vae_forward.1} parent=0 // pred_check
    _
  $region23: #{vae_forward.1} parent=0 // pred_check_branch
    %32 = sbr.rel (0) target = $region25
  $region24: #{vae_forward.1} parent=0 // pred_region
    _
  $region25: #{vae_forward.1} parent=0 // pred_fallthru
    _
  // Predicated region
  $region26: #{vae_forward.1} parent=0 // pred_check
    _
  $region27: #{vae_forward.1} parent=0 // pred_check_branch
    %34 = sbr.rel (0) target = $region29
  $region28: #{vae_forward.1} parent=0 // pred_region
    _
  $region29: #{vae_forward.1} parent=0 // pred_fallthru
    _
  // Predicated region
  $region30: #{vae_forward.1} parent=0 // pred_check
    _
  $region31: #{vae_forward.1} parent=0 // pred_check_branch
    %36 = sbr.rel (0) target = $region33
  $region32: #{vae_forward.1} parent=0 // pred_region
    _
  $region33: #{vae_forward.1} parent=0 // pred_fallthru
    _
  // Predicated region
  $region34: #{vae_forward.1} parent=0 // pred_check
    _
  $region35: #{vae_forward.1} parent=0 // pred_check_branch
    %38 = sbr.rel (0) target = $region37
  $region36: #{vae_forward.1} parent=0 // pred_region
    _
  $region37: #{vae_forward.1} parent=0 // pred_fallthru
    _
  // Predicated region
  $region38: #{vae_forward.1} parent=0 // pred_check
    _
  $region39: #{vae_forward.1} parent=0 // pred_check_branch
    %40 = sbr.rel (0) target = $region41
  $region40: #{vae_forward.1} parent=0 // pred_region
    _
  $region41: #{vae_forward.1} parent=0 // pred_fallthru
    _
  // Predicated region
  $region42: #{vae_forward.1} parent=0 // pred_check
    _
  $region43: #{vae_forward.1} parent=0 // pred_check_branch
    %42 = sbr.rel (0) target = $region45
  $region44: #{vae_forward.1} parent=0 // pred_region
    _
  $region45: #{vae_forward.1} parent=0 // pred_fallthru
    _
  // Predicated region
  $region46: #{vae_forward.1} parent=0 // pred_check
    _
  $region47: #{vae_forward.1} parent=0 // pred_check_branch
    %44 = sbr.rel (0) target = $region49
  $region48: #{vae_forward.1} parent=0 // pred_region
    _
  $region49: #{vae_forward.1} parent=0 // pred_fallthru
    _
  // Predicated region
  $region50: #{vae_forward.1} parent=0 // pred_check
    _
  $region51: #{vae_forward.1} parent=0 // pred_check_branch
    %46 = sbr.rel (0) target = $region53
  $region52: #{vae_forward.1} parent=0 // pred_region
    _
  $region53: #{vae_forward.1} parent=0 // pred_fallthru
    _
  // Predicated region
  $region54: #{vae_forward.1} parent=0 // pred_check
    _
  $region55: #{vae_forward.1} parent=0 // pred_check_branch
    %48 = sbr.rel (0) target = $region57
  $region56: #{vae_forward.1} parent=0 // pred_region
    _
  $region57: #{vae_forward.1} parent=0 // pred_fallthru
    _
  %v49 = vld [vmem:[%s0] sm:$0xff]
  %v50 = vld [vmem:[%s0 + $0x8] sm:$0xff]
  %v51 = vld [vmem:[%s2] sm:$0xff]
  %v52 = vld [vmem:[%s2 + $0x8] sm:$0xff]
  %v53 = vld [vmem:[%s2 + $0x10] sm:$0xff]
  %v54 = vld [vmem:[%s2 + $0x18] sm:$0xff]
  %v55 = vld [vmem:[%s2 + $0x20] sm:$0xff]
  %v56 = vld [vmem:[%s2 + $0x28] sm:$0xff]
  %v57 = vld [vmem:[%s2 + $0x30] sm:$0xff]
  %v58 = vld [vmem:[%s2 + $0x38] sm:$0xff]
  %v59 = vld [vmem:[%s2 + $0x40] sm:$0xff]
  %v60 = vld [vmem:[%s2 + $0x48] sm:$0xff]
  %v61 = vld [vmem:[%s2 + $0x50] sm:$0xff]
  %v62 = vld [vmem:[%s2 + $0x58] sm:$0xff]
  %v63 = vld [vmem:[%s2 + $0x60] sm:$0xff]
  %v64 = vld [vmem:[%s2 + $0x68] sm:$0xff]
  %v65 = vld [vmem:[%s2 + $0x70] sm:$0xff]
  %v66 = vld [vmem:[%s2 + $0x78] sm:$0xff]
  %v67 = vld [vmem:[%s2 + $0x80] sm:$0xff]
  %v68 = vld [vmem:[%s2 + $0x88] sm:$0xff]
  %v69 = vld [vmem:[%s2 + $0x90] sm:$0xff]
  %v70 = vld [vmem:[%s2 + $0x98] sm:$0xff]
  %v71 = vld [vmem:[%s2 + $0xa0] sm:$0xff]
  %v72 = vld [vmem:[%s2 + $0xa8] sm:$0xff]
  %v73 = vld [vmem:[%s2 + $0xb0] sm:$0xff]
  %v74 = vld [vmem:[%s2 + $0xb8] sm:$0xff]
  %v75 = vld [vmem:[%s2 + $0xc0] sm:$0xff]
  %v76 = vld [vmem:[%s2 + $0xc8] sm:$0xff]
  %v77 = vld [vmem:[%s2 + $0xd0] sm:$0xff]
  %v78 = vld [vmem:[%s2 + $0xd8] sm:$0xff]
  %v79 = vld [vmem:[%s2 + $0xe0] sm:$0xff]
  %v80 = vld [vmem:[%s2 + $0xe8] sm:$0xff]
  %v81 = vld [vmem:[%s2 + $0xf0] sm:$0xff]
  %v82 = vld [vmem:[%s2 + $0xf8] sm:$0xff]
  %v83 = vld [vmem:[%s2 + $0x100] sm:$0xff]
  %v84 = vld [vmem:[%s2 + $0x108] sm:$0xff]
  %v85 = vld [vmem:[%s2 + $0x110] sm:$0xff]
  %v86 = vld [vmem:[%s2 + $0x118] sm:$0xff]
  %v87 = vld [vmem:[%s2 + $0x120] sm:$0xff]
  %v88 = vld [vmem:[%s2 + $0x128] sm:$0xff]
  %v89 = vld [vmem:[%s2 + $0x130] sm:$0xff]
  %v90 = vld [vmem:[%s2 + $0x138] sm:$0xff]
  %v91 = vld [vmem:[%s2 + $0x140] sm:$0xff]
  %v92 = vld [vmem:[%s2 + $0x148] sm:$0xff]
  %v93 = vld [vmem:[%s2 + $0x150] sm:$0xff]
  %v94 = vld [vmem:[%s2 + $0x158] sm:$0xff]
  %v95 = vld [vmem:[%s2 + $0x160] sm:$0xff]
  %v96 = vld [vmem:[%s2 + $0x168] sm:$0xff]
  %v97 = vld [vmem:[%s2 + $0x170] sm:$0xff]
  %v98 = vld [vmem:[%s2 + $0x178] sm:$0xff]
  %v99 = vld [vmem:[%s2 + $0x180] sm:$0xff]
  %v100 = vld [vmem:[%s2 + $0x188] sm:$0xff]
  %v101 = vld [vmem:[%s2 + $0x190] sm:$0xff]
  %v102 = vld [vmem:[%s2 + $0x198] sm:$0xff]
  %v103 = vld [vmem:[%s2 + $0x1a0] sm:$0xff]
  %v104 = vld [vmem:[%s2 + $0x1a8] sm:$0xff]
  %v105 = vld [vmem:[%s2 + $0x1b0] sm:$0xff]
  %v106 = vld [vmem:[%s2 + $0x1b8] sm:$0xff]
  %v107 = vld [vmem:[%s2 + $0x1c0] sm:$0xff]
  %v108 = vld [vmem:[%s2 + $0x1c8] sm:$0xff]
  %v109 = vld [vmem:[%s2 + $0x1d0] sm:$0xff]
  %v110 = vld [vmem:[%s2 + $0x1d8] sm:$0xff]
  %v111 = vld [vmem:[%s2 + $0x1e0] sm:$0xff]
  %v112 = vld [vmem:[%s2 + $0x1e8] sm:$0xff]
  %v113 = vld [vmem:[%s2 + $0x1f0] sm:$0xff]
  %v114 = vld [vmem:[%s2 + $0x1f8] sm:$0xff]
  %v115 = vld [vmem:[%s2 + $0x200] sm:$0xff]
  %v116 = vld [vmem:[%s2 + $0x208] sm:$0xff]
  %v117 = vld [vmem:[%s2 + $0x210] sm:$0xff]
  %v118 = vld [vmem:[%s2 + $0x218] sm:$0xff]
  %v119 = vld [vmem:[%s2 + $0x220] sm:$0xff]
  %v120 = vld [vmem:[%s2 + $0x228] sm:$0xff]
  %v121 = vld [vmem:[%s2 + $0x230] sm:$0xff]
  %v122 = vld [vmem:[%s2 + $0x238] sm:$0xff]
  %v123 = vld [vmem:[%s2 + $0x240] sm:$0xff]
  %v124 = vld [vmem:[%s2 + $0x248] sm:$0xff]
  %v125 = vld [vmem:[%s2 + $0x250] sm:$0xff]
  %v126 = vld [vmem:[%s2 + $0x258] sm:$0xff]
  %v127 = vld [vmem:[%s2 + $0x260] sm:$0xff]
  %v128 = vld [vmem:[%s2 + $0x268] sm:$0xff]
  %v129 = vld [vmem:[%s2 + $0x270] sm:$0xff]
  %v130 = vld [vmem:[%s2 + $0x278] sm:$0xff]
  %v131 = vld [vmem:[%s2 + $0x280] sm:$0xff]
  %v132 = vld [vmem:[%s2 + $0x288] sm:$0xff]
  %v133 = vld [vmem:[%s2 + $0x290] sm:$0xff]
  %v134 = vld [vmem:[%s2 + $0x298] sm:$0xff]
  %v135 = vld [vmem:[%s2 + $0x2a0] sm:$0xff]
  %v136 = vld [vmem:[%s2 + $0x2a8] sm:$0xff]
  %v137 = vld [vmem:[%s2 + $0x2b0] sm:$0xff]
  %v138 = vld [vmem:[%s2 + $0x2b8] sm:$0xff]
  %v139 = vld [vmem:[%s2 + $0x2c0] sm:$0xff]
  %v140 = vld [vmem:[%s2 + $0x2c8] sm:$0xff]
  %v141 = vld [vmem:[%s2 + $0x2d0] sm:$0xff]
  %v142 = vld [vmem:[%s2 + $0x2d8] sm:$0xff]
  %v143 = vld [vmem:[%s2 + $0x2e0] sm:$0xff]
  %v144 = vld [vmem:[%s2 + $0x2e8] sm:$0xff]
  %v145 = vld [vmem:[%s2 + $0x2f0] sm:$0xff]
  %v146 = vld [vmem:[%s2 + $0x2f8] sm:$0xff]
  %v147 = vld [vmem:[%s2 + $0x300] sm:$0xff]
  %v148 = vld [vmem:[%s2 + $0x308] sm:$0xff]
  %v149 = vld [vmem:[%s2 + $0x310] sm:$0xff]
  %v150 = vld [vmem:[%s2 + $0x318] sm:$0xff]
  %v151 = vld [vmem:[%s2 + $0x320] sm:$0xff]
  %v152 = vld [vmem:[%s2 + $0x328] sm:$0xff]
  %v153 = vld [vmem:[%s2 + $0x330] sm:$0xff]
  %v154 = vld [vmem:[%s2 + $0x338] sm:$0xff]
  %v155 = vld [vmem:[%s2 + $0x340] sm:$0xff]
  %v156 = vld [vmem:[%s2 + $0x348] sm:$0xff]
  %v157 = vld [vmem:[%s2 + $0x350] sm:$0xff]
  %v158 = vld [vmem:[%s2 + $0x358] sm:$0xff]
  %v159 = vld [vmem:[%s2 + $0x360] sm:$0xff]
  %v160 = vld [vmem:[%s2 + $0x368] sm:$0xff]
  %v161 = vld [vmem:[%s2 + $0x370] sm:$0xff]
  %v162 = vld [vmem:[%s2 + $0x378] sm:$0xff]
  %v163 = vld [vmem:[%s2 + $0x380] sm:$0xff]
  %v164 = vld [vmem:[%s2 + $0x388] sm:$0xff]
  %v165 = vld [vmem:[%s2 + $0x390] sm:$0xff]
  %v166 = vld [vmem:[%s2 + $0x398] sm:$0xff]
  %v167 = vld [vmem:[%s2 + $0x3a0] sm:$0xff]
  %v168 = vld [vmem:[%s2 + $0x3a8] sm:$0xff]
  %v169 = vld [vmem:[%s2 + $0x3b0] sm:$0xff]
  %v170 = vld [vmem:[%s2 + $0x3b8] sm:$0xff]
  %v171 = vld [vmem:[%s2 + $0x3c0] sm:$0xff]
  %v172 = vld [vmem:[%s2 + $0x3c8] sm:$0xff]
  %v173 = vld [vmem:[%s2 + $0x3d0] sm:$0xff]
  %v174 = vld [vmem:[%s2 + $0x3d8] sm:$0xff]
  %v175 = vld [vmem:[%s2 + $0x3e0] sm:$0xff]
  %v176 = vld [vmem:[%s2 + $0x3e8] sm:$0xff]
  %v177 = vld [vmem:[%s2 + $0x3f0] sm:$0xff]
  %v178 = vld [vmem:[%s2 + $0x3f8] sm:$0xff]
  %v179 = vld [vmem:[%s2 + $0x400] sm:$0xff]
  %v180 = vld [vmem:[%s2 + $0x408] sm:$0xff]
  %v181 = vld [vmem:[%s2 + $0x410] sm:$0xff]
  %v182 = vld [vmem:[%s2 + $0x418] sm:$0xff]
  %v183 = vld [vmem:[%s2 + $0x420] sm:$0xff]
  %v184 = vld [vmem:[%s2 + $0x428] sm:$0xff]
  %v185 = vld [vmem:[%s2 + $0x430] sm:$0xff]
  %v186 = vld [vmem:[%s2 + $0x438] sm:$0xff]
  %v187 = vld [vmem:[%s2 + $0x440] sm:$0xff]
  %v188 = vld [vmem:[%s2 + $0x448] sm:$0xff]
  %v189 = vld [vmem:[%s2 + $0x450] sm:$0xff]
  %v190 = vld [vmem:[%s2 + $0x458] sm:$0xff]
  %v191 = vld [vmem:[%s2 + $0x460] sm:$0xff]
  %v192 = vld [vmem:[%s2 + $0x468] sm:$0xff]
  %v193 = vld [vmem:[%s2 + $0x470] sm:$0xff]
  %v194 = vld [vmem:[%s2 + $0x478] sm:$0xff]
  %v195 = vld [vmem:[%s2 + $0x480] sm:$0xff]
  %v196 = vld [vmem:[%s2 + $0x488] sm:$0xff]
  %v197 = vld [vmem:[%s2 + $0x490] sm:$0xff]
  %v198 = vld [vmem:[%s2 + $0x498] sm:$0xff]
  %v199 = vld [vmem:[%s2 + $0x4a0] sm:$0xff]
  %v200 = vld [vmem:[%s2 + $0x4a8] sm:$0xff]
  %v201 = vld [vmem:[%s2 + $0x4b0] sm:$0xff]
  %v202 = vld [vmem:[%s2 + $0x4b8] sm:$0xff]
  %v203 = vld [vmem:[%s2 + $0x4c0] sm:$0xff]
  %v204 = vld [vmem:[%s2 + $0x4c8] sm:$0xff]
  %v205 = vld [vmem:[%s2 + $0x4d0] sm:$0xff]
  %v206 = vld [vmem:[%s2 + $0x4d8] sm:$0xff]
  %v207 = vld [vmem:[%s2 + $0x4e0] sm:$0xff]
  %v208 = vld [vmem:[%s2 + $0x4e8] sm:$0xff]
  %v209 = vld [vmem:[%s2 + $0x4f0] sm:$0xff]
  %v210 = vld [vmem:[%s2 + $0x4f8] sm:$0xff]
  %v211 = vld [vmem:[%s2 + $0x500] sm:$0xff]
  %v212 = vld [vmem:[%s2 + $0x508] sm:$0xff]
  %v213 = vld [vmem:[%s2 + $0x510] sm:$0xff]
  %v214 = vld [vmem:[%s2 + $0x518] sm:$0xff]
  %v215 = vld [vmem:[%s2 + $0x520] sm:$0xff]
  %v216 = vld [vmem:[%s2 + $0x528] sm:$0xff]
  %v217 = vld [vmem:[%s2 + $0x530] sm:$0xff]
  %v218 = vld [vmem:[%s2 + $0x538] sm:$0xff]
  %v219 = vld [vmem:[%s2 + $0x540] sm:$0xff]
  %v220 = vld [vmem:[%s2 + $0x548] sm:$0xff]
  %v221 = vld [vmem:[%s2 + $0x550] sm:$0xff]
  %v222 = vld [vmem:[%s2 + $0x558] sm:$0xff]
  %v223 = vld [vmem:[%s2 + $0x560] sm:$0xff]
  %v224 = vld [vmem:[%s2 + $0x568] sm:$0xff]
  %v225 = vld [vmem:[%s2 + $0x570] sm:$0xff]
  %v226 = vld [vmem:[%s2 + $0x578] sm:$0xff]
  %v227 = vld [vmem:[%s2 + $0x580] sm:$0xff]
  %v228 = vld [vmem:[%s2 + $0x588] sm:$0xff]
  %v229 = vld [vmem:[%s2 + $0x590] sm:$0xff]
  %v230 = vld [vmem:[%s2 + $0x598] sm:$0xff]
  %v231 = vld [vmem:[%s2 + $0x5a0] sm:$0xff]
  %v232 = vld [vmem:[%s2 + $0x5a8] sm:$0xff]
  %v233 = vld [vmem:[%s2 + $0x5b0] sm:$0xff]
  %v234 = vld [vmem:[%s2 + $0x5b8] sm:$0xff]
  %v235 = vld [vmem:[%s2 + $0x5c0] sm:$0xff]
  %v236 = vld [vmem:[%s2 + $0x5c8] sm:$0xff]
  %v237 = vld [vmem:[%s2 + $0x5d0] sm:$0xff]
  %v238 = vld [vmem:[%s2 + $0x5d8] sm:$0xff]
  %v239 = vld [vmem:[%s2 + $0x5e0] sm:$0xff]
  %v240 = vld [vmem:[%s2 + $0x5e8] sm:$0xff]
  %v241 = vld [vmem:[%s2 + $0x5f0] sm:$0xff]
  %v242 = vld [vmem:[%s2 + $0x5f8] sm:$0xff]
  %v243 = vld [vmem:[%s2 + $0x600] sm:$0xf]
  %v244 = vld [vmem:[%s2 + $0x608] sm:$0xf]
  %v245 = vld [vmem:[%s2 + $0x610] sm:$0xf]
  %v246 = vld [vmem:[%s2 + $0x618] sm:$0xf]
  %v247 = vld [vmem:[%s2 + $0x620] sm:$0xf]
  %v248 = vld [vmem:[%s2 + $0x628] sm:$0xf]
  %v249 = vld [vmem:[%s2 + $0x630] sm:$0xf]
  %v250 = vld [vmem:[%s2 + $0x638] sm:$0xf]
  %v251 = vld [vmem:[%s3] sm:$0xff]
  %v253 = vlaneseq
  %v254 = vshrl.u32 %v253, 7
  %v255 = vsub.s32 0, %v254
  %v256 = vrot.slane %v251, %v255
  %v257 = vlaneseq
  %v258 = vshrl.u32 %v257, 7
  %v259 = vsub.s32 1, %v258
  %v260 = vrot.slane %v251, %v259
  %v261 = vlaneseq
  %v262 = vshrl.u32 %v261, 7
  %v263 = vsub.s32 2, %v262
  %v264 = vrot.slane %v251, %v263
  %v265 = vlaneseq
  %v266 = vshrl.u32 %v265, 7
  %v267 = vsub.s32 3, %v266
  %v268 = vrot.slane %v251, %v267
  %v269 = vlaneseq
  %v270 = vshrl.u32 %v269, 7
  %v271 = vsub.s32 4, %v270
  %v272 = vrot.slane %v251, %v271
  %v273 = vlaneseq
  %v274 = vshrl.u32 %v273, 7
  %v275 = vsub.s32 5, %v274
  %v276 = vrot.slane %v251, %v275
  %v277 = vlaneseq
  %v278 = vshrl.u32 %v277, 7
  %v279 = vsub.s32 6, %v278
  %v280 = vrot.slane %v251, %v279
  %v281 = vlaneseq
  %v282 = vshrl.u32 %v281, 7
  %v283 = vsub.s32 7, %v282
  %v284 = vrot.slane %v251, %v283
  %vm293 = vcmask 556032
  %v295 = vsel %vm293, %v50, 0
  %vm297 = vcmask 1043456
  %v299 = vsel %vm297, %v243, 0
  %v302 = vsel %vm297, %v244, 0
  %v305 = vsel %vm297, %v245, 0
  %v308 = vsel %vm297, %v246, 0
  %v311 = vsel %vm297, %v247, 0
  %v314 = vsel %vm297, %v248, 0
  %v317 = vsel %vm297, %v249, 0
  %v320 = vsel %vm297, %v250, 0
  %322 = vmatprep.subr.mxu0 %v172
  %323 = vmatpush1.msra.mxu0 %v171
  %324 = vmatprep.subr.mxu0 %v164
  %325 = vmatpush1.msra.mxu0 %v163
  %326 = vmatprep.subr.mxu0 %v156
  %327 = vmatpush1.msra.mxu0 %v155
  %328 = vmatprep.subr.mxu0 %v148
  %329 = vmatpush1.msra.mxu0 %v147
  %330 = vmatprep.subr.mxu0 %v140
  %331 = vmatpush1.msra.mxu0 %v139
  %332 = vmatprep.subr.mxu0 %v132
  %333 = vmatpush1.msra.mxu0 %v131
  %334 = vmatprep.subr.mxu0 %v124
  %335 = vmatpush1.msra.mxu0 %v123
  %336 = vmatprep.subr.mxu0 %v116
  %337 = vmatpush1.msra.mxu0 %v115
  %338 = vmatprep.subr.mxu0 %v108
  %339 = vmatpush1.msra.mxu0 %v107
  %340 = vmatprep.subr.mxu0 %v100
  %341 = vmatpush1.msra.mxu0 %v99
  %342 = vmatprep.subr.mxu0 %v92
  %343 = vmatpush1.msra.mxu0 %v91
  %344 = vmatprep.subr.mxu0 %v84
  %345 = vmatpush1.msra.mxu0 %v83
  %346 = vmatprep.subr.mxu0 %v76
  %347 = vmatpush1.msra.mxu0 %v75
  %348 = vmatprep.subr.mxu0 %v68
  %349 = vmatpush1.msra.mxu0 %v67
  %350 = vmatprep.subr.mxu0 %v60
  %351 = vmatpush1.msra.mxu0 %v59
  %352 = vmatprep.subr.mxu0 %v52
  %353 = vmatpush1.msra.mxu0 %v51
  %354 = vmatprep.subr.mxu0 0.0
  %355 = vmatpush2.msra.mxu0 0.0
  %356 = vmatprep.subr.mxu0 0.0
  %357 = vmatpush2.msra.mxu0 0.0
  %358 = vmatprep.subr.mxu0 0.0
  %359 = vmatpush2.msra.mxu0 0.0
  %360 = vmatprep.subr.mxu0 0.0
  %361 = vmatpush2.msra.mxu0 0.0
  %362 = vmatprep.subr.mxu0 0.0
  %363 = vmatpush2.msra.mxu0 0.0
  %364 = vmatprep.subr.mxu0 0.0
  %365 = vmatpush2.msra.mxu0 0.0
  %366 = vmatprep.subr.mxu0 0.0
  %367 = vmatpush2.msra.mxu0 0.0
  %368 = vmatprep.subr.mxu0 %v302
  %369 = vmatpush2.msra.mxu0 %v299
  %370 = vmatprep.subr.mxu0 %v236
  %371 = vmatpush2.msra.mxu0 %v235
  %372 = vmatprep.subr.mxu0 %v228
  %373 = vmatpush2.msra.mxu0 %v227
  %374 = vmatprep.subr.mxu0 %v220
  %375 = vmatpush2.msra.mxu0 %v219
  %376 = vmatprep.subr.mxu0 %v212
  %377 = vmatpush2.msra.mxu0 %v211
  %378 = vmatprep.subr.mxu0 %v204
  %379 = vmatpush2.msra.mxu0 %v203
  %380 = vmatprep.subr.mxu0 %v196
  %381 = vmatpush2.msra.mxu0 %v195
  %382 = vmatprep.subr.mxu0 %v188
  %383 = vmatpush2.msra.mxu0 %v187
  %384 = vmatprep.subr.mxu0 %v180
  %385 = vmatpush2.msra.mxu0 %v179
  %386 = vmatprep.mubr.f32.mxu0 %v295
  %387 = vmatmul.mubr.f32.gmra.mxu0 %v49
  %v388 = vpop.f32.mrf.mxu0
  %v389 = vadd.f32 %v256, %v388
  %v390 = vpop.f32.mrf.mxu0
  %v391 = vadd.f32 %v260, %v390
  %392 = vdwg.mxu0
  %393 = vmatprep.subr.mxu0 %v174
  %394 = vmatpush1.msra.mxu0 %v173
  %395 = vmatprep.subr.mxu0 %v166
  %396 = vmatpush1.msra.mxu0 %v165
  %397 = vmatprep.subr.mxu0 %v158
  %398 = vmatpush1.msra.mxu0 %v157
  %399 = vmatprep.subr.mxu0 %v150
  %400 = vmatpush1.msra.mxu0 %v149
  %401 = vmatprep.subr.mxu0 %v142
  %402 = vmatpush1.msra.mxu0 %v141
  %403 = vmatprep.subr.mxu0 %v134
  %404 = vmatpush1.msra.mxu0 %v133
  %405 = vmatprep.subr.mxu0 %v126
  %406 = vmatpush1.msra.mxu0 %v125
  %407 = vmatprep.subr.mxu0 %v118
  %408 = vmatpush1.msra.mxu0 %v117
  %409 = vmatprep.subr.mxu0 %v110
  %410 = vmatpush1.msra.mxu0 %v109
  %411 = vmatprep.subr.mxu0 %v102
  %412 = vmatpush1.msra.mxu0 %v101
  %413 = vmatprep.subr.mxu0 %v94
  %414 = vmatpush1.msra.mxu0 %v93
  %415 = vmatprep.subr.mxu0 %v86
  %416 = vmatpush1.msra.mxu0 %v85
  %417 = vmatprep.subr.mxu0 %v78
  %418 = vmatpush1.msra.mxu0 %v77
  %419 = vmatprep.subr.mxu0 %v70
  %420 = vmatpush1.msra.mxu0 %v69
  %421 = vmatprep.subr.mxu0 %v62
  %422 = vmatpush1.msra.mxu0 %v61
  %423 = vmatprep.subr.mxu0 %v54
  %424 = vmatpush1.msra.mxu0 %v53
  %425 = vmatprep.subr.mxu0 0.0
  %426 = vmatpush2.msra.mxu0 0.0
  %427 = vmatprep.subr.mxu0 0.0
  %428 = vmatpush2.msra.mxu0 0.0
  %429 = vmatprep.subr.mxu0 0.0
  %430 = vmatpush2.msra.mxu0 0.0
  %431 = vmatprep.subr.mxu0 0.0
  %432 = vmatpush2.msra.mxu0 0.0
  %433 = vmatprep.subr.mxu0 0.0
  %434 = vmatpush2.msra.mxu0 0.0
  %435 = vmatprep.subr.mxu0 0.0
  %436 = vmatpush2.msra.mxu0 0.0
  %437 = vmatprep.subr.mxu0 0.0
  %438 = vmatpush2.msra.mxu0 0.0
  %439 = vmatprep.subr.mxu0 %v308
  %440 = vmatpush2.msra.mxu0 %v305
  %441 = vmatprep.subr.mxu0 %v238
  %442 = vmatpush2.msra.mxu0 %v237
  %443 = vmatprep.subr.mxu0 %v230
  %444 = vmatpush2.msra.mxu0 %v229
  %445 = vmatprep.subr.mxu0 %v222
  %446 = vmatpush2.msra.mxu0 %v221
  %447 = vmatprep.subr.mxu0 %v214
  %448 = vmatpush2.msra.mxu0 %v213
  %449 = vmatprep.subr.mxu0 %v206
  %450 = vmatpush2.msra.mxu0 %v205
  %451 = vmatprep.subr.mxu0 %v198
  %452 = vmatpush2.msra.mxu0 %v197
  %453 = vmatprep.subr.mxu0 %v190
  %454 = vmatpush2.msra.mxu0 %v189
  %455 = vmatprep.subr.mxu0 %v182
  %456 = vmatpush2.msra.mxu0 %v181
  %457 = vmatprep.mubr.f32.mxu0 %v295
  %458 = vmatmul.mubr.f32.gmra.mxu0 %v49
  %v459 = vpop.f32.mrf.mxu0
  %v460 = vadd.f32 %v264, %v459
  %v461 = vpop.f32.mrf.mxu0
  %v462 = vadd.f32 %v268, %v461
  %463 = vdwg.mxu0
  %464 = vmatprep.subr.mxu0 %v176
  %465 = vmatpush1.msra.mxu0 %v175
  %466 = vmatprep.subr.mxu0 %v168
  %467 = vmatpush1.msra.mxu0 %v167
  %468 = vmatprep.subr.mxu0 %v160
  %469 = vmatpush1.msra.mxu0 %v159
  %470 = vmatprep.subr.mxu0 %v152
  %471 = vmatpush1.msra.mxu0 %v151
  %472 = vmatprep.subr.mxu0 %v144
  %473 = vmatpush1.msra.mxu0 %v143
  %474 = vmatprep.subr.mxu0 %v136
  %475 = vmatpush1.msra.mxu0 %v135
  %476 = vmatprep.subr.mxu0 %v128
  %477 = vmatpush1.msra.mxu0 %v127
  %478 = vmatprep.subr.mxu0 %v120
  %479 = vmatpush1.msra.mxu0 %v119
  %480 = vmatprep.subr.mxu0 %v112
  %481 = vmatpush1.msra.mxu0 %v111
  %482 = vmatprep.subr.mxu0 %v104
  %483 = vmatpush1.msra.mxu0 %v103
  %484 = vmatprep.subr.mxu0 %v96
  %485 = vmatpush1.msra.mxu0 %v95
  %486 = vmatprep.subr.mxu0 %v88
  %487 = vmatpush1.msra.mxu0 %v87
  %488 = vmatprep.subr.mxu0 %v80
  %489 = vmatpush1.msra.mxu0 %v79
  %490 = vmatprep.subr.mxu0 %v72
  %491 = vmatpush1.msra.mxu0 %v71
  %492 = vmatprep.subr.mxu0 %v64
  %493 = vmatpush1.msra.mxu0 %v63
  %494 = vmatprep.subr.mxu0 %v56
  %495 = vmatpush1.msra.mxu0 %v55
  %496 = vmatprep.subr.mxu0 0.0
  %497 = vmatpush2.msra.mxu0 0.0
  %498 = vmatprep.subr.mxu0 0.0
  %499 = vmatpush2.msra.mxu0 0.0
  %500 = vmatprep.subr.mxu0 0.0
  %501 = vmatpush2.msra.mxu0 0.0
  %502 = vmatprep.subr.mxu0 0.0
  %503 = vmatpush2.msra.mxu0 0.0
  %504 = vmatprep.subr.mxu0 0.0
  %505 = vmatpush2.msra.mxu0 0.0
  %506 = vmatprep.subr.mxu0 0.0
  %507 = vmatpush2.msra.mxu0 0.0
  %508 = vmatprep.subr.mxu0 0.0
  %509 = vmatpush2.msra.mxu0 0.0
  %510 = vmatprep.subr.mxu0 %v314
  %511 = vmatpush2.msra.mxu0 %v311
  %512 = vmatprep.subr.mxu0 %v240
  %513 = vmatpush2.msra.mxu0 %v239
  %514 = vmatprep.subr.mxu0 %v232
  %515 = vmatpush2.msra.mxu0 %v231
  %516 = vmatprep.subr.mxu0 %v224
  %517 = vmatpush2.msra.mxu0 %v223
  %518 = vmatprep.subr.mxu0 %v216
  %519 = vmatpush2.msra.mxu0 %v215
  %520 = vmatprep.subr.mxu0 %v208
  %521 = vmatpush2.msra.mxu0 %v207
  %522 = vmatprep.subr.mxu0 %v200
  %523 = vmatpush2.msra.mxu0 %v199
  %524 = vmatprep.subr.mxu0 %v192
  %525 = vmatpush2.msra.mxu0 %v191
  %526 = vmatprep.subr.mxu0 %v184
  %527 = vmatpush2.msra.mxu0 %v183
  %528 = vmatprep.mubr.f32.mxu0 %v295
  %529 = vmatmul.mubr.f32.gmra.mxu0 %v49
  %v530 = vpop.f32.mrf.mxu0
  %v531 = vadd.f32 %v272, %v530
  %v532 = vpop.f32.mrf.mxu0
  %v533 = vadd.f32 %v276, %v532
  %534 = vdwg.mxu0
  %535 = vmatprep.subr.mxu0 %v178
  %536 = vmatpush1.msra.mxu0 %v177
  %537 = vmatprep.subr.mxu0 %v170
  %538 = vmatpush1.msra.mxu0 %v169
  %539 = vmatprep.subr.mxu0 %v162
  %540 = vmatpush1.msra.mxu0 %v161
  %541 = vmatprep.subr.mxu0 %v154
  %542 = vmatpush1.msra.mxu0 %v153
  %543 = vmatprep.subr.mxu0 %v146
  %544 = vmatpush1.msra.mxu0 %v145
  %545 = vmatprep.subr.mxu0 %v138
  %546 = vmatpush1.msra.mxu0 %v137
  %547 = vmatprep.subr.mxu0 %v130
  %548 = vmatpush1.msra.mxu0 %v129
  %549 = vmatprep.subr.mxu0 %v122
  %550 = vmatpush1.msra.mxu0 %v121
  %551 = vmatprep.subr.mxu0 %v114
  %552 = vmatpush1.msra.mxu0 %v113
  %553 = vmatprep.subr.mxu0 %v106
  %554 = vmatpush1.msra.mxu0 %v105
  %555 = vmatprep.subr.mxu0 %v98
  %556 = vmatpush1.msra.mxu0 %v97
  %557 = vmatprep.subr.mxu0 %v90
  %558 = vmatpush1.msra.mxu0 %v89
  %559 = vmatprep.subr.mxu0 %v82
  %560 = vmatpush1.msra.mxu0 %v81
  %561 = vmatprep.subr.mxu0 %v74
  %562 = vmatpush1.msra.mxu0 %v73
  %563 = vmatprep.subr.mxu0 %v66
  %564 = vmatpush1.msra.mxu0 %v65
  %565 = vmatprep.subr.mxu0 %v58
  %566 = vmatpush1.msra.mxu0 %v57
  %567 = vmatprep.subr.mxu0 0.0
  %568 = vmatpush2.msra.mxu0 0.0
  %569 = vmatprep.subr.mxu0 0.0
  %570 = vmatpush2.msra.mxu0 0.0
  %571 = vmatprep.subr.mxu0 0.0
  %572 = vmatpush2.msra.mxu0 0.0
  %573 = vmatprep.subr.mxu0 0.0
  %574 = vmatpush2.msra.mxu0 0.0
  %575 = vmatprep.subr.mxu0 0.0
  %576 = vmatpush2.msra.mxu0 0.0
  %577 = vmatprep.subr.mxu0 0.0
  %578 = vmatpush2.msra.mxu0 0.0
  %579 = vmatprep.subr.mxu0 0.0
  %580 = vmatpush2.msra.mxu0 0.0
  %581 = vmatprep.subr.mxu0 %v320
  %582 = vmatpush2.msra.mxu0 %v317
  %583 = vmatprep.subr.mxu0 %v242
  %584 = vmatpush2.msra.mxu0 %v241
  %585 = vmatprep.subr.mxu0 %v234
  %586 = vmatpush2.msra.mxu0 %v233
  %587 = vmatprep.subr.mxu0 %v226
  %588 = vmatpush2.msra.mxu0 %v225
  %589 = vmatprep.subr.mxu0 %v218
  %590 = vmatpush2.msra.mxu0 %v217
  %591 = vmatprep.subr.mxu0 %v210
  %592 = vmatpush2.msra.mxu0 %v209
  %593 = vmatprep.subr.mxu0 %v202
  %594 = vmatpush2.msra.mxu0 %v201
  %595 = vmatprep.subr.mxu0 %v194
  %596 = vmatpush2.msra.mxu0 %v193
  %597 = vmatprep.subr.mxu0 %v186
  %598 = vmatpush2.msra.mxu0 %v185
  %599 = vmatprep.mubr.f32.mxu0 %v295
  %600 = vmatmul.mubr.f32.gmra.mxu0 %v49
  %v601 = vpop.f32.mrf.mxu0
  %v602 = vadd.f32 %v280, %v601
  %v603 = vpop.f32.mrf.mxu0
  %v604 = vadd.f32 %v284, %v603
  %605 = vdwg.mxu0
  %v606 = vmax.f32 %v389, 0.0
  %v607 = vmax.f32 %v391, 0.0
  %v608 = vmax.f32 %v460, 0.0
  %v609 = vmax.f32 %v462, 0.0
  %v610 = vmax.f32 %v531, 0.0
  %v611 = vmax.f32 %v533, 0.0
  %v612 = vmax.f32 %v602, 0.0
  %v613 = vmax.f32 %v604, 0.0
  %v614 = vld [vmem:[%s4] sm:$0xff]
  %v615 = vld [vmem:[%s4 + $0x8] sm:$0xff]
  %v616 = vld [vmem:[%s4 + $0x10] sm:$0xff]
  %v617 = vld [vmem:[%s4 + $0x18] sm:$0xff]
  %v618 = vld [vmem:[%s4 + $0x20] sm:$0xff]
  %v619 = vld [vmem:[%s4 + $0x28] sm:$0xff]
  %v620 = vld [vmem:[%s4 + $0x30] sm:$0xff]
  %v621 = vld [vmem:[%s4 + $0x38] sm:$0xff]
  %v622 = vld [vmem:[%s4 + $0x40] sm:$0xff]
  %v623 = vld [vmem:[%s4 + $0x48] sm:$0xff]
  %v624 = vld [vmem:[%s4 + $0x50] sm:$0xff]
  %v625 = vld [vmem:[%s4 + $0x58] sm:$0xff]
  %v626 = vld [vmem:[%s4 + $0x60] sm:$0xff]
  %v627 = vld [vmem:[%s4 + $0x68] sm:$0xff]
  %v628 = vld [vmem:[%s4 + $0x70] sm:$0xff]
  %v629 = vld [vmem:[%s4 + $0x78] sm:$0xff]
  %v630 = vld [vmem:[%s4 + $0x80] sm:$0xff]
  %v631 = vld [vmem:[%s4 + $0x88] sm:$0xff]
  %v632 = vld [vmem:[%s4 + $0x90] sm:$0xff]
  %v633 = vld [vmem:[%s4 + $0x98] sm:$0xff]
  %v634 = vld [vmem:[%s4 + $0xa0] sm:$0xff]
  %v635 = vld [vmem:[%s4 + $0xa8] sm:$0xff]
  %v636 = vld [vmem:[%s4 + $0xb0] sm:$0xff]
  %v637 = vld [vmem:[%s4 + $0xb8] sm:$0xff]
  %v638 = vld [vmem:[%s4 + $0xc0] sm:$0xff]
  %v639 = vld [vmem:[%s4 + $0xc8] sm:$0xff]
  %v640 = vld [vmem:[%s4 + $0xd0] sm:$0xff]
  %v641 = vld [vmem:[%s4 + $0xd8] sm:$0xff]
  %v642 = vld [vmem:[%s4 + $0xe0] sm:$0xff]
  %v643 = vld [vmem:[%s4 + $0xe8] sm:$0xff]
  %v644 = vld [vmem:[%s4 + $0xf0] sm:$0xff]
  %v645 = vld [vmem:[%s4 + $0xf8] sm:$0xff]
  %v646 = vld [vmem:[%s4 + $0x100] sm:$0xff]
  %v647 = vld [vmem:[%s4 + $0x108] sm:$0xff]
  %v648 = vld [vmem:[%s4 + $0x110] sm:$0xff]
  %v649 = vld [vmem:[%s4 + $0x118] sm:$0xff]
  %v650 = vld [vmem:[%s4 + $0x120] sm:$0xff]
  %v651 = vld [vmem:[%s4 + $0x128] sm:$0xff]
  %v652 = vld [vmem:[%s4 + $0x130] sm:$0xff]
  %v653 = vld [vmem:[%s4 + $0x138] sm:$0xff]
  %v654 = vld [vmem:[%s4 + $0x140] sm:$0xff]
  %v655 = vld [vmem:[%s4 + $0x148] sm:$0xff]
  %v656 = vld [vmem:[%s4 + $0x150] sm:$0xff]
  %v657 = vld [vmem:[%s4 + $0x158] sm:$0xff]
  %v658 = vld [vmem:[%s4 + $0x160] sm:$0xff]
  %v659 = vld [vmem:[%s4 + $0x168] sm:$0xff]
  %v660 = vld [vmem:[%s4 + $0x170] sm:$0xff]
  %v661 = vld [vmem:[%s4 + $0x178] sm:$0xff]
  %v662 = vld [vmem:[%s4 + $0x180] sm:$0xff]
  %v663 = vld [vmem:[%s4 + $0x188] sm:$0xff]
  %v664 = vld [vmem:[%s4 + $0x190] sm:$0xff]
  %v665 = vld [vmem:[%s4 + $0x198] sm:$0xff]
  %v666 = vld [vmem:[%s4 + $0x1a0] sm:$0xff]
  %v667 = vld [vmem:[%s4 + $0x1a8] sm:$0xff]
  %v668 = vld [vmem:[%s4 + $0x1b0] sm:$0xff]
  %v669 = vld [vmem:[%s4 + $0x1b8] sm:$0xff]
  %v670 = vld [vmem:[%s4 + $0x1c0] sm:$0xff]
  %v671 = vld [vmem:[%s4 + $0x1c8] sm:$0xff]
  %v672 = vld [vmem:[%s4 + $0x1d0] sm:$0xff]
  %v673 = vld [vmem:[%s4 + $0x1d8] sm:$0xff]
  %v674 = vld [vmem:[%s4 + $0x1e0] sm:$0xff]
  %v675 = vld [vmem:[%s4 + $0x1e8] sm:$0xff]
  %v676 = vld [vmem:[%s4 + $0x1f0] sm:$0xff]
  %v677 = vld [vmem:[%s4 + $0x1f8] sm:$0xff]
  %v678 = vld [vmem:[%s4 + $0x200] sm:$0xff]
  %v679 = vld [vmem:[%s4 + $0x208] sm:$0xff]
  %v680 = vld [vmem:[%s4 + $0x210] sm:$0xff]
  %v681 = vld [vmem:[%s4 + $0x218] sm:$0xff]
  %v682 = vld [vmem:[%s4 + $0x220] sm:$0xff]
  %v683 = vld [vmem:[%s4 + $0x228] sm:$0xff]
  %v684 = vld [vmem:[%s4 + $0x230] sm:$0xff]
  %v685 = vld [vmem:[%s4 + $0x238] sm:$0xff]
  %v686 = vld [vmem:[%s4 + $0x240] sm:$0xff]
  %v687 = vld [vmem:[%s4 + $0x248] sm:$0xff]
  %v688 = vld [vmem:[%s4 + $0x250] sm:$0xff]
  %v689 = vld [vmem:[%s4 + $0x258] sm:$0xff]
  %v690 = vld [vmem:[%s4 + $0x260] sm:$0xff]
  %v691 = vld [vmem:[%s4 + $0x268] sm:$0xff]
  %v692 = vld [vmem:[%s4 + $0x270] sm:$0xff]
  %v693 = vld [vmem:[%s4 + $0x278] sm:$0xff]
  %v694 = vld [vmem:[%s4 + $0x280] sm:$0xff]
  %v695 = vld [vmem:[%s4 + $0x288] sm:$0xff]
  %v696 = vld [vmem:[%s4 + $0x290] sm:$0xff]
  %v697 = vld [vmem:[%s4 + $0x298] sm:$0xff]
  %v698 = vld [vmem:[%s4 + $0x2a0] sm:$0xff]
  %v699 = vld [vmem:[%s4 + $0x2a8] sm:$0xff]
  %v700 = vld [vmem:[%s4 + $0x2b0] sm:$0xff]
  %v701 = vld [vmem:[%s4 + $0x2b8] sm:$0xff]
  %v702 = vld [vmem:[%s4 + $0x2c0] sm:$0xff]
  %v703 = vld [vmem:[%s4 + $0x2c8] sm:$0xff]
  %v704 = vld [vmem:[%s4 + $0x2d0] sm:$0xff]
  %v705 = vld [vmem:[%s4 + $0x2d8] sm:$0xff]
  %v706 = vld [vmem:[%s4 + $0x2e0] sm:$0xff]
  %v707 = vld [vmem:[%s4 + $0x2e8] sm:$0xff]
  %v708 = vld [vmem:[%s4 + $0x2f0] sm:$0xff]
  %v709 = vld [vmem:[%s4 + $0x2f8] sm:$0xff]
  %v710 = vld [vmem:[%s4 + $0x300] sm:$0xff]
  %v711 = vld [vmem:[%s4 + $0x308] sm:$0xff]
  %v712 = vld [vmem:[%s4 + $0x310] sm:$0xff]
  %v713 = vld [vmem:[%s4 + $0x318] sm:$0xff]
  %v714 = vld [vmem:[%s4 + $0x320] sm:$0xff]
  %v715 = vld [vmem:[%s4 + $0x328] sm:$0xff]
  %v716 = vld [vmem:[%s4 + $0x330] sm:$0xff]
  %v717 = vld [vmem:[%s4 + $0x338] sm:$0xff]
  %v718 = vld [vmem:[%s4 + $0x340] sm:$0xff]
  %v719 = vld [vmem:[%s4 + $0x348] sm:$0xff]
  %v720 = vld [vmem:[%s4 + $0x350] sm:$0xff]
  %v721 = vld [vmem:[%s4 + $0x358] sm:$0xff]
  %v722 = vld [vmem:[%s4 + $0x360] sm:$0xff]
  %v723 = vld [vmem:[%s4 + $0x368] sm:$0xff]
  %v724 = vld [vmem:[%s4 + $0x370] sm:$0xff]
  %v725 = vld [vmem:[%s4 + $0x378] sm:$0xff]
  %v726 = vld [vmem:[%s4 + $0x380] sm:$0xff]
  %v727 = vld [vmem:[%s4 + $0x388] sm:$0xff]
  %v728 = vld [vmem:[%s4 + $0x390] sm:$0xff]
  %v729 = vld [vmem:[%s4 + $0x398] sm:$0xff]
  %v730 = vld [vmem:[%s4 + $0x3a0] sm:$0xff]
  %v731 = vld [vmem:[%s4 + $0x3a8] sm:$0xff]
  %v732 = vld [vmem:[%s4 + $0x3b0] sm:$0xff]
  %v733 = vld [vmem:[%s4 + $0x3b8] sm:$0xff]
  %v734 = vld [vmem:[%s4 + $0x3c0] sm:$0xff]
  %v735 = vld [vmem:[%s4 + $0x3c8] sm:$0xff]
  %v736 = vld [vmem:[%s4 + $0x3d0] sm:$0xff]
  %v737 = vld [vmem:[%s4 + $0x3d8] sm:$0xff]
  %v738 = vld [vmem:[%s4 + $0x3e0] sm:$0xff]
  %v739 = vld [vmem:[%s4 + $0x3e8] sm:$0xff]
  %v740 = vld [vmem:[%s4 + $0x3f0] sm:$0xff]
  %v741 = vld [vmem:[%s4 + $0x3f8] sm:$0xff]
  %v742 = vld [vmem:[%s4 + $0x400] sm:$0xff]
  %v743 = vld [vmem:[%s4 + $0x408] sm:$0xff]
  %v744 = vld [vmem:[%s4 + $0x410] sm:$0xff]
  %v745 = vld [vmem:[%s4 + $0x418] sm:$0xff]
  %v746 = vld [vmem:[%s4 + $0x420] sm:$0xff]
  %v747 = vld [vmem:[%s4 + $0x428] sm:$0xff]
  %v748 = vld [vmem:[%s4 + $0x430] sm:$0xff]
  %v749 = vld [vmem:[%s4 + $0x438] sm:$0xff]
  %v750 = vld [vmem:[%s4 + $0x440] sm:$0xff]
  %v751 = vld [vmem:[%s4 + $0x448] sm:$0xff]
  %v752 = vld [vmem:[%s4 + $0x450] sm:$0xff]
  %v753 = vld [vmem:[%s4 + $0x458] sm:$0xff]
  %v754 = vld [vmem:[%s4 + $0x460] sm:$0xff]
  %v755 = vld [vmem:[%s4 + $0x468] sm:$0xff]
  %v756 = vld [vmem:[%s4 + $0x470] sm:$0xff]
  %v757 = vld [vmem:[%s4 + $0x478] sm:$0xff]
  %v758 = vld [vmem:[%s4 + $0x480] sm:$0xff]
  %v759 = vld [vmem:[%s4 + $0x488] sm:$0xff]
  %v760 = vld [vmem:[%s4 + $0x490] sm:$0xff]
  %v761 = vld [vmem:[%s4 + $0x498] sm:$0xff]
  %v762 = vld [vmem:[%s4 + $0x4a0] sm:$0xff]
  %v763 = vld [vmem:[%s4 + $0x4a8] sm:$0xff]
  %v764 = vld [vmem:[%s4 + $0x4b0] sm:$0xff]
  %v765 = vld [vmem:[%s4 + $0x4b8] sm:$0xff]
  %v766 = vld [vmem:[%s4 + $0x4c0] sm:$0xff]
  %v767 = vld [vmem:[%s4 + $0x4c8] sm:$0xff]
  %v768 = vld [vmem:[%s4 + $0x4d0] sm:$0xff]
  %v769 = vld [vmem:[%s4 + $0x4d8] sm:$0xff]
  %v770 = vld [vmem:[%s4 + $0x4e0] sm:$0xff]
  %v771 = vld [vmem:[%s4 + $0x4e8] sm:$0xff]
  %v772 = vld [vmem:[%s4 + $0x4f0] sm:$0xff]
  %v773 = vld [vmem:[%s4 + $0x4f8] sm:$0xff]
  %v774 = vld [vmem:[%s4 + $0x500] sm:$0xff]
  %v775 = vld [vmem:[%s4 + $0x508] sm:$0xff]
  %v776 = vld [vmem:[%s4 + $0x510] sm:$0xff]
  %v777 = vld [vmem:[%s4 + $0x518] sm:$0xff]
  %v778 = vld [vmem:[%s4 + $0x520] sm:$0xff]
  %v779 = vld [vmem:[%s4 + $0x528] sm:$0xff]
  %v780 = vld [vmem:[%s4 + $0x530] sm:$0xff]
  %v781 = vld [vmem:[%s4 + $0x538] sm:$0xff]
  %v782 = vld [vmem:[%s4 + $0x540] sm:$0xff]
  %v783 = vld [vmem:[%s4 + $0x548] sm:$0xff]
  %v784 = vld [vmem:[%s4 + $0x550] sm:$0xff]
  %v785 = vld [vmem:[%s4 + $0x558] sm:$0xff]
  %v786 = vld [vmem:[%s4 + $0x560] sm:$0xff]
  %v787 = vld [vmem:[%s4 + $0x568] sm:$0xff]
  %v788 = vld [vmem:[%s4 + $0x570] sm:$0xff]
  %v789 = vld [vmem:[%s4 + $0x578] sm:$0xff]
  %v790 = vld [vmem:[%s4 + $0x580] sm:$0xff]
  %v791 = vld [vmem:[%s4 + $0x588] sm:$0xff]
  %v792 = vld [vmem:[%s4 + $0x590] sm:$0xff]
  %v793 = vld [vmem:[%s4 + $0x598] sm:$0xff]
  %v794 = vld [vmem:[%s4 + $0x5a0] sm:$0xff]
  %v795 = vld [vmem:[%s4 + $0x5a8] sm:$0xff]
  %v796 = vld [vmem:[%s4 + $0x5b0] sm:$0xff]
  %v797 = vld [vmem:[%s4 + $0x5b8] sm:$0xff]
  %v798 = vld [vmem:[%s4 + $0x5c0] sm:$0xff]
  %v799 = vld [vmem:[%s4 + $0x5c8] sm:$0xff]
  %v800 = vld [vmem:[%s4 + $0x5d0] sm:$0xff]
  %v801 = vld [vmem:[%s4 + $0x5d8] sm:$0xff]
  %v802 = vld [vmem:[%s4 + $0x5e0] sm:$0xff]
  %v803 = vld [vmem:[%s4 + $0x5e8] sm:$0xff]
  %v804 = vld [vmem:[%s4 + $0x5f0] sm:$0xff]
  %v805 = vld [vmem:[%s4 + $0x5f8] sm:$0xff]
  %v806 = vld [vmem:[%s4 + $0x600] sm:$0xff]
  %v807 = vld [vmem:[%s4 + $0x608] sm:$0xff]
  %v808 = vld [vmem:[%s4 + $0x610] sm:$0xff]
  %v809 = vld [vmem:[%s4 + $0x618] sm:$0xff]
  %v810 = vld [vmem:[%s4 + $0x620] sm:$0xff]
  %v811 = vld [vmem:[%s4 + $0x628] sm:$0xff]
  %v812 = vld [vmem:[%s4 + $0x630] sm:$0xff]
  %v813 = vld [vmem:[%s4 + $0x638] sm:$0xff]
  %v814 = vld [vmem:[%s4 + $0x640] sm:$0xff]
  %v815 = vld [vmem:[%s4 + $0x648] sm:$0xff]
  %v816 = vld [vmem:[%s4 + $0x650] sm:$0xff]
  %v817 = vld [vmem:[%s4 + $0x658] sm:$0xff]
  %v818 = vld [vmem:[%s4 + $0x660] sm:$0xff]
  %v819 = vld [vmem:[%s4 + $0x668] sm:$0xff]
  %v820 = vld [vmem:[%s4 + $0x670] sm:$0xff]
  %v821 = vld [vmem:[%s4 + $0x678] sm:$0xff]
  %v822 = vld [vmem:[%s4 + $0x680] sm:$0xff]
  %v823 = vld [vmem:[%s4 + $0x688] sm:$0xff]
  %v824 = vld [vmem:[%s4 + $0x690] sm:$0xff]
  %v825 = vld [vmem:[%s4 + $0x698] sm:$0xff]
  %v826 = vld [vmem:[%s4 + $0x6a0] sm:$0xff]
  %v827 = vld [vmem:[%s4 + $0x6a8] sm:$0xff]
  %v828 = vld [vmem:[%s4 + $0x6b0] sm:$0xff]
  %v829 = vld [vmem:[%s4 + $0x6b8] sm:$0xff]
  %v830 = vld [vmem:[%s4 + $0x6c0] sm:$0xff]
  %v831 = vld [vmem:[%s4 + $0x6c8] sm:$0xff]
  %v832 = vld [vmem:[%s4 + $0x6d0] sm:$0xff]
  %v833 = vld [vmem:[%s4 + $0x6d8] sm:$0xff]
  %v834 = vld [vmem:[%s4 + $0x6e0] sm:$0xff]
  %v835 = vld [vmem:[%s4 + $0x6e8] sm:$0xff]
  %v836 = vld [vmem:[%s4 + $0x6f0] sm:$0xff]
  %v837 = vld [vmem:[%s4 + $0x6f8] sm:$0xff]
  %v838 = vld [vmem:[%s4 + $0x700] sm:$0xff]
  %v839 = vld [vmem:[%s4 + $0x708] sm:$0xff]
  %v840 = vld [vmem:[%s4 + $0x710] sm:$0xff]
  %v841 = vld [vmem:[%s4 + $0x718] sm:$0xff]
  %v842 = vld [vmem:[%s4 + $0x720] sm:$0xff]
  %v843 = vld [vmem:[%s4 + $0x728] sm:$0xff]
  %v844 = vld [vmem:[%s4 + $0x730] sm:$0xff]
  %v845 = vld [vmem:[%s4 + $0x738] sm:$0xff]
  %v846 = vld [vmem:[%s4 + $0x740] sm:$0xff]
  %v847 = vld [vmem:[%s4 + $0x748] sm:$0xff]
  %v848 = vld [vmem:[%s4 + $0x750] sm:$0xff]
  %v849 = vld [vmem:[%s4 + $0x758] sm:$0xff]
  %v850 = vld [vmem:[%s4 + $0x760] sm:$0xff]
  %v851 = vld [vmem:[%s4 + $0x768] sm:$0xff]
  %v852 = vld [vmem:[%s4 + $0x770] sm:$0xff]
  %v853 = vld [vmem:[%s4 + $0x778] sm:$0xff]
  %v854 = vld [vmem:[%s4 + $0x780] sm:$0xff]
  %v855 = vld [vmem:[%s4 + $0x788] sm:$0xff]
  %v856 = vld [vmem:[%s4 + $0x790] sm:$0xff]
  %v857 = vld [vmem:[%s4 + $0x798] sm:$0xff]
  %v858 = vld [vmem:[%s4 + $0x7a0] sm:$0xff]
  %v859 = vld [vmem:[%s4 + $0x7a8] sm:$0xff]
  %v860 = vld [vmem:[%s4 + $0x7b0] sm:$0xff]
  %v861 = vld [vmem:[%s4 + $0x7b8] sm:$0xff]
  %v862 = vld [vmem:[%s4 + $0x7c0] sm:$0xff]
  %v863 = vld [vmem:[%s4 + $0x7c8] sm:$0xff]
  %v864 = vld [vmem:[%s4 + $0x7d0] sm:$0xff]
  %v865 = vld [vmem:[%s4 + $0x7d8] sm:$0xff]
  %v866 = vld [vmem:[%s4 + $0x7e0] sm:$0xff]
  %v867 = vld [vmem:[%s4 + $0x7e8] sm:$0xff]
  %v868 = vld [vmem:[%s4 + $0x7f0] sm:$0xff]
  %v869 = vld [vmem:[%s4 + $0x7f8] sm:$0xff]
  %v870 = vld [vmem:[%s4 + $0x800] sm:$0xff]
  %v871 = vld [vmem:[%s4 + $0x808] sm:$0xff]
  %v872 = vld [vmem:[%s4 + $0x810] sm:$0xff]
  %v873 = vld [vmem:[%s4 + $0x818] sm:$0xff]
  %v874 = vld [vmem:[%s4 + $0x820] sm:$0xff]
  %v875 = vld [vmem:[%s4 + $0x828] sm:$0xff]
  %v876 = vld [vmem:[%s4 + $0x830] sm:$0xff]
  %v877 = vld [vmem:[%s4 + $0x838] sm:$0xff]
  %v878 = vld [vmem:[%s4 + $0x840] sm:$0xff]
  %v879 = vld [vmem:[%s4 + $0x848] sm:$0xff]
  %v880 = vld [vmem:[%s4 + $0x850] sm:$0xff]
  %v881 = vld [vmem:[%s4 + $0x858] sm:$0xff]
  %v882 = vld [vmem:[%s4 + $0x860] sm:$0xff]
  %v883 = vld [vmem:[%s4 + $0x868] sm:$0xff]
  %v884 = vld [vmem:[%s4 + $0x870] sm:$0xff]
  %v885 = vld [vmem:[%s4 + $0x878] sm:$0xff]
  %v886 = vld [vmem:[%s4 + $0x880] sm:$0xff]
  %v887 = vld [vmem:[%s4 + $0x888] sm:$0xff]
  %v888 = vld [vmem:[%s4 + $0x890] sm:$0xff]
  %v889 = vld [vmem:[%s4 + $0x898] sm:$0xff]
  %v890 = vld [vmem:[%s4 + $0x8a0] sm:$0xff]
  %v891 = vld [vmem:[%s4 + $0x8a8] sm:$0xff]
  %v892 = vld [vmem:[%s4 + $0x8b0] sm:$0xff]
  %v893 = vld [vmem:[%s4 + $0x8b8] sm:$0xff]
  %v894 = vld [vmem:[%s4 + $0x8c0] sm:$0xff]
  %v895 = vld [vmem:[%s4 + $0x8c8] sm:$0xff]
  %v896 = vld [vmem:[%s4 + $0x8d0] sm:$0xff]
  %v897 = vld [vmem:[%s4 + $0x8d8] sm:$0xff]
  %v898 = vld [vmem:[%s4 + $0x8e0] sm:$0xff]
  %v899 = vld [vmem:[%s4 + $0x8e8] sm:$0xff]
  %v900 = vld [vmem:[%s4 + $0x8f0] sm:$0xff]
  %v901 = vld [vmem:[%s4 + $0x8f8] sm:$0xff]
  %v902 = vld [vmem:[%s4 + $0x900] sm:$0xff]
  %v903 = vld [vmem:[%s4 + $0x908] sm:$0xff]
  %v904 = vld [vmem:[%s4 + $0x910] sm:$0xff]
  %v905 = vld [vmem:[%s4 + $0x918] sm:$0xff]
  %v906 = vld [vmem:[%s4 + $0x920] sm:$0xff]
  %v907 = vld [vmem:[%s4 + $0x928] sm:$0xff]
  %v908 = vld [vmem:[%s4 + $0x930] sm:$0xff]
  %v909 = vld [vmem:[%s4 + $0x938] sm:$0xff]
  %v910 = vld [vmem:[%s4 + $0x940] sm:$0xff]
  %v911 = vld [vmem:[%s4 + $0x948] sm:$0xff]
  %v912 = vld [vmem:[%s4 + $0x950] sm:$0xff]
  %v913 = vld [vmem:[%s4 + $0x958] sm:$0xff]
  %v914 = vld [vmem:[%s4 + $0x960] sm:$0xff]
  %v915 = vld [vmem:[%s4 + $0x968] sm:$0xff]
  %v916 = vld [vmem:[%s4 + $0x970] sm:$0xff]
  %v917 = vld [vmem:[%s4 + $0x978] sm:$0xff]
  %v918 = vld [vmem:[%s4 + $0x980] sm:$0xff]
  %v919 = vld [vmem:[%s4 + $0x988] sm:$0xff]
  %v920 = vld [vmem:[%s4 + $0x990] sm:$0xff]
  %v921 = vld [vmem:[%s4 + $0x998] sm:$0xff]
  %v922 = vld [vmem:[%s4 + $0x9a0] sm:$0xff]
  %v923 = vld [vmem:[%s4 + $0x9a8] sm:$0xff]
  %v924 = vld [vmem:[%s4 + $0x9b0] sm:$0xff]
  %v925 = vld [vmem:[%s4 + $0x9b8] sm:$0xff]
  %v926 = vld [vmem:[%s4 + $0x9c0] sm:$0xff]
  %v927 = vld [vmem:[%s4 + $0x9c8] sm:$0xff]
  %v928 = vld [vmem:[%s4 + $0x9d0] sm:$0xff]
  %v929 = vld [vmem:[%s4 + $0x9d8] sm:$0xff]
  %v930 = vld [vmem:[%s4 + $0x9e0] sm:$0xff]
  %v931 = vld [vmem:[%s4 + $0x9e8] sm:$0xff]
  %v932 = vld [vmem:[%s4 + $0x9f0] sm:$0xff]
  %v933 = vld [vmem:[%s4 + $0x9f8] sm:$0xff]
  %v934 = vld [vmem:[%s4 + $0xa00] sm:$0xff]
  %v935 = vld [vmem:[%s4 + $0xa08] sm:$0xff]
  %v936 = vld [vmem:[%s4 + $0xa10] sm:$0xff]
  %v937 = vld [vmem:[%s4 + $0xa18] sm:$0xff]
  %v938 = vld [vmem:[%s4 + $0xa20] sm:$0xff]
  %v939 = vld [vmem:[%s4 + $0xa28] sm:$0xff]
  %v940 = vld [vmem:[%s4 + $0xa30] sm:$0xff]
  %v941 = vld [vmem:[%s4 + $0xa38] sm:$0xff]
  %v942 = vld [vmem:[%s4 + $0xa40] sm:$0xff]
  %v943 = vld [vmem:[%s4 + $0xa48] sm:$0xff]
  %v944 = vld [vmem:[%s4 + $0xa50] sm:$0xff]
  %v945 = vld [vmem:[%s4 + $0xa58] sm:$0xff]
  %v946 = vld [vmem:[%s4 + $0xa60] sm:$0xff]
  %v947 = vld [vmem:[%s4 + $0xa68] sm:$0xff]
  %v948 = vld [vmem:[%s4 + $0xa70] sm:$0xff]
  %v949 = vld [vmem:[%s4 + $0xa78] sm:$0xff]
  %v950 = vld [vmem:[%s4 + $0xa80] sm:$0xff]
  %v951 = vld [vmem:[%s4 + $0xa88] sm:$0xff]
  %v952 = vld [vmem:[%s4 + $0xa90] sm:$0xff]
  %v953 = vld [vmem:[%s4 + $0xa98] sm:$0xff]
  %v954 = vld [vmem:[%s4 + $0xaa0] sm:$0xff]
  %v955 = vld [vmem:[%s4 + $0xaa8] sm:$0xff]
  %v956 = vld [vmem:[%s4 + $0xab0] sm:$0xff]
  %v957 = vld [vmem:[%s4 + $0xab8] sm:$0xff]
  %v958 = vld [vmem:[%s4 + $0xac0] sm:$0xff]
  %v959 = vld [vmem:[%s4 + $0xac8] sm:$0xff]
  %v960 = vld [vmem:[%s4 + $0xad0] sm:$0xff]
  %v961 = vld [vmem:[%s4 + $0xad8] sm:$0xff]
  %v962 = vld [vmem:[%s4 + $0xae0] sm:$0xff]
  %v963 = vld [vmem:[%s4 + $0xae8] sm:$0xff]
  %v964 = vld [vmem:[%s4 + $0xaf0] sm:$0xff]
  %v965 = vld [vmem:[%s4 + $0xaf8] sm:$0xff]
  %v966 = vld [vmem:[%s4 + $0xb00] sm:$0xff]
  %v967 = vld [vmem:[%s4 + $0xb08] sm:$0xff]
  %v968 = vld [vmem:[%s4 + $0xb10] sm:$0xff]
  %v969 = vld [vmem:[%s4 + $0xb18] sm:$0xff]
  %v970 = vld [vmem:[%s4 + $0xb20] sm:$0xff]
  %v971 = vld [vmem:[%s4 + $0xb28] sm:$0xff]
  %v972 = vld [vmem:[%s4 + $0xb30] sm:$0xff]
  %v973 = vld [vmem:[%s4 + $0xb38] sm:$0xff]
  %v974 = vld [vmem:[%s4 + $0xb40] sm:$0xff]
  %v975 = vld [vmem:[%s4 + $0xb48] sm:$0xff]
  %v976 = vld [vmem:[%s4 + $0xb50] sm:$0xff]
  %v977 = vld [vmem:[%s4 + $0xb58] sm:$0xff]
  %v978 = vld [vmem:[%s4 + $0xb60] sm:$0xff]
  %v979 = vld [vmem:[%s4 + $0xb68] sm:$0xff]
  %v980 = vld [vmem:[%s4 + $0xb70] sm:$0xff]
  %v981 = vld [vmem:[%s4 + $0xb78] sm:$0xff]
  %v982 = vld [vmem:[%s4 + $0xb80] sm:$0xff]
  %v983 = vld [vmem:[%s4 + $0xb88] sm:$0xff]
  %v984 = vld [vmem:[%s4 + $0xb90] sm:$0xff]
  %v985 = vld [vmem:[%s4 + $0xb98] sm:$0xff]
  %v986 = vld [vmem:[%s4 + $0xba0] sm:$0xff]
  %v987 = vld [vmem:[%s4 + $0xba8] sm:$0xff]
  %v988 = vld [vmem:[%s4 + $0xbb0] sm:$0xff]
  %v989 = vld [vmem:[%s4 + $0xbb8] sm:$0xff]
  %v990 = vld [vmem:[%s4 + $0xbc0] sm:$0xff]
  %v991 = vld [vmem:[%s4 + $0xbc8] sm:$0xff]
  %v992 = vld [vmem:[%s4 + $0xbd0] sm:$0xff]
  %v993 = vld [vmem:[%s4 + $0xbd8] sm:$0xff]
  %v994 = vld [vmem:[%s4 + $0xbe0] sm:$0xff]
  %v995 = vld [vmem:[%s4 + $0xbe8] sm:$0xff]
  %v996 = vld [vmem:[%s4 + $0xbf0] sm:$0xff]
  %v997 = vld [vmem:[%s4 + $0xbf8] sm:$0xff]
  %v998 = vld [vmem:[%s4 + $0xc00] sm:$0xff]
  %v999 = vld [vmem:[%s4 + $0xc08] sm:$0xff]
  %v1000 = vld [vmem:[%s4 + $0xc10] sm:$0xff]
  %v1001 = vld [vmem:[%s4 + $0xc18] sm:$0xff]
  %v1002 = vld [vmem:[%s4 + $0xc20] sm:$0xff]
  %v1003 = vld [vmem:[%s4 + $0xc28] sm:$0xff]
  %v1004 = vld [vmem:[%s4 + $0xc30] sm:$0xff]
  %v1005 = vld [vmem:[%s4 + $0xc38] sm:$0xff]
  %v1006 = vld [vmem:[%s4 + $0xc40] sm:$0xff]
  %v1007 = vld [vmem:[%s4 + $0xc48] sm:$0xff]
  %v1008 = vld [vmem:[%s4 + $0xc50] sm:$0xff]
  %v1009 = vld [vmem:[%s4 + $0xc58] sm:$0xff]
  %v1010 = vld [vmem:[%s4 + $0xc60] sm:$0xff]
  %v1011 = vld [vmem:[%s4 + $0xc68] sm:$0xff]
  %v1012 = vld [vmem:[%s4 + $0xc70] sm:$0xff]
  %v1013 = vld [vmem:[%s4 + $0xc78] sm:$0xff]
  %v1014 = vld [vmem:[%s4 + $0xc80] sm:$0xff]
  %v1015 = vld [vmem:[%s4 + $0xc88] sm:$0xff]
  %v1016 = vld [vmem:[%s4 + $0xc90] sm:$0xff]
  %v1017 = vld [vmem:[%s4 + $0xc98] sm:$0xff]
  %v1018 = vld [vmem:[%s4 + $0xca0] sm:$0xff]
  %v1019 = vld [vmem:[%s4 + $0xca8] sm:$0xff]
  %v1020 = vld [vmem:[%s4 + $0xcb0] sm:$0xff]
  %v1021 = vld [vmem:[%s4 + $0xcb8] sm:$0xff]
  %v1022 = vld [vmem:[%s4 + $0xcc0] sm:$0xff]
  %v1023 = vld [vmem:[%s4 + $0xcc8] sm:$0xff]
  %v1024 = vld [vmem:[%s4 + $0xcd0] sm:$0xff]
  %v1025 = vld [vmem:[%s4 + $0xcd8] sm:$0xff]
  %v1026 = vld [vmem:[%s4 + $0xce0] sm:$0xff]
  %v1027 = vld [vmem:[%s4 + $0xce8] sm:$0xff]
  %v1028 = vld [vmem:[%s4 + $0xcf0] sm:$0xff]
  %v1029 = vld [vmem:[%s4 + $0xcf8] sm:$0xff]
  %v1030 = vld [vmem:[%s4 + $0xd00] sm:$0xff]
  %v1031 = vld [vmem:[%s4 + $0xd08] sm:$0xff]
  %v1032 = vld [vmem:[%s4 + $0xd10] sm:$0xff]
  %v1033 = vld [vmem:[%s4 + $0xd18] sm:$0xff]
  %v1034 = vld [vmem:[%s4 + $0xd20] sm:$0xff]
  %v1035 = vld [vmem:[%s4 + $0xd28] sm:$0xff]
  %v1036 = vld [vmem:[%s4 + $0xd30] sm:$0xff]
  %v1037 = vld [vmem:[%s4 + $0xd38] sm:$0xff]
  %v1038 = vld [vmem:[%s4 + $0xd40] sm:$0xff]
  %v1039 = vld [vmem:[%s4 + $0xd48] sm:$0xff]
  %v1040 = vld [vmem:[%s4 + $0xd50] sm:$0xff]
  %v1041 = vld [vmem:[%s4 + $0xd58] sm:$0xff]
  %v1042 = vld [vmem:[%s4 + $0xd60] sm:$0xff]
  %v1043 = vld [vmem:[%s4 + $0xd68] sm:$0xff]
  %v1044 = vld [vmem:[%s4 + $0xd70] sm:$0xff]
  %v1045 = vld [vmem:[%s4 + $0xd78] sm:$0xff]
  %v1046 = vld [vmem:[%s4 + $0xd80] sm:$0xff]
  %v1047 = vld [vmem:[%s4 + $0xd88] sm:$0xff]
  %v1048 = vld [vmem:[%s4 + $0xd90] sm:$0xff]
  %v1049 = vld [vmem:[%s4 + $0xd98] sm:$0xff]
  %v1050 = vld [vmem:[%s4 + $0xda0] sm:$0xff]
  %v1051 = vld [vmem:[%s4 + $0xda8] sm:$0xff]
  %v1052 = vld [vmem:[%s4 + $0xdb0] sm:$0xff]
  %v1053 = vld [vmem:[%s4 + $0xdb8] sm:$0xff]
  %v1054 = vld [vmem:[%s4 + $0xdc0] sm:$0xff]
  %v1055 = vld [vmem:[%s4 + $0xdc8] sm:$0xff]
  %v1056 = vld [vmem:[%s4 + $0xdd0] sm:$0xff]
  %v1057 = vld [vmem:[%s4 + $0xdd8] sm:$0xff]
  %v1058 = vld [vmem:[%s4 + $0xde0] sm:$0xff]
  %v1059 = vld [vmem:[%s4 + $0xde8] sm:$0xff]
  %v1060 = vld [vmem:[%s4 + $0xdf0] sm:$0xff]
  %v1061 = vld [vmem:[%s4 + $0xdf8] sm:$0xff]
  %v1062 = vld [vmem:[%s4 + $0xe00] sm:$0xff]
  %v1063 = vld [vmem:[%s4 + $0xe08] sm:$0xff]
  %v1064 = vld [vmem:[%s4 + $0xe10] sm:$0xff]
  %v1065 = vld [vmem:[%s4 + $0xe18] sm:$0xff]
  %v1066 = vld [vmem:[%s4 + $0xe20] sm:$0xff]
  %v1067 = vld [vmem:[%s4 + $0xe28] sm:$0xff]
  %v1068 = vld [vmem:[%s4 + $0xe30] sm:$0xff]
  %v1069 = vld [vmem:[%s4 + $0xe38] sm:$0xff]
  %v1070 = vld [vmem:[%s4 + $0xe40] sm:$0xff]
  %v1071 = vld [vmem:[%s4 + $0xe48] sm:$0xff]
  %v1072 = vld [vmem:[%s4 + $0xe50] sm:$0xff]
  %v1073 = vld [vmem:[%s4 + $0xe58] sm:$0xff]
  %v1074 = vld [vmem:[%s4 + $0xe60] sm:$0xff]
  %v1075 = vld [vmem:[%s4 + $0xe68] sm:$0xff]
  %v1076 = vld [vmem:[%s4 + $0xe70] sm:$0xff]
  %v1077 = vld [vmem:[%s4 + $0xe78] sm:$0xff]
  %v1078 = vld [vmem:[%s4 + $0xe80] sm:$0xff]
  %v1079 = vld [vmem:[%s4 + $0xe88] sm:$0xff]
  %v1080 = vld [vmem:[%s4 + $0xe90] sm:$0xff]
  %v1081 = vld [vmem:[%s4 + $0xe98] sm:$0xff]
  %v1082 = vld [vmem:[%s4 + $0xea0] sm:$0xff]
  %v1083 = vld [vmem:[%s4 + $0xea8] sm:$0xff]
  %v1084 = vld [vmem:[%s4 + $0xeb0] sm:$0xff]
  %v1085 = vld [vmem:[%s4 + $0xeb8] sm:$0xff]
  %v1086 = vld [vmem:[%s4 + $0xec0] sm:$0xff]
  %v1087 = vld [vmem:[%s4 + $0xec8] sm:$0xff]
  %v1088 = vld [vmem:[%s4 + $0xed0] sm:$0xff]
  %v1089 = vld [vmem:[%s4 + $0xed8] sm:$0xff]
  %v1090 = vld [vmem:[%s4 + $0xee0] sm:$0xff]
  %v1091 = vld [vmem:[%s4 + $0xee8] sm:$0xff]
  %v1092 = vld [vmem:[%s4 + $0xef0] sm:$0xff]
  %v1093 = vld [vmem:[%s4 + $0xef8] sm:$0xff]
  %v1094 = vld [vmem:[%s4 + $0xf00] sm:$0xff]
  %v1095 = vld [vmem:[%s4 + $0xf08] sm:$0xff]
  %v1096 = vld [vmem:[%s4 + $0xf10] sm:$0xff]
  %v1097 = vld [vmem:[%s4 + $0xf18] sm:$0xff]
  %v1098 = vld [vmem:[%s4 + $0xf20] sm:$0xff]
  %v1099 = vld [vmem:[%s4 + $0xf28] sm:$0xff]
  %v1100 = vld [vmem:[%s4 + $0xf30] sm:$0xff]
  %v1101 = vld [vmem:[%s4 + $0xf38] sm:$0xff]
  %v1102 = vld [vmem:[%s4 + $0xf40] sm:$0xf]
  %v1103 = vld [vmem:[%s4 + $0xf48] sm:$0xf]
  %v1104 = vld [vmem:[%s4 + $0xf50] sm:$0xf]
  %v1105 = vld [vmem:[%s4 + $0xf58] sm:$0xf]
  %v1106 = vld [vmem:[%s5] sm:$0xf]
  %v1108 = vlaneseq
  %v1109 = vshrl.u32 %v1108, 7
  %v1110 = vsub.s32 0, %v1109
  %v1111 = vrot.slane %v1106, %v1110
  %v1112 = vlaneseq
  %v1113 = vshrl.u32 %v1112, 7
  %v1114 = vsub.s32 1, %v1113
  %v1115 = vrot.slane %v1106, %v1114
  %v1116 = vlaneseq
  %v1117 = vshrl.u32 %v1116, 7
  %v1118 = vsub.s32 2, %v1117
  %v1119 = vrot.slane %v1106, %v1118
  %v1120 = vlaneseq
  %v1121 = vshrl.u32 %v1120, 7
  %v1122 = vsub.s32 3, %v1121
  %v1123 = vrot.slane %v1106, %v1122
  %vm1128 = vcmask 687104
  %v1130 = vsel %vm1128, %v613, 0
  %v1133 = vsel %vm297, %v1102, 0
  %v1136 = vsel %vm297, %v1103, 0
  %v1139 = vsel %vm297, %v1104, 0
  %v1142 = vsel %vm297, %v1105, 0
  %1144 = vmatprep.subr.mxu0 %v675
  %1145 = vmatpush1.msra.mxu0 %v674
  %1146 = vmatprep.subr.mxu0 %v671
  %1147 = vmatpush1.msra.mxu0 %v670
  %1148 = vmatprep.subr.mxu0 %v667
  %1149 = vmatpush1.msra.mxu0 %v666
  %1150 = vmatprep.subr.mxu0 %v663
  %1151 = vmatpush1.msra.mxu0 %v662
  %1152 = vmatprep.subr.mxu0 %v659
  %1153 = vmatpush1.msra.mxu0 %v658
  %1154 = vmatprep.subr.mxu0 %v655
  %1155 = vmatpush1.msra.mxu0 %v654
  %1156 = vmatprep.subr.mxu0 %v651
  %1157 = vmatpush1.msra.mxu0 %v650
  %1158 = vmatprep.subr.mxu0 %v647
  %1159 = vmatpush1.msra.mxu0 %v646
  %1160 = vmatprep.subr.mxu0 %v643
  %1161 = vmatpush1.msra.mxu0 %v642
  %1162 = vmatprep.subr.mxu0 %v639
  %1163 = vmatpush1.msra.mxu0 %v638
  %1164 = vmatprep.subr.mxu0 %v635
  %1165 = vmatpush1.msra.mxu0 %v634
  %1166 = vmatprep.subr.mxu0 %v631
  %1167 = vmatpush1.msra.mxu0 %v630
  %1168 = vmatprep.subr.mxu0 %v627
  %1169 = vmatpush1.msra.mxu0 %v626
  %1170 = vmatprep.subr.mxu0 %v623
  %1171 = vmatpush1.msra.mxu0 %v622
  %1172 = vmatprep.subr.mxu0 %v619
  %1173 = vmatpush1.msra.mxu0 %v618
  %1174 = vmatprep.subr.mxu0 %v615
  %1175 = vmatpush1.msra.mxu0 %v614
  %1176 = vmatprep.subr.mxu0 %v739
  %1177 = vmatpush2.msra.mxu0 %v738
  %1178 = vmatprep.subr.mxu0 %v735
  %1179 = vmatpush2.msra.mxu0 %v734
  %1180 = vmatprep.subr.mxu0 %v731
  %1181 = vmatpush2.msra.mxu0 %v730
  %1182 = vmatprep.subr.mxu0 %v727
  %1183 = vmatpush2.msra.mxu0 %v726
  %1184 = vmatprep.subr.mxu0 %v723
  %1185 = vmatpush2.msra.mxu0 %v722
  %1186 = vmatprep.subr.mxu0 %v719
  %1187 = vmatpush2.msra.mxu0 %v718
  %1188 = vmatprep.subr.mxu0 %v715
  %1189 = vmatpush2.msra.mxu0 %v714
  %1190 = vmatprep.subr.mxu0 %v711
  %1191 = vmatpush2.msra.mxu0 %v710
  %1192 = vmatprep.subr.mxu0 %v707
  %1193 = vmatpush2.msra.mxu0 %v706
  %1194 = vmatprep.subr.mxu0 %v703
  %1195 = vmatpush2.msra.mxu0 %v702
  %1196 = vmatprep.subr.mxu0 %v699
  %1197 = vmatpush2.msra.mxu0 %v698
  %1198 = vmatprep.subr.mxu0 %v695
  %1199 = vmatpush2.msra.mxu0 %v694
  %1200 = vmatprep.subr.mxu0 %v691
  %1201 = vmatpush2.msra.mxu0 %v690
  %1202 = vmatprep.subr.mxu0 %v687
  %1203 = vmatpush2.msra.mxu0 %v686
  %1204 = vmatprep.subr.mxu0 %v683
  %1205 = vmatpush2.msra.mxu0 %v682
  %1206 = vmatprep.subr.mxu0 %v679
  %1207 = vmatpush2.msra.mxu0 %v678
  %1208 = vmatprep.mubr.f32.mxu0 %v607
  %1209 = vmatmul.mubr.f32.gmra.mxu0 %v606
  %v1210 = vpop.f32.mrf.mxu0
  %v1211 = vadd.f32 %v1111, %v1210
  %v1212 = vpop.f32.mrf.mxu0
  %v1213 = vadd.f32 %v1115, %v1212
  %1214 = vdwg.mxu0
  %1215 = vmatprep.subr.mxu0 %v803
  %1216 = vmatpush1.msra.mxu0 %v802
  %1217 = vmatprep.subr.mxu0 %v799
  %1218 = vmatpush1.msra.mxu0 %v798
  %1219 = vmatprep.subr.mxu0 %v795
  %1220 = vmatpush1.msra.mxu0 %v794
  %1221 = vmatprep.subr.mxu0 %v791
  %1222 = vmatpush1.msra.mxu0 %v790
  %1223 = vmatprep.subr.mxu0 %v787
  %1224 = vmatpush1.msra.mxu0 %v786
  %1225 = vmatprep.subr.mxu0 %v783
  %1226 = vmatpush1.msra.mxu0 %v782
  %1227 = vmatprep.subr.mxu0 %v779
  %1228 = vmatpush1.msra.mxu0 %v778
  %1229 = vmatprep.subr.mxu0 %v775
  %1230 = vmatpush1.msra.mxu0 %v774
  %1231 = vmatprep.subr.mxu0 %v771
  %1232 = vmatpush1.msra.mxu0 %v770
  %1233 = vmatprep.subr.mxu0 %v767
  %1234 = vmatpush1.msra.mxu0 %v766
  %1235 = vmatprep.subr.mxu0 %v763
  %1236 = vmatpush1.msra.mxu0 %v762
  %1237 = vmatprep.subr.mxu0 %v759
  %1238 = vmatpush1.msra.mxu0 %v758
  %1239 = vmatprep.subr.mxu0 %v755
  %1240 = vmatpush1.msra.mxu0 %v754
  %1241 = vmatprep.subr.mxu0 %v751
  %1242 = vmatpush1.msra.mxu0 %v750
  %1243 = vmatprep.subr.mxu0 %v747
  %1244 = vmatpush1.msra.mxu0 %v746
  %1245 = vmatprep.subr.mxu0 %v743
  %1246 = vmatpush1.msra.mxu0 %v742
  %1247 = vmatprep.subr.mxu0 %v867
  %1248 = vmatpush2.msra.mxu0 %v866
  %1249 = vmatprep.subr.mxu0 %v863
  %1250 = vmatpush2.msra.mxu0 %v862
  %1251 = vmatprep.subr.mxu0 %v859
  %1252 = vmatpush2.msra.mxu0 %v858
  %1253 = vmatprep.subr.mxu0 %v855
  %1254 = vmatpush2.msra.mxu0 %v854
  %1255 = vmatprep.subr.mxu0 %v851
  %1256 = vmatpush2.msra.mxu0 %v850
  %1257 = vmatprep.subr.mxu0 %v847
  %1258 = vmatpush2.msra.mxu0 %v846
  %1259 = vmatprep.subr.mxu0 %v843
  %1260 = vmatpush2.msra.mxu0 %v842
  %1261 = vmatprep.subr.mxu0 %v839
  %1262 = vmatpush2.msra.mxu0 %v838
  %1263 = vmatprep.subr.mxu0 %v835
  %1264 = vmatpush2.msra.mxu0 %v834
  %1265 = vmatprep.subr.mxu0 %v831
  %1266 = vmatpush2.msra.mxu0 %v830
  %1267 = vmatprep.subr.mxu0 %v827
  %1268 = vmatpush2.msra.mxu0 %v826
  %1269 = vmatprep.subr.mxu0 %v823
  %1270 = vmatpush2.msra.mxu0 %v822
  %1271 = vmatprep.subr.mxu0 %v819
  %1272 = vmatpush2.msra.mxu0 %v818
  %1273 = vmatprep.subr.mxu0 %v815
  %1274 = vmatpush2.msra.mxu0 %v814
  %1275 = vmatprep.subr.mxu0 %v811
  %1276 = vmatpush2.msra.mxu0 %v810
  %1277 = vmatprep.subr.mxu0 %v807
  %1278 = vmatpush2.msra.mxu0 %v806
  %1279 = vmatprep.mubr.f32.mxu0 %v609
  %1280 = vmatmul.mubr.f32.gmra.mxu0 %v608
  %v1281 = vpop.f32.mrf.mxu0
  %v1282 = vadd.f32 %v1211, %v1281
  %v1283 = vpop.f32.mrf.mxu0
  %v1284 = vadd.f32 %v1213, %v1283
  %1285 = vdwg.mxu0
  %1286 = vmatprep.subr.mxu0 %v931
  %1287 = vmatpush1.msra.mxu0 %v930
  %1288 = vmatprep.subr.mxu0 %v927
  %1289 = vmatpush1.msra.mxu0 %v926
  %1290 = vmatprep.subr.mxu0 %v923
  %1291 = vmatpush1.msra.mxu0 %v922
  %1292 = vmatprep.subr.mxu0 %v919
  %1293 = vmatpush1.msra.mxu0 %v918
  %1294 = vmatprep.subr.mxu0 %v915
  %1295 = vmatpush1.msra.mxu0 %v914
  %1296 = vmatprep.subr.mxu0 %v911
  %1297 = vmatpush1.msra.mxu0 %v910
  %1298 = vmatprep.subr.mxu0 %v907
  %1299 = vmatpush1.msra.mxu0 %v906
  %1300 = vmatprep.subr.mxu0 %v903
  %1301 = vmatpush1.msra.mxu0 %v902
  %1302 = vmatprep.subr.mxu0 %v899
  %1303 = vmatpush1.msra.mxu0 %v898
  %1304 = vmatprep.subr.mxu0 %v895
  %1305 = vmatpush1.msra.mxu0 %v894
  %1306 = vmatprep.subr.mxu0 %v891
  %1307 = vmatpush1.msra.mxu0 %v890
  %1308 = vmatprep.subr.mxu0 %v887
  %1309 = vmatpush1.msra.mxu0 %v886
  %1310 = vmatprep.subr.mxu0 %v883
  %1311 = vmatpush1.msra.mxu0 %v882
  %1312 = vmatprep.subr.mxu0 %v879
  %1313 = vmatpush1.msra.mxu0 %v878
  %1314 = vmatprep.subr.mxu0 %v875
  %1315 = vmatpush1.msra.mxu0 %v874
  %1316 = vmatprep.subr.mxu0 %v871
  %1317 = vmatpush1.msra.mxu0 %v870
  %1318 = vmatprep.subr.mxu0 %v995
  %1319 = vmatpush2.msra.mxu0 %v994
  %1320 = vmatprep.subr.mxu0 %v991
  %1321 = vmatpush2.msra.mxu0 %v990
  %1322 = vmatprep.subr.mxu0 %v987
  %1323 = vmatpush2.msra.mxu0 %v986
  %1324 = vmatprep.subr.mxu0 %v983
  %1325 = vmatpush2.msra.mxu0 %v982
  %1326 = vmatprep.subr.mxu0 %v979
  %1327 = vmatpush2.msra.mxu0 %v978
  %1328 = vmatprep.subr.mxu0 %v975
  %1329 = vmatpush2.msra.mxu0 %v974
  %1330 = vmatprep.subr.mxu0 %v971
  %1331 = vmatpush2.msra.mxu0 %v970
  %1332 = vmatprep.subr.mxu0 %v967
  %1333 = vmatpush2.msra.mxu0 %v966
  %1334 = vmatprep.subr.mxu0 %v963
  %1335 = vmatpush2.msra.mxu0 %v962
  %1336 = vmatprep.subr.mxu0 %v959
  %1337 = vmatpush2.msra.mxu0 %v958
  %1338 = vmatprep.subr.mxu0 %v955
  %1339 = vmatpush2.msra.mxu0 %v954
  %1340 = vmatprep.subr.mxu0 %v951
  %1341 = vmatpush2.msra.mxu0 %v950
  %1342 = vmatprep.subr.mxu0 %v947
  %1343 = vmatpush2.msra.mxu0 %v946
  %1344 = vmatprep.subr.mxu0 %v943
  %1345 = vmatpush2.msra.mxu0 %v942
  %1346 = vmatprep.subr.mxu0 %v939
  %1347 = vmatpush2.msra.mxu0 %v938
  %1348 = vmatprep.subr.mxu0 %v935
  %1349 = vmatpush2.msra.mxu0 %v934
  %1350 = vmatprep.mubr.f32.mxu0 %v611
  %1351 = vmatmul.mubr.f32.gmra.mxu0 %v610
  %v1352 = vpop.f32.mrf.mxu0
  %v1353 = vadd.f32 %v1282, %v1352
  %v1354 = vpop.f32.mrf.mxu0
  %v1355 = vadd.f32 %v1284, %v1354
  %1356 = vdwg.mxu0
  %1357 = vmatprep.subr.mxu0 %v1059
  %1358 = vmatpush1.msra.mxu0 %v1058
  %1359 = vmatprep.subr.mxu0 %v1055
  %1360 = vmatpush1.msra.mxu0 %v1054
  %1361 = vmatprep.subr.mxu0 %v1051
  %1362 = vmatpush1.msra.mxu0 %v1050
  %1363 = vmatprep.subr.mxu0 %v1047
  %1364 = vmatpush1.msra.mxu0 %v1046
  %1365 = vmatprep.subr.mxu0 %v1043
  %1366 = vmatpush1.msra.mxu0 %v1042
  %1367 = vmatprep.subr.mxu0 %v1039
  %1368 = vmatpush1.msra.mxu0 %v1038
  %1369 = vmatprep.subr.mxu0 %v1035
  %1370 = vmatpush1.msra.mxu0 %v1034
  %1371 = vmatprep.subr.mxu0 %v1031
  %1372 = vmatpush1.msra.mxu0 %v1030
  %1373 = vmatprep.subr.mxu0 %v1027
  %1374 = vmatpush1.msra.mxu0 %v1026
  %1375 = vmatprep.subr.mxu0 %v1023
  %1376 = vmatpush1.msra.mxu0 %v1022
  %1377 = vmatprep.subr.mxu0 %v1019
  %1378 = vmatpush1.msra.mxu0 %v1018
  %1379 = vmatprep.subr.mxu0 %v1015
  %1380 = vmatpush1.msra.mxu0 %v1014
  %1381 = vmatprep.subr.mxu0 %v1011
  %1382 = vmatpush1.msra.mxu0 %v1010
  %1383 = vmatprep.subr.mxu0 %v1007
  %1384 = vmatpush1.msra.mxu0 %v1006
  %1385 = vmatprep.subr.mxu0 %v1003
  %1386 = vmatpush1.msra.mxu0 %v1002
  %1387 = vmatprep.subr.mxu0 %v999
  %1388 = vmatpush1.msra.mxu0 %v998
  %1389 = vmatprep.subr.mxu0 0.0
  %1390 = vmatpush2.msra.mxu0 0.0
  %1391 = vmatprep.subr.mxu0 0.0
  %1392 = vmatpush2.msra.mxu0 0.0
  %1393 = vmatprep.subr.mxu0 0.0
  %1394 = vmatpush2.msra.mxu0 0.0
  %1395 = vmatprep.subr.mxu0 0.0
  %1396 = vmatpush2.msra.mxu0 0.0
  %1397 = vmatprep.subr.mxu0 0.0
  %1398 = vmatpush2.msra.mxu0 0.0
  %1399 = vmatprep.subr.mxu0 %v1136
  %1400 = vmatpush2.msra.mxu0 %v1133
  %1401 = vmatprep.subr.mxu0 %v1099
  %1402 = vmatpush2.msra.mxu0 %v1098
  %1403 = vmatprep.subr.mxu0 %v1095
  %1404 = vmatpush2.msra.mxu0 %v1094
  %1405 = vmatprep.subr.mxu0 %v1091
  %1406 = vmatpush2.msra.mxu0 %v1090
  %1407 = vmatprep.subr.mxu0 %v1087
  %1408 = vmatpush2.msra.mxu0 %v1086
  %1409 = vmatprep.subr.mxu0 %v1083
  %1410 = vmatpush2.msra.mxu0 %v1082
  %1411 = vmatprep.subr.mxu0 %v1079
  %1412 = vmatpush2.msra.mxu0 %v1078
  %1413 = vmatprep.subr.mxu0 %v1075
  %1414 = vmatpush2.msra.mxu0 %v1074
  %1415 = vmatprep.subr.mxu0 %v1071
  %1416 = vmatpush2.msra.mxu0 %v1070
  %1417 = vmatprep.subr.mxu0 %v1067
  %1418 = vmatpush2.msra.mxu0 %v1066
  %1419 = vmatprep.subr.mxu0 %v1063
  %1420 = vmatpush2.msra.mxu0 %v1062
  %1421 = vmatprep.mubr.f32.mxu0 %v1130
  %1422 = vmatmul.mubr.f32.gmra.mxu0 %v612
  %v1423 = vpop.f32.mrf.mxu0
  %v1424 = vadd.f32 %v1353, %v1423
  %v1425 = vpop.f32.mrf.mxu0
  %v1426 = vadd.f32 %v1355, %v1425
  %1427 = vdwg.mxu0
  %1428 = vmatprep.subr.mxu0 %v677
  %1429 = vmatpush1.msra.mxu0 %v676
  %1430 = vmatprep.subr.mxu0 %v673
  %1431 = vmatpush1.msra.mxu0 %v672
  %1432 = vmatprep.subr.mxu0 %v669
  %1433 = vmatpush1.msra.mxu0 %v668
  %1434 = vmatprep.subr.mxu0 %v665
  %1435 = vmatpush1.msra.mxu0 %v664
  %1436 = vmatprep.subr.mxu0 %v661
  %1437 = vmatpush1.msra.mxu0 %v660
  %1438 = vmatprep.subr.mxu0 %v657
  %1439 = vmatpush1.msra.mxu0 %v656
  %1440 = vmatprep.subr.mxu0 %v653
  %1441 = vmatpush1.msra.mxu0 %v652
  %1442 = vmatprep.subr.mxu0 %v649
  %1443 = vmatpush1.msra.mxu0 %v648
  %1444 = vmatprep.subr.mxu0 %v645
  %1445 = vmatpush1.msra.mxu0 %v644
  %1446 = vmatprep.subr.mxu0 %v641
  %1447 = vmatpush1.msra.mxu0 %v640
  %1448 = vmatprep.subr.mxu0 %v637
  %1449 = vmatpush1.msra.mxu0 %v636
  %1450 = vmatprep.subr.mxu0 %v633
  %1451 = vmatpush1.msra.mxu0 %v632
  %1452 = vmatprep.subr.mxu0 %v629
  %1453 = vmatpush1.msra.mxu0 %v628
  %1454 = vmatprep.subr.mxu0 %v625
  %1455 = vmatpush1.msra.mxu0 %v624
  %1456 = vmatprep.subr.mxu0 %v621
  %1457 = vmatpush1.msra.mxu0 %v620
  %1458 = vmatprep.subr.mxu0 %v617
  %1459 = vmatpush1.msra.mxu0 %v616
  %1460 = vmatprep.subr.mxu0 %v741
  %1461 = vmatpush2.msra.mxu0 %v740
  %1462 = vmatprep.subr.mxu0 %v737
  %1463 = vmatpush2.msra.mxu0 %v736
  %1464 = vmatprep.subr.mxu0 %v733
  %1465 = vmatpush2.msra.mxu0 %v732
  %1466 = vmatprep.subr.mxu0 %v729
  %1467 = vmatpush2.msra.mxu0 %v728
  %1468 = vmatprep.subr.mxu0 %v725
  %1469 = vmatpush2.msra.mxu0 %v724
  %1470 = vmatprep.subr.mxu0 %v721
  %1471 = vmatpush2.msra.mxu0 %v720
  %1472 = vmatprep.subr.mxu0 %v717
  %1473 = vmatpush2.msra.mxu0 %v716
  %1474 = vmatprep.subr.mxu0 %v713
  %1475 = vmatpush2.msra.mxu0 %v712
  %1476 = vmatprep.subr.mxu0 %v709
  %1477 = vmatpush2.msra.mxu0 %v708
  %1478 = vmatprep.subr.mxu0 %v705
  %1479 = vmatpush2.msra.mxu0 %v704
  %1480 = vmatprep.subr.mxu0 %v701
  %1481 = vmatpush2.msra.mxu0 %v700
  %1482 = vmatprep.subr.mxu0 %v697
  %1483 = vmatpush2.msra.mxu0 %v696
  %1484 = vmatprep.subr.mxu0 %v693
  %1485 = vmatpush2.msra.mxu0 %v692
  %1486 = vmatprep.subr.mxu0 %v689
  %1487 = vmatpush2.msra.mxu0 %v688
  %1488 = vmatprep.subr.mxu0 %v685
  %1489 = vmatpush2.msra.mxu0 %v684
  %1490 = vmatprep.subr.mxu0 %v681
  %1491 = vmatpush2.msra.mxu0 %v680
  %1492 = vmatprep.mubr.f32.mxu0 %v607
  %1493 = vmatmul.mubr.f32.gmra.mxu0 %v606
  %v1494 = vpop.f32.mrf.mxu0
  %v1495 = vadd.f32 %v1119, %v1494
  %v1496 = vpop.f32.mrf.mxu0
  %v1497 = vadd.f32 %v1123, %v1496
  %1498 = vdwg.mxu0
  %1499 = vmatprep.subr.mxu0 %v805
  %1500 = vmatpush1.msra.mxu0 %v804
  %1501 = vmatprep.subr.mxu0 %v801
  %1502 = vmatpush1.msra.mxu0 %v800
  %1503 = vmatprep.subr.mxu0 %v797
  %1504 = vmatpush1.msra.mxu0 %v796
  %1505 = vmatprep.subr.mxu0 %v793
  %1506 = vmatpush1.msra.mxu0 %v792
  %1507 = vmatprep.subr.mxu0 %v789
  %1508 = vmatpush1.msra.mxu0 %v788
  %1509 = vmatprep.subr.mxu0 %v785
  %1510 = vmatpush1.msra.mxu0 %v784
  %1511 = vmatprep.subr.mxu0 %v781
  %1512 = vmatpush1.msra.mxu0 %v780
  %1513 = vmatprep.subr.mxu0 %v777
  %1514 = vmatpush1.msra.mxu0 %v776
  %1515 = vmatprep.subr.mxu0 %v773
  %1516 = vmatpush1.msra.mxu0 %v772
  %1517 = vmatprep.subr.mxu0 %v769
  %1518 = vmatpush1.msra.mxu0 %v768
  %1519 = vmatprep.subr.mxu0 %v765
  %1520 = vmatpush1.msra.mxu0 %v764
  %1521 = vmatprep.subr.mxu0 %v761
  %1522 = vmatpush1.msra.mxu0 %v760
  %1523 = vmatprep.subr.mxu0 %v757
  %1524 = vmatpush1.msra.mxu0 %v756
  %1525 = vmatprep.subr.mxu0 %v753
  %1526 = vmatpush1.msra.mxu0 %v752
  %1527 = vmatprep.subr.mxu0 %v749
  %1528 = vmatpush1.msra.mxu0 %v748
  %1529 = vmatprep.subr.mxu0 %v745
  %1530 = vmatpush1.msra.mxu0 %v744
  %1531 = vmatprep.subr.mxu0 %v869
  %1532 = vmatpush2.msra.mxu0 %v868
  %1533 = vmatprep.subr.mxu0 %v865
  %1534 = vmatpush2.msra.mxu0 %v864
  %1535 = vmatprep.subr.mxu0 %v861
  %1536 = vmatpush2.msra.mxu0 %v860
  %1537 = vmatprep.subr.mxu0 %v857
  %1538 = vmatpush2.msra.mxu0 %v856
  %1539 = vmatprep.subr.mxu0 %v853
  %1540 = vmatpush2.msra.mxu0 %v852
  %1541 = vmatprep.subr.mxu0 %v849
  %1542 = vmatpush2.msra.mxu0 %v848
  %1543 = vmatprep.subr.mxu0 %v845
  %1544 = vmatpush2.msra.mxu0 %v844
  %1545 = vmatprep.subr.mxu0 %v841
  %1546 = vmatpush2.msra.mxu0 %v840
  %1547 = vmatprep.subr.mxu0 %v837
  %1548 = vmatpush2.msra.mxu0 %v836
  %1549 = vmatprep.subr.mxu0 %v833
  %1550 = vmatpush2.msra.mxu0 %v832
  %1551 = vmatprep.subr.mxu0 %v829
  %1552 = vmatpush2.msra.mxu0 %v828
  %1553 = vmatprep.subr.mxu0 %v825
  %1554 = vmatpush2.msra.mxu0 %v824
  %1555 = vmatprep.subr.mxu0 %v821
  %1556 = vmatpush2.msra.mxu0 %v820
  %1557 = vmatprep.subr.mxu0 %v817
  %1558 = vmatpush2.msra.mxu0 %v816
  %1559 = vmatprep.subr.mxu0 %v813
  %1560 = vmatpush2.msra.mxu0 %v812
  %1561 = vmatprep.subr.mxu0 %v809
  %1562 = vmatpush2.msra.mxu0 %v808
  %1563 = vmatprep.mubr.f32.mxu0 %v609
  %1564 = vmatmul.mubr.f32.gmra.mxu0 %v608
  %v1565 = vpop.f32.mrf.mxu0
  %v1566 = vadd.f32 %v1495, %v1565
  %v1567 = vpop.f32.mrf.mxu0
  %v1568 = vadd.f32 %v1497, %v1567
  %1569 = vdwg.mxu0
  %1570 = vmatprep.subr.mxu0 %v933
  %1571 = vmatpush1.msra.mxu0 %v932
  %1572 = vmatprep.subr.mxu0 %v929
  %1573 = vmatpush1.msra.mxu0 %v928
  %1574 = vmatprep.subr.mxu0 %v925
  %1575 = vmatpush1.msra.mxu0 %v924
  %1576 = vmatprep.subr.mxu0 %v921
  %1577 = vmatpush1.msra.mxu0 %v920
  %1578 = vmatprep.subr.mxu0 %v917
  %1579 = vmatpush1.msra.mxu0 %v916
  %1580 = vmatprep.subr.mxu0 %v913
  %1581 = vmatpush1.msra.mxu0 %v912
  %1582 = vmatprep.subr.mxu0 %v909
  %1583 = vmatpush1.msra.mxu0 %v908
  %1584 = vmatprep.subr.mxu0 %v905
  %1585 = vmatpush1.msra.mxu0 %v904
  %1586 = vmatprep.subr.mxu0 %v901
  %1587 = vmatpush1.msra.mxu0 %v900
  %1588 = vmatprep.subr.mxu0 %v897
  %1589 = vmatpush1.msra.mxu0 %v896
  %1590 = vmatprep.subr.mxu0 %v893
  %1591 = vmatpush1.msra.mxu0 %v892
  %1592 = vmatprep.subr.mxu0 %v889
  %1593 = vmatpush1.msra.mxu0 %v888
  %1594 = vmatprep.subr.mxu0 %v885
  %1595 = vmatpush1.msra.mxu0 %v884
  %1596 = vmatprep.subr.mxu0 %v881
  %1597 = vmatpush1.msra.mxu0 %v880
  %1598 = vmatprep.subr.mxu0 %v877
  %1599 = vmatpush1.msra.mxu0 %v876
  %1600 = vmatprep.subr.mxu0 %v873
  %1601 = vmatpush1.msra.mxu0 %v872
  %1602 = vmatprep.subr.mxu0 %v997
  %1603 = vmatpush2.msra.mxu0 %v996
  %1604 = vmatprep.subr.mxu0 %v993
  %1605 = vmatpush2.msra.mxu0 %v992
  %1606 = vmatprep.subr.mxu0 %v989
  %1607 = vmatpush2.msra.mxu0 %v988
  %1608 = vmatprep.subr.mxu0 %v985
  %1609 = vmatpush2.msra.mxu0 %v984
  %1610 = vmatprep.subr.mxu0 %v981
  %1611 = vmatpush2.msra.mxu0 %v980
  %1612 = vmatprep.subr.mxu0 %v977
  %1613 = vmatpush2.msra.mxu0 %v976
  %1614 = vmatprep.subr.mxu0 %v973
  %1615 = vmatpush2.msra.mxu0 %v972
  %1616 = vmatprep.subr.mxu0 %v969
  %1617 = vmatpush2.msra.mxu0 %v968
  %1618 = vmatprep.subr.mxu0 %v965
  %1619 = vmatpush2.msra.mxu0 %v964
  %1620 = vmatprep.subr.mxu0 %v961
  %1621 = vmatpush2.msra.mxu0 %v960
  %1622 = vmatprep.subr.mxu0 %v957
  %1623 = vmatpush2.msra.mxu0 %v956
  %1624 = vmatprep.subr.mxu0 %v953
  %1625 = vmatpush2.msra.mxu0 %v952
  %1626 = vmatprep.subr.mxu0 %v949
  %1627 = vmatpush2.msra.mxu0 %v948
  %1628 = vmatprep.subr.mxu0 %v945
  %1629 = vmatpush2.msra.mxu0 %v944
  %1630 = vmatprep.subr.mxu0 %v941
  %1631 = vmatpush2.msra.mxu0 %v940
  %1632 = vmatprep.subr.mxu0 %v937
  %1633 = vmatpush2.msra.mxu0 %v936
  %1634 = vmatprep.mubr.f32.mxu0 %v611
  %1635 = vmatmul.mubr.f32.gmra.mxu0 %v610
  %v1636 = vpop.f32.mrf.mxu0
  %v1637 = vadd.f32 %v1566, %v1636
  %v1638 = vpop.f32.mrf.mxu0
  %v1639 = vadd.f32 %v1568, %v1638
  %1640 = vdwg.mxu0
  %1641 = vmatprep.subr.mxu0 %v1061
  %1642 = vmatpush1.msra.mxu0 %v1060
  %1643 = vmatprep.subr.mxu0 %v1057
  %1644 = vmatpush1.msra.mxu0 %v1056
  %1645 = vmatprep.subr.mxu0 %v1053
  %1646 = vmatpush1.msra.mxu0 %v1052
  %1647 = vmatprep.subr.mxu0 %v1049
  %1648 = vmatpush1.msra.mxu0 %v1048
  %1649 = vmatprep.subr.mxu0 %v1045
  %1650 = vmatpush1.msra.mxu0 %v1044
  %1651 = vmatprep.subr.mxu0 %v1041
  %1652 = vmatpush1.msra.mxu0 %v1040
  %1653 = vmatprep.subr.mxu0 %v1037
  %1654 = vmatpush1.msra.mxu0 %v1036
  %1655 = vmatprep.subr.mxu0 %v1033
  %1656 = vmatpush1.msra.mxu0 %v1032
  %1657 = vmatprep.subr.mxu0 %v1029
  %1658 = vmatpush1.msra.mxu0 %v1028
  %1659 = vmatprep.subr.mxu0 %v1025
  %1660 = vmatpush1.msra.mxu0 %v1024
  %1661 = vmatprep.subr.mxu0 %v1021
  %1662 = vmatpush1.msra.mxu0 %v1020
  %1663 = vmatprep.subr.mxu0 %v1017
  %1664 = vmatpush1.msra.mxu0 %v1016
  %1665 = vmatprep.subr.mxu0 %v1013
  %1666 = vmatpush1.msra.mxu0 %v1012
  %1667 = vmatprep.subr.mxu0 %v1009
  %1668 = vmatpush1.msra.mxu0 %v1008
  %1669 = vmatprep.subr.mxu0 %v1005
  %1670 = vmatpush1.msra.mxu0 %v1004
  %1671 = vmatprep.subr.mxu0 %v1001
  %1672 = vmatpush1.msra.mxu0 %v1000
  %1673 = vmatprep.subr.mxu0 0.0
  %1674 = vmatpush2.msra.mxu0 0.0
  %1675 = vmatprep.subr.mxu0 0.0
  %1676 = vmatpush2.msra.mxu0 0.0
  %1677 = vmatprep.subr.mxu0 0.0
  %1678 = vmatpush2.msra.mxu0 0.0
  %1679 = vmatprep.subr.mxu0 0.0
  %1680 = vmatpush2.msra.mxu0 0.0
  %1681 = vmatprep.subr.mxu0 0.0
  %1682 = vmatpush2.msra.mxu0 0.0
  %1683 = vmatprep.subr.mxu0 %v1142
  %1684 = vmatpush2.msra.mxu0 %v1139
  %1685 = vmatprep.subr.mxu0 %v1101
  %1686 = vmatpush2.msra.mxu0 %v1100
  %1687 = vmatprep.subr.mxu0 %v1097
  %1688 = vmatpush2.msra.mxu0 %v1096
  %1689 = vmatprep.subr.mxu0 %v1093
  %1690 = vmatpush2.msra.mxu0 %v1092
  %1691 = vmatprep.subr.mxu0 %v1089
  %1692 = vmatpush2.msra.mxu0 %v1088
  %1693 = vmatprep.subr.mxu0 %v1085
  %1694 = vmatpush2.msra.mxu0 %v1084
  %1695 = vmatprep.subr.mxu0 %v1081
  %1696 = vmatpush2.msra.mxu0 %v1080
  %1697 = vmatprep.subr.mxu0 %v1077
  %1698 = vmatpush2.msra.mxu0 %v1076
  %1699 = vmatprep.subr.mxu0 %v1073
  %1700 = vmatpush2.msra.mxu0 %v1072
  %1701 = vmatprep.subr.mxu0 %v1069
  %1702 = vmatpush2.msra.mxu0 %v1068
  %1703 = vmatprep.subr.mxu0 %v1065
  %1704 = vmatpush2.msra.mxu0 %v1064
  %1705 = vmatprep.mubr.f32.mxu0 %v1130
  %1706 = vmatmul.mubr.f32.gmra.mxu0 %v612
  %v1707 = vpop.f32.mrf.mxu0
  %v1708 = vadd.f32 %v1637, %v1707
  %v1709 = vpop.f32.mrf.mxu0
  %v1710 = vadd.f32 %v1639, %v1709
  %1711 = vdwg.mxu0
  %v1712 = vmax.f32 %v1424, 0.0
  %v1713 = vmax.f32 %v1426, 0.0
  %v1714 = vmax.f32 %v1708, 0.0
  %v1715 = vmax.f32 %v1710, 0.0
  %v1716 = vld [vmem:[%s6] sm:$0xff]
  %v1717 = vld [vmem:[%s6 + $0x8] sm:$0xff]
  %v1718 = vld [vmem:[%s6 + $0x10] sm:$0xff]
  %v1719 = vld [vmem:[%s6 + $0x18] sm:$0xff]
  %v1720 = vld [vmem:[%s6 + $0x20] sm:$0xff]
  %v1721 = vld [vmem:[%s6 + $0x28] sm:$0xff]
  %v1722 = vld [vmem:[%s6 + $0x30] sm:$0xff]
  %v1723 = vld [vmem:[%s6 + $0x38] sm:$0xff]
  %v1724 = vld [vmem:[%s6 + $0x40] sm:$0xff]
  %v1725 = vld [vmem:[%s6 + $0x48] sm:$0xff]
  %v1726 = vld [vmem:[%s6 + $0x50] sm:$0xff]
  %v1727 = vld [vmem:[%s6 + $0x58] sm:$0xff]
  %v1728 = vld [vmem:[%s6 + $0x60] sm:$0xff]
  %v1729 = vld [vmem:[%s6 + $0x68] sm:$0xff]
  %v1730 = vld [vmem:[%s6 + $0x70] sm:$0xff]
  %v1731 = vld [vmem:[%s6 + $0x78] sm:$0xff]
  %v1732 = vld [vmem:[%s6 + $0x80] sm:$0xff]
  %v1733 = vld [vmem:[%s6 + $0x88] sm:$0xff]
  %v1734 = vld [vmem:[%s6 + $0x90] sm:$0xff]
  %v1735 = vld [vmem:[%s6 + $0x98] sm:$0xff]
  %v1736 = vld [vmem:[%s6 + $0xa0] sm:$0xff]
  %v1737 = vld [vmem:[%s6 + $0xa8] sm:$0xff]
  %v1738 = vld [vmem:[%s6 + $0xb0] sm:$0xff]
  %v1739 = vld [vmem:[%s6 + $0xb8] sm:$0xff]
  %v1740 = vld [vmem:[%s6 + $0xc0] sm:$0xff]
  %v1741 = vld [vmem:[%s6 + $0xc8] sm:$0xff]
  %v1742 = vld [vmem:[%s6 + $0xd0] sm:$0xff]
  %v1743 = vld [vmem:[%s6 + $0xd8] sm:$0xff]
  %v1744 = vld [vmem:[%s6 + $0xe0] sm:$0xff]
  %v1745 = vld [vmem:[%s6 + $0xe8] sm:$0xff]
  %v1746 = vld [vmem:[%s6 + $0xf0] sm:$0xff]
  %v1747 = vld [vmem:[%s6 + $0xf8] sm:$0xff]
  %v1748 = vld [vmem:[%s6 + $0x100] sm:$0xff]
  %v1749 = vld [vmem:[%s6 + $0x108] sm:$0xff]
  %v1750 = vld [vmem:[%s6 + $0x110] sm:$0xff]
  %v1751 = vld [vmem:[%s6 + $0x118] sm:$0xff]
  %v1752 = vld [vmem:[%s6 + $0x120] sm:$0xff]
  %v1753 = vld [vmem:[%s6 + $0x128] sm:$0xff]
  %v1754 = vld [vmem:[%s6 + $0x130] sm:$0xff]
  %v1755 = vld [vmem:[%s6 + $0x138] sm:$0xff]
  %v1756 = vld [vmem:[%s6 + $0x140] sm:$0xff]
  %v1757 = vld [vmem:[%s6 + $0x148] sm:$0xff]
  %v1758 = vld [vmem:[%s6 + $0x150] sm:$0xff]
  %v1759 = vld [vmem:[%s6 + $0x158] sm:$0xff]
  %v1760 = vld [vmem:[%s6 + $0x160] sm:$0xff]
  %v1761 = vld [vmem:[%s6 + $0x168] sm:$0xff]
  %v1762 = vld [vmem:[%s6 + $0x170] sm:$0xff]
  %v1763 = vld [vmem:[%s6 + $0x178] sm:$0xff]
  %v1764 = vld [vmem:[%s6 + $0x180] sm:$0xff]
  %v1765 = vld [vmem:[%s6 + $0x188] sm:$0xff]
  %v1766 = vld [vmem:[%s6 + $0x190] sm:$0xff]
  %v1767 = vld [vmem:[%s6 + $0x198] sm:$0xff]
  %v1768 = vld [vmem:[%s6 + $0x1a0] sm:$0xff]
  %v1769 = vld [vmem:[%s6 + $0x1a8] sm:$0xff]
  %v1770 = vld [vmem:[%s6 + $0x1b0] sm:$0xff]
  %v1771 = vld [vmem:[%s6 + $0x1b8] sm:$0xff]
  %v1772 = vld [vmem:[%s6 + $0x1c0] sm:$0xff]
  %v1773 = vld [vmem:[%s6 + $0x1c8] sm:$0xff]
  %v1774 = vld [vmem:[%s6 + $0x1d0] sm:$0xff]
  %v1775 = vld [vmem:[%s6 + $0x1d8] sm:$0xff]
  %v1776 = vld [vmem:[%s6 + $0x1e0] sm:$0xff]
  %v1777 = vld [vmem:[%s6 + $0x1e8] sm:$0x3]
  %v1778 = vld [vmem:[%s7] sm:$0x1]
  %v1780 = vlaneseq
  %v1781 = vshrl.u32 %v1780, 7
  %v1782 = vsub.s32 0, %v1781
  %v1783 = vrot.slane %v1778, %v1782
  %vm1785 = vcmask 867328
  %v1787 = vsel %vm1785, %v1715, 0
  %vm1789 = vcmask 1041408
  %v1791 = vsel %vm1789, %v1777, 0
  %1793 = vmatprep.subr.mxu0 0.0
  %1794 = vmatpush1.msra.mxu0 %v1731
  %1795 = vmatprep.subr.mxu0 0.0
  %1796 = vmatpush1.msra.mxu0 %v1730
  %1797 = vmatprep.subr.mxu0 0.0
  %1798 = vmatpush1.msra.mxu0 %v1729
  %1799 = vmatprep.subr.mxu0 0.0
  %1800 = vmatpush1.msra.mxu0 %v1728
  %1801 = vmatprep.subr.mxu0 0.0
  %1802 = vmatpush1.msra.mxu0 %v1727
  %1803 = vmatprep.subr.mxu0 0.0
  %1804 = vmatpush1.msra.mxu0 %v1726
  %1805 = vmatprep.subr.mxu0 0.0
  %1806 = vmatpush1.msra.mxu0 %v1725
  %1807 = vmatprep.subr.mxu0 0.0
  %1808 = vmatpush1.msra.mxu0 %v1724
  %1809 = vmatprep.subr.mxu0 0.0
  %1810 = vmatpush1.msra.mxu0 %v1723
  %1811 = vmatprep.subr.mxu0 0.0
  %1812 = vmatpush1.msra.mxu0 %v1722
  %1813 = vmatprep.subr.mxu0 0.0
  %1814 = vmatpush1.msra.mxu0 %v1721
  %1815 = vmatprep.subr.mxu0 0.0
  %1816 = vmatpush1.msra.mxu0 %v1720
  %1817 = vmatprep.subr.mxu0 0.0
  %1818 = vmatpush1.msra.mxu0 %v1719
  %1819 = vmatprep.subr.mxu0 0.0
  %1820 = vmatpush1.msra.mxu0 %v1718
  %1821 = vmatprep.subr.mxu0 0.0
  %1822 = vmatpush1.msra.mxu0 %v1717
  %1823 = vmatprep.subr.mxu0 0.0
  %1824 = vmatpush1.msra.mxu0 %v1716
  %1825 = vmatprep.subr.mxu0 0.0
  %1826 = vmatpush2.msra.mxu0 %v1747
  %1827 = vmatprep.subr.mxu0 0.0
  %1828 = vmatpush2.msra.mxu0 %v1746
  %1829 = vmatprep.subr.mxu0 0.0
  %1830 = vmatpush2.msra.mxu0 %v1745
  %1831 = vmatprep.subr.mxu0 0.0
  %1832 = vmatpush2.msra.mxu0 %v1744
  %1833 = vmatprep.subr.mxu0 0.0
  %1834 = vmatpush2.msra.mxu0 %v1743
  %1835 = vmatprep.subr.mxu0 0.0
  %1836 = vmatpush2.msra.mxu0 %v1742
  %1837 = vmatprep.subr.mxu0 0.0
  %1838 = vmatpush2.msra.mxu0 %v1741
  %1839 = vmatprep.subr.mxu0 0.0
  %1840 = vmatpush2.msra.mxu0 %v1740
  %1841 = vmatprep.subr.mxu0 0.0
  %1842 = vmatpush2.msra.mxu0 %v1739
  %1843 = vmatprep.subr.mxu0 0.0
  %1844 = vmatpush2.msra.mxu0 %v1738
  %1845 = vmatprep.subr.mxu0 0.0
  %1846 = vmatpush2.msra.mxu0 %v1737
  %1847 = vmatprep.subr.mxu0 0.0
  %1848 = vmatpush2.msra.mxu0 %v1736
  %1849 = vmatprep.subr.mxu0 0.0
  %1850 = vmatpush2.msra.mxu0 %v1735
  %1851 = vmatprep.subr.mxu0 0.0
  %1852 = vmatpush2.msra.mxu0 %v1734
  %1853 = vmatprep.subr.mxu0 0.0
  %1854 = vmatpush2.msra.mxu0 %v1733
  %1855 = vmatprep.subr.mxu0 0.0
  %1856 = vmatpush2.msra.mxu0 %v1732
  %1857 = vmatprep.mubr.f32.mxu0 %v1713
  %1858 = vmatmul.mubr.f32.gmra.mxu0 %v1712
  %v1859 = vpop.f32.mrf.mxu0
  %v1860 = vadd.f32 %v1783, %v1859
  %v1861 = vpop.f32.mrf.mxu0
  %1862 = vdwg.mxu0
  %1863 = vmatprep.subr.mxu0 0.0
  %1864 = vmatpush1.msra.mxu0 %v1763
  %1865 = vmatprep.subr.mxu0 0.0
  %1866 = vmatpush1.msra.mxu0 %v1762
  %1867 = vmatprep.subr.mxu0 0.0
  %1868 = vmatpush1.msra.mxu0 %v1761
  %1869 = vmatprep.subr.mxu0 0.0
  %1870 = vmatpush1.msra.mxu0 %v1760
  %1871 = vmatprep.subr.mxu0 0.0
  %1872 = vmatpush1.msra.mxu0 %v1759
  %1873 = vmatprep.subr.mxu0 0.0
  %1874 = vmatpush1.msra.mxu0 %v1758
  %1875 = vmatprep.subr.mxu0 0.0
  %1876 = vmatpush1.msra.mxu0 %v1757
  %1877 = vmatprep.subr.mxu0 0.0
  %1878 = vmatpush1.msra.mxu0 %v1756
  %1879 = vmatprep.subr.mxu0 0.0
  %1880 = vmatpush1.msra.mxu0 %v1755
  %1881 = vmatprep.subr.mxu0 0.0
  %1882 = vmatpush1.msra.mxu0 %v1754
  %1883 = vmatprep.subr.mxu0 0.0
  %1884 = vmatpush1.msra.mxu0 %v1753
  %1885 = vmatprep.subr.mxu0 0.0
  %1886 = vmatpush1.msra.mxu0 %v1752
  %1887 = vmatprep.subr.mxu0 0.0
  %1888 = vmatpush1.msra.mxu0 %v1751
  %1889 = vmatprep.subr.mxu0 0.0
  %1890 = vmatpush1.msra.mxu0 %v1750
  %1891 = vmatprep.subr.mxu0 0.0
  %1892 = vmatpush1.msra.mxu0 %v1749
  %1893 = vmatprep.subr.mxu0 0.0
  %1894 = vmatpush1.msra.mxu0 %v1748
  %1895 = vmatprep.subr.mxu0 0.0
  %1896 = vmatpush2.msra.mxu0 0.0
  %1897 = vmatprep.subr.mxu0 0.0
  %1898 = vmatpush2.msra.mxu0 0.0
  %1899 = vmatprep.subr.mxu0 0.0
  %1900 = vmatpush2.msra.mxu0 %v1791
  %1901 = vmatprep.subr.mxu0 0.0
  %1902 = vmatpush2.msra.mxu0 %v1776
  %1903 = vmatprep.subr.mxu0 0.0
  %1904 = vmatpush2.msra.mxu0 %v1775
  %1905 = vmatprep.subr.mxu0 0.0
  %1906 = vmatpush2.msra.mxu0 %v1774
  %1907 = vmatprep.subr.mxu0 0.0
  %1908 = vmatpush2.msra.mxu0 %v1773
  %1909 = vmatprep.subr.mxu0 0.0
  %1910 = vmatpush2.msra.mxu0 %v1772
  %1911 = vmatprep.subr.mxu0 0.0
  %1912 = vmatpush2.msra.mxu0 %v1771
  %1913 = vmatprep.subr.mxu0 0.0
  %1914 = vmatpush2.msra.mxu0 %v1770
  %1915 = vmatprep.subr.mxu0 0.0
  %1916 = vmatpush2.msra.mxu0 %v1769
  %1917 = vmatprep.subr.mxu0 0.0
  %1918 = vmatpush2.msra.mxu0 %v1768
  %1919 = vmatprep.subr.mxu0 0.0
  %1920 = vmatpush2.msra.mxu0 %v1767
  %1921 = vmatprep.subr.mxu0 0.0
  %1922 = vmatpush2.msra.mxu0 %v1766
  %1923 = vmatprep.subr.mxu0 0.0
  %1924 = vmatpush2.msra.mxu0 %v1765
  %1925 = vmatprep.subr.mxu0 0.0
  %1926 = vmatpush2.msra.mxu0 %v1764
  %1927 = vmatprep.mubr.f32.mxu0 %v1787
  %1928 = vmatmul.mubr.f32.gmra.mxu0 %v1714
  %v1929 = vpop.f32.mrf.mxu0
  %v1930 = vadd.f32 %v1860, %v1929
  %v1931 = vpop.f32.mrf.mxu0
  %1932 = vdwg.mxu0
  %vm1933 = vcmask 130048
  %1934 = vst.msk [vmem:[%s14] sm:$0xff] %vm1933, %v1930
  %v1935 = vmul.f32 %v1930, 1.442695
  %v1936 = vpow.pop %v1935
  %v1937 = vld [vmem:[%s1] sm:$0xff]
  %1939 = vrot.lane.b32.xlu0 %v1937, 8
  %v1940 = vpop.permute.xlu0 %1939
  %v1942 = vmul.f32 %v1936, %v1940
  %1944 = vrot.lane.b32.xlu0 %v1942, 120
  %v1945 = vpop.permute.xlu0 %1944
  %v1947 = vadd.f32 %v1930, %v1945
  %v1948 = vld [vmem:[%s8] sm:$0xff]
  %v1949 = vld [vmem:[%s8 + $0x8] sm:$0xff]
  %v1950 = vld [vmem:[%s8 + $0x10] sm:$0xff]
  %v1951 = vld [vmem:[%s8 + $0x18] sm:$0xff]
  %v1952 = vld [vmem:[%s9] sm:$0xf]
  %v1954 = vlaneseq
  %v1955 = vshrl.u32 %v1954, 7
  %v1956 = vsub.s32 0, %v1955
  %v1957 = vrot.slane %v1952, %v1956
  %v1958 = vlaneseq
  %v1959 = vshrl.u32 %v1958, 7
  %v1960 = vsub.s32 1, %v1959
  %v1961 = vrot.slane %v1952, %v1960
  %v1962 = vlaneseq
  %v1963 = vshrl.u32 %v1962, 7
  %v1964 = vsub.s32 2, %v1963
  %v1965 = vrot.slane %v1952, %v1964
  %v1966 = vlaneseq
  %v1967 = vshrl.u32 %v1966, 7
  %v1968 = vsub.s32 3, %v1967
  %v1969 = vrot.slane %v1952, %v1968
  %vm1974 = vcmask 64512
  %v1976 = vsel %vm1974, %v1947, 0
  %1978 = vmatprep.subr.mxu0 0.0
  %1979 = vmatpush1.msra.mxu0 0.0
  %1980 = vmatprep.subr.mxu0 0.0
  %1981 = vmatpush1.msra.mxu0 0.0
  %1982 = vmatprep.subr.mxu0 0.0
  %1983 = vmatpush1.msra.mxu0 0.0
  %1984 = vmatprep.subr.mxu0 0.0
  %1985 = vmatpush1.msra.mxu0 0.0
  %1986 = vmatprep.subr.mxu0 0.0
  %1987 = vmatpush1.msra.mxu0 0.0
  %1988 = vmatprep.subr.mxu0 0.0
  %1989 = vmatpush1.msra.mxu0 0.0
  %1990 = vmatprep.subr.mxu0 0.0
  %1991 = vmatpush1.msra.mxu0 0.0
  %1992 = vmatprep.subr.mxu0 0.0
  %1993 = vmatpush1.msra.mxu0 0.0
  %1994 = vmatprep.subr.mxu0 0.0
  %1995 = vmatpush1.msra.mxu0 0.0
  %1996 = vmatprep.subr.mxu0 0.0
  %1997 = vmatpush1.msra.mxu0 0.0
  %1998 = vmatprep.subr.mxu0 0.0
  %1999 = vmatpush1.msra.mxu0 0.0
  %2000 = vmatprep.subr.mxu0 0.0
  %2001 = vmatpush1.msra.mxu0 0.0
  %2002 = vmatprep.subr.mxu0 0.0
  %2003 = vmatpush1.msra.mxu0 0.0
  %2004 = vmatprep.subr.mxu0 0.0
  %2005 = vmatpush1.msra.mxu0 0.0
  %2006 = vmatprep.subr.mxu0 0.0
  %2007 = vmatpush1.msra.mxu0 0.0
  %2008 = vmatprep.subr.mxu0 %v1949
  %2009 = vmatpush1.msra.mxu0 %v1948
  %2010 = vmatprep.subr.mxu0 0.0
  %2011 = vmatpush2.msra.mxu0 0.0
  %2012 = vmatprep.subr.mxu0 0.0
  %2013 = vmatpush2.msra.mxu0 0.0
  %2014 = vmatprep.subr.mxu0 0.0
  %2015 = vmatpush2.msra.mxu0 0.0
  %2016 = vmatprep.subr.mxu0 0.0
  %2017 = vmatpush2.msra.mxu0 0.0
  %2018 = vmatprep.subr.mxu0 0.0
  %2019 = vmatpush2.msra.mxu0 0.0
  %2020 = vmatprep.subr.mxu0 0.0
  %2021 = vmatpush2.msra.mxu0 0.0
  %2022 = vmatprep.subr.mxu0 0.0
  %2023 = vmatpush2.msra.mxu0 0.0
  %2024 = vmatprep.subr.mxu0 0.0
  %2025 = vmatpush2.msra.mxu0 0.0
  %2026 = vmatprep.subr.mxu0 0.0
  %2027 = vmatpush2.msra.mxu0 0.0
  %2028 = vmatprep.subr.mxu0 0.0
  %2029 = vmatpush2.msra.mxu0 0.0
  %2030 = vmatprep.subr.mxu0 0.0
  %2031 = vmatpush2.msra.mxu0 0.0
  %2032 = vmatprep.subr.mxu0 0.0
  %2033 = vmatpush2.msra.mxu0 0.0
  %2034 = vmatprep.subr.mxu0 0.0
  %2035 = vmatpush2.msra.mxu0 0.0
  %2036 = vmatprep.subr.mxu0 0.0
  %2037 = vmatpush2.msra.mxu0 0.0
  %2038 = vmatprep.subr.mxu0 0.0
  %2039 = vmatpush2.msra.mxu0 0.0
  %2040 = vmatprep.subr.mxu0 0.0
  %2041 = vmatpush2.msra.mxu0 0.0
  %2042 = vmatprep.mubr.f32.mxu0 0.0
  %2043 = vmatmul.mubr.f32.gmra.mxu0 %v1976
  %v2044 = vpop.f32.mrf.mxu0
  %v2045 = vadd.f32 %v1957, %v2044
  %v2046 = vpop.f32.mrf.mxu0
  %v2047 = vadd.f32 %v1961, %v2046
  %2048 = vdwg.mxu0
  %2049 = vmatprep.subr.mxu0 0.0
  %2050 = vmatpush1.msra.mxu0 0.0
  %2051 = vmatprep.subr.mxu0 0.0
  %2052 = vmatpush1.msra.mxu0 0.0
  %2053 = vmatprep.subr.mxu0 0.0
  %2054 = vmatpush1.msra.mxu0 0.0
  %2055 = vmatprep.subr.mxu0 0.0
  %2056 = vmatpush1.msra.mxu0 0.0
  %2057 = vmatprep.subr.mxu0 0.0
  %2058 = vmatpush1.msra.mxu0 0.0
  %2059 = vmatprep.subr.mxu0 0.0
  %2060 = vmatpush1.msra.mxu0 0.0
  %2061 = vmatprep.subr.mxu0 0.0
  %2062 = vmatpush1.msra.mxu0 0.0
  %2063 = vmatprep.subr.mxu0 0.0
  %2064 = vmatpush1.msra.mxu0 0.0
  %2065 = vmatprep.subr.mxu0 0.0
  %2066 = vmatpush1.msra.mxu0 0.0
  %2067 = vmatprep.subr.mxu0 0.0
  %2068 = vmatpush1.msra.mxu0 0.0
  %2069 = vmatprep.subr.mxu0 0.0
  %2070 = vmatpush1.msra.mxu0 0.0
  %2071 = vmatprep.subr.mxu0 0.0
  %2072 = vmatpush1.msra.mxu0 0.0
  %2073 = vmatprep.subr.mxu0 0.0
  %2074 = vmatpush1.msra.mxu0 0.0
  %2075 = vmatprep.subr.mxu0 0.0
  %2076 = vmatpush1.msra.mxu0 0.0
  %2077 = vmatprep.subr.mxu0 0.0
  %2078 = vmatpush1.msra.mxu0 0.0
  %2079 = vmatprep.subr.mxu0 %v1951
  %2080 = vmatpush1.msra.mxu0 %v1950
  %2081 = vmatprep.subr.mxu0 0.0
  %2082 = vmatpush2.msra.mxu0 0.0
  %2083 = vmatprep.subr.mxu0 0.0
  %2084 = vmatpush2.msra.mxu0 0.0
  %2085 = vmatprep.subr.mxu0 0.0
  %2086 = vmatpush2.msra.mxu0 0.0
  %2087 = vmatprep.subr.mxu0 0.0
  %2088 = vmatpush2.msra.mxu0 0.0
  %2089 = vmatprep.subr.mxu0 0.0
  %2090 = vmatpush2.msra.mxu0 0.0
  %2091 = vmatprep.subr.mxu0 0.0
  %2092 = vmatpush2.msra.mxu0 0.0
  %2093 = vmatprep.subr.mxu0 0.0
  %2094 = vmatpush2.msra.mxu0 0.0
  %2095 = vmatprep.subr.mxu0 0.0
  %2096 = vmatpush2.msra.mxu0 0.0
  %2097 = vmatprep.subr.mxu0 0.0
  %2098 = vmatpush2.msra.mxu0 0.0
  %2099 = vmatprep.subr.mxu0 0.0
  %2100 = vmatpush2.msra.mxu0 0.0
  %2101 = vmatprep.subr.mxu0 0.0
  %2102 = vmatpush2.msra.mxu0 0.0
  %2103 = vmatprep.subr.mxu0 0.0
  %2104 = vmatpush2.msra.mxu0 0.0
  %2105 = vmatprep.subr.mxu0 0.0
  %2106 = vmatpush2.msra.mxu0 0.0
  %2107 = vmatprep.subr.mxu0 0.0
  %2108 = vmatpush2.msra.mxu0 0.0
  %2109 = vmatprep.subr.mxu0 0.0
  %2110 = vmatpush2.msra.mxu0 0.0
  %2111 = vmatprep.subr.mxu0 0.0
  %2112 = vmatpush2.msra.mxu0 0.0
  %2113 = vmatprep.mubr.f32.mxu0 0.0
  %2114 = vmatmul.mubr.f32.gmra.mxu0 %v1976
  %v2115 = vpop.f32.mrf.mxu0
  %v2116 = vadd.f32 %v1965, %v2115
  %v2117 = vpop.f32.mrf.mxu0
  %v2118 = vadd.f32 %v1969, %v2117
  %2119 = vdwg.mxu0
  %v2120 = vld [vmem:[%s10] sm:$0xff]
  %v2121 = vld [vmem:[%s10 + $0x8] sm:$0xff]
  %v2122 = vld [vmem:[%s10 + $0x10] sm:$0xff]
  %v2123 = vld [vmem:[%s10 + $0x18] sm:$0xff]
  %v2124 = vld [vmem:[%s10 + $0x20] sm:$0xff]
  %v2125 = vld [vmem:[%s10 + $0x28] sm:$0xff]
  %v2126 = vld [vmem:[%s10 + $0x30] sm:$0xff]
  %v2127 = vld [vmem:[%s10 + $0x38] sm:$0xff]
  %v2128 = vld [vmem:[%s10 + $0x40] sm:$0xff]
  %v2129 = vld [vmem:[%s10 + $0x48] sm:$0xff]
  %v2130 = vld [vmem:[%s10 + $0x50] sm:$0xff]
  %v2131 = vld [vmem:[%s10 + $0x58] sm:$0xff]
  %v2132 = vld [vmem:[%s10 + $0x60] sm:$0xff]
  %v2133 = vld [vmem:[%s10 + $0x68] sm:$0xff]
  %v2134 = vld [vmem:[%s10 + $0x70] sm:$0xff]
  %v2135 = vld [vmem:[%s10 + $0x78] sm:$0xff]
  %v2136 = vld [vmem:[%s10 + $0x80] sm:$0xff]
  %v2137 = vld [vmem:[%s10 + $0x88] sm:$0xff]
  %v2138 = vld [vmem:[%s10 + $0x90] sm:$0xff]
  %v2139 = vld [vmem:[%s10 + $0x98] sm:$0xff]
  %v2140 = vld [vmem:[%s10 + $0xa0] sm:$0xff]
  %v2141 = vld [vmem:[%s10 + $0xa8] sm:$0xff]
  %v2142 = vld [vmem:[%s10 + $0xb0] sm:$0xff]
  %v2143 = vld [vmem:[%s10 + $0xb8] sm:$0xff]
  %v2144 = vld [vmem:[%s10 + $0xc0] sm:$0xff]
  %v2145 = vld [vmem:[%s10 + $0xc8] sm:$0xff]
  %v2146 = vld [vmem:[%s10 + $0xd0] sm:$0xff]
  %v2147 = vld [vmem:[%s10 + $0xd8] sm:$0xff]
  %v2148 = vld [vmem:[%s10 + $0xe0] sm:$0xff]
  %v2149 = vld [vmem:[%s10 + $0xe8] sm:$0xff]
  %v2150 = vld [vmem:[%s10 + $0xf0] sm:$0xff]
  %v2151 = vld [vmem:[%s10 + $0xf8] sm:$0xff]
  %v2152 = vld [vmem:[%s10 + $0x100] sm:$0xff]
  %v2153 = vld [vmem:[%s10 + $0x108] sm:$0xff]
  %v2154 = vld [vmem:[%s10 + $0x110] sm:$0xff]
  %v2155 = vld [vmem:[%s10 + $0x118] sm:$0xff]
  %v2156 = vld [vmem:[%s10 + $0x120] sm:$0xff]
  %v2157 = vld [vmem:[%s10 + $0x128] sm:$0xff]
  %v2158 = vld [vmem:[%s10 + $0x130] sm:$0xff]
  %v2159 = vld [vmem:[%s10 + $0x138] sm:$0xff]
  %v2160 = vld [vmem:[%s10 + $0x140] sm:$0xff]
  %v2161 = vld [vmem:[%s10 + $0x148] sm:$0xff]
  %v2162 = vld [vmem:[%s10 + $0x150] sm:$0xff]
  %v2163 = vld [vmem:[%s10 + $0x158] sm:$0xff]
  %v2164 = vld [vmem:[%s10 + $0x160] sm:$0xff]
  %v2165 = vld [vmem:[%s10 + $0x168] sm:$0xff]
  %v2166 = vld [vmem:[%s10 + $0x170] sm:$0xff]
  %v2167 = vld [vmem:[%s10 + $0x178] sm:$0xff]
  %v2168 = vld [vmem:[%s10 + $0x180] sm:$0xff]
  %v2169 = vld [vmem:[%s10 + $0x188] sm:$0xff]
  %v2170 = vld [vmem:[%s10 + $0x190] sm:$0xff]
  %v2171 = vld [vmem:[%s10 + $0x198] sm:$0xff]
  %v2172 = vld [vmem:[%s10 + $0x1a0] sm:$0xff]
  %v2173 = vld [vmem:[%s10 + $0x1a8] sm:$0xff]
  %v2174 = vld [vmem:[%s10 + $0x1b0] sm:$0xff]
  %v2175 = vld [vmem:[%s10 + $0x1b8] sm:$0xff]
  %v2176 = vld [vmem:[%s10 + $0x1c0] sm:$0xff]
  %v2177 = vld [vmem:[%s10 + $0x1c8] sm:$0xff]
  %v2178 = vld [vmem:[%s10 + $0x1d0] sm:$0xff]
  %v2179 = vld [vmem:[%s10 + $0x1d8] sm:$0xff]
  %v2180 = vld [vmem:[%s10 + $0x1e0] sm:$0xff]
  %v2181 = vld [vmem:[%s10 + $0x1e8] sm:$0xff]
  %v2182 = vld [vmem:[%s10 + $0x1f0] sm:$0xff]
  %v2183 = vld [vmem:[%s10 + $0x1f8] sm:$0xff]
  %v2184 = vld [vmem:[%s10 + $0x200] sm:$0xff]
  %v2185 = vld [vmem:[%s10 + $0x208] sm:$0xff]
  %v2186 = vld [vmem:[%s10 + $0x210] sm:$0xff]
  %v2187 = vld [vmem:[%s10 + $0x218] sm:$0xff]
  %v2188 = vld [vmem:[%s10 + $0x220] sm:$0xff]
  %v2189 = vld [vmem:[%s10 + $0x228] sm:$0xff]
  %v2190 = vld [vmem:[%s10 + $0x230] sm:$0xff]
  %v2191 = vld [vmem:[%s10 + $0x238] sm:$0xff]
  %v2192 = vld [vmem:[%s10 + $0x240] sm:$0xff]
  %v2193 = vld [vmem:[%s10 + $0x248] sm:$0xff]
  %v2194 = vld [vmem:[%s10 + $0x250] sm:$0xff]
  %v2195 = vld [vmem:[%s10 + $0x258] sm:$0xff]
  %v2196 = vld [vmem:[%s10 + $0x260] sm:$0xff]
  %v2197 = vld [vmem:[%s10 + $0x268] sm:$0xff]
  %v2198 = vld [vmem:[%s10 + $0x270] sm:$0xff]
  %v2199 = vld [vmem:[%s10 + $0x278] sm:$0xff]
  %v2200 = vld [vmem:[%s10 + $0x280] sm:$0xff]
  %v2201 = vld [vmem:[%s10 + $0x288] sm:$0xff]
  %v2202 = vld [vmem:[%s10 + $0x290] sm:$0xff]
  %v2203 = vld [vmem:[%s10 + $0x298] sm:$0xff]
  %v2204 = vld [vmem:[%s10 + $0x2a0] sm:$0xff]
  %v2205 = vld [vmem:[%s10 + $0x2a8] sm:$0xff]
  %v2206 = vld [vmem:[%s10 + $0x2b0] sm:$0xff]
  %v2207 = vld [vmem:[%s10 + $0x2b8] sm:$0xff]
  %v2208 = vld [vmem:[%s10 + $0x2c0] sm:$0xff]
  %v2209 = vld [vmem:[%s10 + $0x2c8] sm:$0xff]
  %v2210 = vld [vmem:[%s10 + $0x2d0] sm:$0xff]
  %v2211 = vld [vmem:[%s10 + $0x2d8] sm:$0xff]
  %v2212 = vld [vmem:[%s10 + $0x2e0] sm:$0xff]
  %v2213 = vld [vmem:[%s10 + $0x2e8] sm:$0xff]
  %v2214 = vld [vmem:[%s10 + $0x2f0] sm:$0xff]
  %v2215 = vld [vmem:[%s10 + $0x2f8] sm:$0xff]
  %v2216 = vld [vmem:[%s10 + $0x300] sm:$0xff]
  %v2217 = vld [vmem:[%s10 + $0x308] sm:$0xff]
  %v2218 = vld [vmem:[%s10 + $0x310] sm:$0xff]
  %v2219 = vld [vmem:[%s10 + $0x318] sm:$0xff]
  %v2220 = vld [vmem:[%s10 + $0x320] sm:$0xff]
  %v2221 = vld [vmem:[%s10 + $0x328] sm:$0xff]
  %v2222 = vld [vmem:[%s10 + $0x330] sm:$0xff]
  %v2223 = vld [vmem:[%s10 + $0x338] sm:$0xff]
  %v2224 = vld [vmem:[%s10 + $0x340] sm:$0xff]
  %v2225 = vld [vmem:[%s10 + $0x348] sm:$0xff]
  %v2226 = vld [vmem:[%s10 + $0x350] sm:$0xff]
  %v2227 = vld [vmem:[%s10 + $0x358] sm:$0xff]
  %v2228 = vld [vmem:[%s10 + $0x360] sm:$0xff]
  %v2229 = vld [vmem:[%s10 + $0x368] sm:$0xff]
  %v2230 = vld [vmem:[%s10 + $0x370] sm:$0xff]
  %v2231 = vld [vmem:[%s10 + $0x378] sm:$0xff]
  %v2232 = vld [vmem:[%s10 + $0x380] sm:$0xff]
  %v2233 = vld [vmem:[%s10 + $0x388] sm:$0xff]
  %v2234 = vld [vmem:[%s10 + $0x390] sm:$0xff]
  %v2235 = vld [vmem:[%s10 + $0x398] sm:$0xff]
  %v2236 = vld [vmem:[%s10 + $0x3a0] sm:$0xff]
  %v2237 = vld [vmem:[%s10 + $0x3a8] sm:$0xff]
  %v2238 = vld [vmem:[%s10 + $0x3b0] sm:$0xff]
  %v2239 = vld [vmem:[%s10 + $0x3b8] sm:$0xff]
  %v2240 = vld [vmem:[%s10 + $0x3c0] sm:$0xff]
  %v2241 = vld [vmem:[%s10 + $0x3c8] sm:$0xff]
  %v2242 = vld [vmem:[%s10 + $0x3d0] sm:$0xff]
  %v2243 = vld [vmem:[%s10 + $0x3d8] sm:$0xff]
  %v2244 = vld [vmem:[%s10 + $0x3e0] sm:$0xff]
  %v2245 = vld [vmem:[%s10 + $0x3e8] sm:$0xff]
  %v2246 = vld [vmem:[%s10 + $0x3f0] sm:$0xff]
  %v2247 = vld [vmem:[%s10 + $0x3f8] sm:$0xff]
  %v2248 = vld [vmem:[%s10 + $0x400] sm:$0xff]
  %v2249 = vld [vmem:[%s10 + $0x408] sm:$0xff]
  %v2250 = vld [vmem:[%s10 + $0x410] sm:$0xff]
  %v2251 = vld [vmem:[%s10 + $0x418] sm:$0xff]
  %v2252 = vld [vmem:[%s10 + $0x420] sm:$0xff]
  %v2253 = vld [vmem:[%s10 + $0x428] sm:$0xff]
  %v2254 = vld [vmem:[%s10 + $0x430] sm:$0xff]
  %v2255 = vld [vmem:[%s10 + $0x438] sm:$0xff]
  %v2256 = vld [vmem:[%s10 + $0x440] sm:$0xff]
  %v2257 = vld [vmem:[%s10 + $0x448] sm:$0xff]
  %v2258 = vld [vmem:[%s10 + $0x450] sm:$0xff]
  %v2259 = vld [vmem:[%s10 + $0x458] sm:$0xff]
  %v2260 = vld [vmem:[%s10 + $0x460] sm:$0xff]
  %v2261 = vld [vmem:[%s10 + $0x468] sm:$0xff]
  %v2262 = vld [vmem:[%s10 + $0x470] sm:$0xff]
  %v2263 = vld [vmem:[%s10 + $0x478] sm:$0xff]
  %v2264 = vld [vmem:[%s10 + $0x480] sm:$0xff]
  %v2265 = vld [vmem:[%s10 + $0x488] sm:$0xff]
  %v2266 = vld [vmem:[%s10 + $0x490] sm:$0xff]
  %v2267 = vld [vmem:[%s10 + $0x498] sm:$0xff]
  %v2268 = vld [vmem:[%s10 + $0x4a0] sm:$0xff]
  %v2269 = vld [vmem:[%s10 + $0x4a8] sm:$0xff]
  %v2270 = vld [vmem:[%s10 + $0x4b0] sm:$0xff]
  %v2271 = vld [vmem:[%s10 + $0x4b8] sm:$0xff]
  %v2272 = vld [vmem:[%s10 + $0x4c0] sm:$0xff]
  %v2273 = vld [vmem:[%s10 + $0x4c8] sm:$0xff]
  %v2274 = vld [vmem:[%s10 + $0x4d0] sm:$0xff]
  %v2275 = vld [vmem:[%s10 + $0x4d8] sm:$0xff]
  %v2276 = vld [vmem:[%s10 + $0x4e0] sm:$0xff]
  %v2277 = vld [vmem:[%s10 + $0x4e8] sm:$0xff]
  %v2278 = vld [vmem:[%s10 + $0x4f0] sm:$0xff]
  %v2279 = vld [vmem:[%s10 + $0x4f8] sm:$0xff]
  %v2280 = vld [vmem:[%s10 + $0x500] sm:$0xff]
  %v2281 = vld [vmem:[%s10 + $0x508] sm:$0xff]
  %v2282 = vld [vmem:[%s10 + $0x510] sm:$0xff]
  %v2283 = vld [vmem:[%s10 + $0x518] sm:$0xff]
  %v2284 = vld [vmem:[%s10 + $0x520] sm:$0xff]
  %v2285 = vld [vmem:[%s10 + $0x528] sm:$0xff]
  %v2286 = vld [vmem:[%s10 + $0x530] sm:$0xff]
  %v2287 = vld [vmem:[%s10 + $0x538] sm:$0xff]
  %v2288 = vld [vmem:[%s10 + $0x540] sm:$0xff]
  %v2289 = vld [vmem:[%s10 + $0x548] sm:$0xff]
  %v2290 = vld [vmem:[%s10 + $0x550] sm:$0xff]
  %v2291 = vld [vmem:[%s10 + $0x558] sm:$0xff]
  %v2292 = vld [vmem:[%s10 + $0x560] sm:$0xff]
  %v2293 = vld [vmem:[%s10 + $0x568] sm:$0xff]
  %v2294 = vld [vmem:[%s10 + $0x570] sm:$0xff]
  %v2295 = vld [vmem:[%s10 + $0x578] sm:$0xff]
  %v2296 = vld [vmem:[%s10 + $0x580] sm:$0xff]
  %v2297 = vld [vmem:[%s10 + $0x588] sm:$0xff]
  %v2298 = vld [vmem:[%s10 + $0x590] sm:$0xff]
  %v2299 = vld [vmem:[%s10 + $0x598] sm:$0xff]
  %v2300 = vld [vmem:[%s10 + $0x5a0] sm:$0xff]
  %v2301 = vld [vmem:[%s10 + $0x5a8] sm:$0xff]
  %v2302 = vld [vmem:[%s10 + $0x5b0] sm:$0xff]
  %v2303 = vld [vmem:[%s10 + $0x5b8] sm:$0xff]
  %v2304 = vld [vmem:[%s10 + $0x5c0] sm:$0xff]
  %v2305 = vld [vmem:[%s10 + $0x5c8] sm:$0xff]
  %v2306 = vld [vmem:[%s10 + $0x5d0] sm:$0xff]
  %v2307 = vld [vmem:[%s10 + $0x5d8] sm:$0xff]
  %v2308 = vld [vmem:[%s10 + $0x5e0] sm:$0xff]
  %v2309 = vld [vmem:[%s10 + $0x5e8] sm:$0xff]
  %v2310 = vld [vmem:[%s10 + $0x5f0] sm:$0xff]
  %v2311 = vld [vmem:[%s10 + $0x5f8] sm:$0xff]
  %v2312 = vld [vmem:[%s10 + $0x600] sm:$0xff]
  %v2313 = vld [vmem:[%s10 + $0x608] sm:$0xff]
  %v2314 = vld [vmem:[%s10 + $0x610] sm:$0xff]
  %v2315 = vld [vmem:[%s10 + $0x618] sm:$0xff]
  %v2316 = vld [vmem:[%s10 + $0x620] sm:$0xff]
  %v2317 = vld [vmem:[%s10 + $0x628] sm:$0xff]
  %v2318 = vld [vmem:[%s10 + $0x630] sm:$0xff]
  %v2319 = vld [vmem:[%s10 + $0x638] sm:$0xff]
  %v2320 = vld [vmem:[%s10 + $0x640] sm:$0xff]
  %v2321 = vld [vmem:[%s10 + $0x648] sm:$0xff]
  %v2322 = vld [vmem:[%s10 + $0x650] sm:$0xff]
  %v2323 = vld [vmem:[%s10 + $0x658] sm:$0xff]
  %v2324 = vld [vmem:[%s10 + $0x660] sm:$0xff]
  %v2325 = vld [vmem:[%s10 + $0x668] sm:$0xff]
  %v2326 = vld [vmem:[%s10 + $0x670] sm:$0xff]
  %v2327 = vld [vmem:[%s10 + $0x678] sm:$0xff]
  %v2328 = vld [vmem:[%s10 + $0x680] sm:$0xff]
  %v2329 = vld [vmem:[%s10 + $0x688] sm:$0xff]
  %v2330 = vld [vmem:[%s10 + $0x690] sm:$0xff]
  %v2331 = vld [vmem:[%s10 + $0x698] sm:$0xff]
  %v2332 = vld [vmem:[%s10 + $0x6a0] sm:$0xff]
  %v2333 = vld [vmem:[%s10 + $0x6a8] sm:$0xff]
  %v2334 = vld [vmem:[%s10 + $0x6b0] sm:$0xff]
  %v2335 = vld [vmem:[%s10 + $0x6b8] sm:$0xff]
  %v2336 = vld [vmem:[%s10 + $0x6c0] sm:$0xff]
  %v2337 = vld [vmem:[%s10 + $0x6c8] sm:$0xff]
  %v2338 = vld [vmem:[%s10 + $0x6d0] sm:$0xff]
  %v2339 = vld [vmem:[%s10 + $0x6d8] sm:$0xff]
  %v2340 = vld [vmem:[%s10 + $0x6e0] sm:$0xff]
  %v2341 = vld [vmem:[%s10 + $0x6e8] sm:$0xff]
  %v2342 = vld [vmem:[%s10 + $0x6f0] sm:$0xff]
  %v2343 = vld [vmem:[%s10 + $0x6f8] sm:$0xff]
  %v2344 = vld [vmem:[%s10 + $0x700] sm:$0xff]
  %v2345 = vld [vmem:[%s10 + $0x708] sm:$0xff]
  %v2346 = vld [vmem:[%s10 + $0x710] sm:$0xff]
  %v2347 = vld [vmem:[%s10 + $0x718] sm:$0xff]
  %v2348 = vld [vmem:[%s10 + $0x720] sm:$0xff]
  %v2349 = vld [vmem:[%s10 + $0x728] sm:$0xff]
  %v2350 = vld [vmem:[%s10 + $0x730] sm:$0xff]
  %v2351 = vld [vmem:[%s10 + $0x738] sm:$0xff]
  %v2352 = vld [vmem:[%s10 + $0x740] sm:$0xff]
  %v2353 = vld [vmem:[%s10 + $0x748] sm:$0xff]
  %v2354 = vld [vmem:[%s10 + $0x750] sm:$0xff]
  %v2355 = vld [vmem:[%s10 + $0x758] sm:$0xff]
  %v2356 = vld [vmem:[%s10 + $0x760] sm:$0xff]
  %v2357 = vld [vmem:[%s10 + $0x768] sm:$0xff]
  %v2358 = vld [vmem:[%s10 + $0x770] sm:$0xff]
  %v2359 = vld [vmem:[%s10 + $0x778] sm:$0xff]
  %v2360 = vld [vmem:[%s10 + $0x780] sm:$0xff]
  %v2361 = vld [vmem:[%s10 + $0x788] sm:$0xff]
  %v2362 = vld [vmem:[%s10 + $0x790] sm:$0xff]
  %v2363 = vld [vmem:[%s10 + $0x798] sm:$0xff]
  %v2364 = vld [vmem:[%s10 + $0x7a0] sm:$0xff]
  %v2365 = vld [vmem:[%s10 + $0x7a8] sm:$0xff]
  %v2366 = vld [vmem:[%s10 + $0x7b0] sm:$0xff]
  %v2367 = vld [vmem:[%s10 + $0x7b8] sm:$0xff]
  %v2368 = vld [vmem:[%s10 + $0x7c0] sm:$0xff]
  %v2369 = vld [vmem:[%s10 + $0x7c8] sm:$0xff]
  %v2370 = vld [vmem:[%s10 + $0x7d0] sm:$0xff]
  %v2371 = vld [vmem:[%s10 + $0x7d8] sm:$0xff]
  %v2372 = vld [vmem:[%s10 + $0x7e0] sm:$0xff]
  %v2373 = vld [vmem:[%s10 + $0x7e8] sm:$0xff]
  %v2374 = vld [vmem:[%s10 + $0x7f0] sm:$0xff]
  %v2375 = vld [vmem:[%s10 + $0x7f8] sm:$0xff]
  %v2376 = vld [vmem:[%s10 + $0x800] sm:$0xff]
  %v2377 = vld [vmem:[%s10 + $0x808] sm:$0xff]
  %v2378 = vld [vmem:[%s10 + $0x810] sm:$0xff]
  %v2379 = vld [vmem:[%s10 + $0x818] sm:$0xff]
  %v2380 = vld [vmem:[%s10 + $0x820] sm:$0xff]
  %v2381 = vld [vmem:[%s10 + $0x828] sm:$0xff]
  %v2382 = vld [vmem:[%s10 + $0x830] sm:$0xff]
  %v2383 = vld [vmem:[%s10 + $0x838] sm:$0xff]
  %v2384 = vld [vmem:[%s10 + $0x840] sm:$0xff]
  %v2385 = vld [vmem:[%s10 + $0x848] sm:$0xff]
  %v2386 = vld [vmem:[%s10 + $0x850] sm:$0xff]
  %v2387 = vld [vmem:[%s10 + $0x858] sm:$0xff]
  %v2388 = vld [vmem:[%s10 + $0x860] sm:$0xff]
  %v2389 = vld [vmem:[%s10 + $0x868] sm:$0xff]
  %v2390 = vld [vmem:[%s10 + $0x870] sm:$0xff]
  %v2391 = vld [vmem:[%s10 + $0x878] sm:$0xff]
  %v2392 = vld [vmem:[%s10 + $0x880] sm:$0xff]
  %v2393 = vld [vmem:[%s10 + $0x888] sm:$0xff]
  %v2394 = vld [vmem:[%s10 + $0x890] sm:$0xff]
  %v2395 = vld [vmem:[%s10 + $0x898] sm:$0xff]
  %v2396 = vld [vmem:[%s10 + $0x8a0] sm:$0xff]
  %v2397 = vld [vmem:[%s10 + $0x8a8] sm:$0xff]
  %v2398 = vld [vmem:[%s10 + $0x8b0] sm:$0xff]
  %v2399 = vld [vmem:[%s10 + $0x8b8] sm:$0xff]
  %v2400 = vld [vmem:[%s10 + $0x8c0] sm:$0xff]
  %v2401 = vld [vmem:[%s10 + $0x8c8] sm:$0xff]
  %v2402 = vld [vmem:[%s10 + $0x8d0] sm:$0xff]
  %v2403 = vld [vmem:[%s10 + $0x8d8] sm:$0xff]
  %v2404 = vld [vmem:[%s10 + $0x8e0] sm:$0xff]
  %v2405 = vld [vmem:[%s10 + $0x8e8] sm:$0xff]
  %v2406 = vld [vmem:[%s10 + $0x8f0] sm:$0xff]
  %v2407 = vld [vmem:[%s10 + $0x8f8] sm:$0xff]
  %v2408 = vld [vmem:[%s10 + $0x900] sm:$0xff]
  %v2409 = vld [vmem:[%s10 + $0x908] sm:$0xff]
  %v2410 = vld [vmem:[%s10 + $0x910] sm:$0xff]
  %v2411 = vld [vmem:[%s10 + $0x918] sm:$0xff]
  %v2412 = vld [vmem:[%s10 + $0x920] sm:$0xff]
  %v2413 = vld [vmem:[%s10 + $0x928] sm:$0xff]
  %v2414 = vld [vmem:[%s10 + $0x930] sm:$0xff]
  %v2415 = vld [vmem:[%s10 + $0x938] sm:$0xff]
  %v2416 = vld [vmem:[%s10 + $0x940] sm:$0xff]
  %v2417 = vld [vmem:[%s10 + $0x948] sm:$0xff]
  %v2418 = vld [vmem:[%s10 + $0x950] sm:$0xff]
  %v2419 = vld [vmem:[%s10 + $0x958] sm:$0xff]
  %v2420 = vld [vmem:[%s10 + $0x960] sm:$0xff]
  %v2421 = vld [vmem:[%s10 + $0x968] sm:$0xff]
  %v2422 = vld [vmem:[%s10 + $0x970] sm:$0xff]
  %v2423 = vld [vmem:[%s10 + $0x978] sm:$0xff]
  %v2424 = vld [vmem:[%s10 + $0x980] sm:$0xff]
  %v2425 = vld [vmem:[%s10 + $0x988] sm:$0xff]
  %v2426 = vld [vmem:[%s10 + $0x990] sm:$0xff]
  %v2427 = vld [vmem:[%s10 + $0x998] sm:$0xff]
  %v2428 = vld [vmem:[%s10 + $0x9a0] sm:$0xff]
  %v2429 = vld [vmem:[%s10 + $0x9a8] sm:$0xff]
  %v2430 = vld [vmem:[%s10 + $0x9b0] sm:$0xff]
  %v2431 = vld [vmem:[%s10 + $0x9b8] sm:$0xff]
  %v2432 = vld [vmem:[%s10 + $0x9c0] sm:$0xff]
  %v2433 = vld [vmem:[%s10 + $0x9c8] sm:$0xff]
  %v2434 = vld [vmem:[%s10 + $0x9d0] sm:$0xff]
  %v2435 = vld [vmem:[%s10 + $0x9d8] sm:$0xff]
  %v2436 = vld [vmem:[%s10 + $0x9e0] sm:$0xff]
  %v2437 = vld [vmem:[%s10 + $0x9e8] sm:$0xff]
  %v2438 = vld [vmem:[%s10 + $0x9f0] sm:$0xff]
  %v2439 = vld [vmem:[%s10 + $0x9f8] sm:$0xff]
  %v2440 = vld [vmem:[%s10 + $0xa00] sm:$0xff]
  %v2441 = vld [vmem:[%s10 + $0xa08] sm:$0xff]
  %v2442 = vld [vmem:[%s10 + $0xa10] sm:$0xff]
  %v2443 = vld [vmem:[%s10 + $0xa18] sm:$0xff]
  %v2444 = vld [vmem:[%s10 + $0xa20] sm:$0xff]
  %v2445 = vld [vmem:[%s10 + $0xa28] sm:$0xff]
  %v2446 = vld [vmem:[%s10 + $0xa30] sm:$0xff]
  %v2447 = vld [vmem:[%s10 + $0xa38] sm:$0xff]
  %v2448 = vld [vmem:[%s10 + $0xa40] sm:$0xff]
  %v2449 = vld [vmem:[%s10 + $0xa48] sm:$0xff]
  %v2450 = vld [vmem:[%s10 + $0xa50] sm:$0xff]
  %v2451 = vld [vmem:[%s10 + $0xa58] sm:$0xff]
  %v2452 = vld [vmem:[%s10 + $0xa60] sm:$0xff]
  %v2453 = vld [vmem:[%s10 + $0xa68] sm:$0xff]
  %v2454 = vld [vmem:[%s10 + $0xa70] sm:$0xff]
  %v2455 = vld [vmem:[%s10 + $0xa78] sm:$0xff]
  %v2456 = vld [vmem:[%s10 + $0xa80] sm:$0xff]
  %v2457 = vld [vmem:[%s10 + $0xa88] sm:$0xff]
  %v2458 = vld [vmem:[%s10 + $0xa90] sm:$0xff]
  %v2459 = vld [vmem:[%s10 + $0xa98] sm:$0xff]
  %v2460 = vld [vmem:[%s10 + $0xaa0] sm:$0xff]
  %v2461 = vld [vmem:[%s10 + $0xaa8] sm:$0xff]
  %v2462 = vld [vmem:[%s10 + $0xab0] sm:$0xff]
  %v2463 = vld [vmem:[%s10 + $0xab8] sm:$0xff]
  %v2464 = vld [vmem:[%s10 + $0xac0] sm:$0xff]
  %v2465 = vld [vmem:[%s10 + $0xac8] sm:$0xff]
  %v2466 = vld [vmem:[%s10 + $0xad0] sm:$0xff]
  %v2467 = vld [vmem:[%s10 + $0xad8] sm:$0xff]
  %v2468 = vld [vmem:[%s10 + $0xae0] sm:$0xff]
  %v2469 = vld [vmem:[%s10 + $0xae8] sm:$0xff]
  %v2470 = vld [vmem:[%s10 + $0xaf0] sm:$0xff]
  %v2471 = vld [vmem:[%s10 + $0xaf8] sm:$0xff]
  %v2472 = vld [vmem:[%s10 + $0xb00] sm:$0xff]
  %v2473 = vld [vmem:[%s10 + $0xb08] sm:$0xff]
  %v2474 = vld [vmem:[%s10 + $0xb10] sm:$0xff]
  %v2475 = vld [vmem:[%s10 + $0xb18] sm:$0xff]
  %v2476 = vld [vmem:[%s10 + $0xb20] sm:$0xff]
  %v2477 = vld [vmem:[%s10 + $0xb28] sm:$0xff]
  %v2478 = vld [vmem:[%s10 + $0xb30] sm:$0xff]
  %v2479 = vld [vmem:[%s10 + $0xb38] sm:$0xff]
  %v2480 = vld [vmem:[%s10 + $0xb40] sm:$0xff]
  %v2481 = vld [vmem:[%s10 + $0xb48] sm:$0xff]
  %v2482 = vld [vmem:[%s10 + $0xb50] sm:$0xff]
  %v2483 = vld [vmem:[%s10 + $0xb58] sm:$0xff]
  %v2484 = vld [vmem:[%s10 + $0xb60] sm:$0xff]
  %v2485 = vld [vmem:[%s10 + $0xb68] sm:$0xff]
  %v2486 = vld [vmem:[%s10 + $0xb70] sm:$0xff]
  %v2487 = vld [vmem:[%s10 + $0xb78] sm:$0xff]
  %v2488 = vld [vmem:[%s10 + $0xb80] sm:$0xff]
  %v2489 = vld [vmem:[%s10 + $0xb88] sm:$0xff]
  %v2490 = vld [vmem:[%s10 + $0xb90] sm:$0xff]
  %v2491 = vld [vmem:[%s10 + $0xb98] sm:$0xff]
  %v2492 = vld [vmem:[%s10 + $0xba0] sm:$0xff]
  %v2493 = vld [vmem:[%s10 + $0xba8] sm:$0xff]
  %v2494 = vld [vmem:[%s10 + $0xbb0] sm:$0xff]
  %v2495 = vld [vmem:[%s10 + $0xbb8] sm:$0xff]
  %v2496 = vld [vmem:[%s10 + $0xbc0] sm:$0xff]
  %v2497 = vld [vmem:[%s10 + $0xbc8] sm:$0xff]
  %v2498 = vld [vmem:[%s10 + $0xbd0] sm:$0xff]
  %v2499 = vld [vmem:[%s10 + $0xbd8] sm:$0xff]
  %v2500 = vld [vmem:[%s10 + $0xbe0] sm:$0xff]
  %v2501 = vld [vmem:[%s10 + $0xbe8] sm:$0xff]
  %v2502 = vld [vmem:[%s10 + $0xbf0] sm:$0xff]
  %v2503 = vld [vmem:[%s10 + $0xbf8] sm:$0xff]
  %v2504 = vld [vmem:[%s10 + $0xc00] sm:$0xff]
  %v2505 = vld [vmem:[%s10 + $0xc08] sm:$0xff]
  %v2506 = vld [vmem:[%s10 + $0xc10] sm:$0xff]
  %v2507 = vld [vmem:[%s10 + $0xc18] sm:$0xff]
  %v2508 = vld [vmem:[%s10 + $0xc20] sm:$0xff]
  %v2509 = vld [vmem:[%s10 + $0xc28] sm:$0xff]
  %v2510 = vld [vmem:[%s10 + $0xc30] sm:$0xff]
  %v2511 = vld [vmem:[%s10 + $0xc38] sm:$0xff]
  %v2512 = vld [vmem:[%s10 + $0xc40] sm:$0xff]
  %v2513 = vld [vmem:[%s10 + $0xc48] sm:$0xff]
  %v2514 = vld [vmem:[%s10 + $0xc50] sm:$0xff]
  %v2515 = vld [vmem:[%s10 + $0xc58] sm:$0xff]
  %v2516 = vld [vmem:[%s10 + $0xc60] sm:$0xff]
  %v2517 = vld [vmem:[%s10 + $0xc68] sm:$0xff]
  %v2518 = vld [vmem:[%s10 + $0xc70] sm:$0xff]
  %v2519 = vld [vmem:[%s10 + $0xc78] sm:$0xff]
  %v2520 = vld [vmem:[%s10 + $0xc80] sm:$0xff]
  %v2521 = vld [vmem:[%s10 + $0xc88] sm:$0xff]
  %v2522 = vld [vmem:[%s10 + $0xc90] sm:$0xff]
  %v2523 = vld [vmem:[%s10 + $0xc98] sm:$0xff]
  %v2524 = vld [vmem:[%s10 + $0xca0] sm:$0xff]
  %v2525 = vld [vmem:[%s10 + $0xca8] sm:$0xff]
  %v2526 = vld [vmem:[%s10 + $0xcb0] sm:$0xff]
  %v2527 = vld [vmem:[%s10 + $0xcb8] sm:$0xff]
  %v2528 = vld [vmem:[%s10 + $0xcc0] sm:$0xff]
  %v2529 = vld [vmem:[%s10 + $0xcc8] sm:$0xff]
  %v2530 = vld [vmem:[%s10 + $0xcd0] sm:$0xff]
  %v2531 = vld [vmem:[%s10 + $0xcd8] sm:$0xff]
  %v2532 = vld [vmem:[%s10 + $0xce0] sm:$0xff]
  %v2533 = vld [vmem:[%s10 + $0xce8] sm:$0xff]
  %v2534 = vld [vmem:[%s10 + $0xcf0] sm:$0xff]
  %v2535 = vld [vmem:[%s10 + $0xcf8] sm:$0xff]
  %v2536 = vld [vmem:[%s10 + $0xd00] sm:$0xff]
  %v2537 = vld [vmem:[%s10 + $0xd08] sm:$0xff]
  %v2538 = vld [vmem:[%s10 + $0xd10] sm:$0xff]
  %v2539 = vld [vmem:[%s10 + $0xd18] sm:$0xff]
  %v2540 = vld [vmem:[%s10 + $0xd20] sm:$0xff]
  %v2541 = vld [vmem:[%s10 + $0xd28] sm:$0xff]
  %v2542 = vld [vmem:[%s10 + $0xd30] sm:$0xff]
  %v2543 = vld [vmem:[%s10 + $0xd38] sm:$0xff]
  %v2544 = vld [vmem:[%s10 + $0xd40] sm:$0xff]
  %v2545 = vld [vmem:[%s10 + $0xd48] sm:$0xff]
  %v2546 = vld [vmem:[%s10 + $0xd50] sm:$0xff]
  %v2547 = vld [vmem:[%s10 + $0xd58] sm:$0xff]
  %v2548 = vld [vmem:[%s10 + $0xd60] sm:$0xff]
  %v2549 = vld [vmem:[%s10 + $0xd68] sm:$0xff]
  %v2550 = vld [vmem:[%s10 + $0xd70] sm:$0xff]
  %v2551 = vld [vmem:[%s10 + $0xd78] sm:$0xff]
  %v2552 = vld [vmem:[%s10 + $0xd80] sm:$0xff]
  %v2553 = vld [vmem:[%s10 + $0xd88] sm:$0xff]
  %v2554 = vld [vmem:[%s10 + $0xd90] sm:$0xff]
  %v2555 = vld [vmem:[%s10 + $0xd98] sm:$0xff]
  %v2556 = vld [vmem:[%s10 + $0xda0] sm:$0xff]
  %v2557 = vld [vmem:[%s10 + $0xda8] sm:$0xff]
  %v2558 = vld [vmem:[%s10 + $0xdb0] sm:$0xff]
  %v2559 = vld [vmem:[%s10 + $0xdb8] sm:$0xff]
  %v2560 = vld [vmem:[%s10 + $0xdc0] sm:$0xff]
  %v2561 = vld [vmem:[%s10 + $0xdc8] sm:$0xff]
  %v2562 = vld [vmem:[%s10 + $0xdd0] sm:$0xff]
  %v2563 = vld [vmem:[%s10 + $0xdd8] sm:$0xff]
  %v2564 = vld [vmem:[%s10 + $0xde0] sm:$0xff]
  %v2565 = vld [vmem:[%s10 + $0xde8] sm:$0xff]
  %v2566 = vld [vmem:[%s10 + $0xdf0] sm:$0xff]
  %v2567 = vld [vmem:[%s10 + $0xdf8] sm:$0xff]
  %v2568 = vld [vmem:[%s10 + $0xe00] sm:$0xff]
  %v2569 = vld [vmem:[%s10 + $0xe08] sm:$0xff]
  %v2570 = vld [vmem:[%s10 + $0xe10] sm:$0xff]
  %v2571 = vld [vmem:[%s10 + $0xe18] sm:$0xff]
  %v2572 = vld [vmem:[%s10 + $0xe20] sm:$0xff]
  %v2573 = vld [vmem:[%s10 + $0xe28] sm:$0xff]
  %v2574 = vld [vmem:[%s10 + $0xe30] sm:$0xff]
  %v2575 = vld [vmem:[%s10 + $0xe38] sm:$0xff]
  %v2576 = vld [vmem:[%s10 + $0xe40] sm:$0xff]
  %v2577 = vld [vmem:[%s10 + $0xe48] sm:$0xff]
  %v2578 = vld [vmem:[%s10 + $0xe50] sm:$0xff]
  %v2579 = vld [vmem:[%s10 + $0xe58] sm:$0xff]
  %v2580 = vld [vmem:[%s10 + $0xe60] sm:$0xff]
  %v2581 = vld [vmem:[%s10 + $0xe68] sm:$0xff]
  %v2582 = vld [vmem:[%s10 + $0xe70] sm:$0xff]
  %v2583 = vld [vmem:[%s10 + $0xe78] sm:$0xff]
  %v2584 = vld [vmem:[%s10 + $0xe80] sm:$0xff]
  %v2585 = vld [vmem:[%s10 + $0xe88] sm:$0xff]
  %v2586 = vld [vmem:[%s10 + $0xe90] sm:$0xff]
  %v2587 = vld [vmem:[%s10 + $0xe98] sm:$0xff]
  %v2588 = vld [vmem:[%s10 + $0xea0] sm:$0xff]
  %v2589 = vld [vmem:[%s10 + $0xea8] sm:$0xff]
  %v2590 = vld [vmem:[%s10 + $0xeb0] sm:$0xff]
  %v2591 = vld [vmem:[%s10 + $0xeb8] sm:$0xff]
  %v2592 = vld [vmem:[%s10 + $0xec0] sm:$0xff]
  %v2593 = vld [vmem:[%s10 + $0xec8] sm:$0xff]
  %v2594 = vld [vmem:[%s10 + $0xed0] sm:$0xff]
  %v2595 = vld [vmem:[%s10 + $0xed8] sm:$0xff]
  %v2596 = vld [vmem:[%s10 + $0xee0] sm:$0xff]
  %v2597 = vld [vmem:[%s10 + $0xee8] sm:$0xff]
  %v2598 = vld [vmem:[%s10 + $0xef0] sm:$0xff]
  %v2599 = vld [vmem:[%s10 + $0xef8] sm:$0xff]
  %v2600 = vld [vmem:[%s10 + $0xf00] sm:$0xff]
  %v2601 = vld [vmem:[%s10 + $0xf08] sm:$0xff]
  %v2602 = vld [vmem:[%s10 + $0xf10] sm:$0xff]
  %v2603 = vld [vmem:[%s10 + $0xf18] sm:$0xff]
  %v2604 = vld [vmem:[%s10 + $0xf20] sm:$0xff]
  %v2605 = vld [vmem:[%s10 + $0xf28] sm:$0xff]
  %v2606 = vld [vmem:[%s10 + $0xf30] sm:$0xff]
  %v2607 = vld [vmem:[%s10 + $0xf38] sm:$0xff]
  %v2608 = vld [vmem:[%s10 + $0xf40] sm:$0x3]
  %v2609 = vld [vmem:[%s10 + $0xf48] sm:$0x3]
  %v2610 = vld [vmem:[%s10 + $0xf50] sm:$0x3]
  %v2611 = vld [vmem:[%s10 + $0xf58] sm:$0x3]
  %v2612 = vld [vmem:[%s10 + $0xf60] sm:$0x3]
  %v2613 = vld [vmem:[%s10 + $0xf68] sm:$0x3]
  %v2614 = vld [vmem:[%s10 + $0xf70] sm:$0x3]
  %v2615 = vld [vmem:[%s10 + $0xf78] sm:$0x3]
  %v2616 = vld [vmem:[%s11] sm:$0xff]
  %v2618 = vlaneseq
  %v2619 = vshrl.u32 %v2618, 7
  %v2620 = vsub.s32 0, %v2619
  %v2621 = vrot.slane %v2616, %v2620
  %v2622 = vlaneseq
  %v2623 = vshrl.u32 %v2622, 7
  %v2624 = vsub.s32 1, %v2623
  %v2625 = vrot.slane %v2616, %v2624
  %v2626 = vlaneseq
  %v2627 = vshrl.u32 %v2626, 7
  %v2628 = vsub.s32 2, %v2627
  %v2629 = vrot.slane %v2616, %v2628
  %v2630 = vlaneseq
  %v2631 = vshrl.u32 %v2630, 7
  %v2632 = vsub.s32 3, %v2631
  %v2633 = vrot.slane %v2616, %v2632
  %v2634 = vlaneseq
  %v2635 = vshrl.u32 %v2634, 7
  %v2636 = vsub.s32 4, %v2635
  %v2637 = vrot.slane %v2616, %v2636
  %v2638 = vlaneseq
  %v2639 = vshrl.u32 %v2638, 7
  %v2640 = vsub.s32 5, %v2639
  %v2641 = vrot.slane %v2616, %v2640
  %v2642 = vlaneseq
  %v2643 = vshrl.u32 %v2642, 7
  %v2644 = vsub.s32 6, %v2643
  %v2645 = vrot.slane %v2616, %v2644
  %v2646 = vlaneseq
  %v2647 = vshrl.u32 %v2646, 7
  %v2648 = vsub.s32 7, %v2647
  %v2649 = vrot.slane %v2616, %v2648
  %v2659 = vsel %vm1785, %v2118, 0
  %v2662 = vsel %vm1789, %v2608, 0
  %v2665 = vsel %vm1789, %v2609, 0
  %v2668 = vsel %vm1789, %v2610, 0
  %v2671 = vsel %vm1789, %v2611, 0
  %v2674 = vsel %vm1789, %v2612, 0
  %v2677 = vsel %vm1789, %v2613, 0
  %v2680 = vsel %vm1789, %v2614, 0
  %v2683 = vsel %vm1789, %v2615, 0
  %2685 = vmatprep.subr.mxu0 %v2241
  %2686 = vmatpush1.msra.mxu0 %v2240
  %2687 = vmatprep.subr.mxu0 %v2233
  %2688 = vmatpush1.msra.mxu0 %v2232
  %2689 = vmatprep.subr.mxu0 %v2225
  %2690 = vmatpush1.msra.mxu0 %v2224
  %2691 = vmatprep.subr.mxu0 %v2217
  %2692 = vmatpush1.msra.mxu0 %v2216
  %2693 = vmatprep.subr.mxu0 %v2209
  %2694 = vmatpush1.msra.mxu0 %v2208
  %2695 = vmatprep.subr.mxu0 %v2201
  %2696 = vmatpush1.msra.mxu0 %v2200
  %2697 = vmatprep.subr.mxu0 %v2193
  %2698 = vmatpush1.msra.mxu0 %v2192
  %2699 = vmatprep.subr.mxu0 %v2185
  %2700 = vmatpush1.msra.mxu0 %v2184
  %2701 = vmatprep.subr.mxu0 %v2177
  %2702 = vmatpush1.msra.mxu0 %v2176
  %2703 = vmatprep.subr.mxu0 %v2169
  %2704 = vmatpush1.msra.mxu0 %v2168
  %2705 = vmatprep.subr.mxu0 %v2161
  %2706 = vmatpush1.msra.mxu0 %v2160
  %2707 = vmatprep.subr.mxu0 %v2153
  %2708 = vmatpush1.msra.mxu0 %v2152
  %2709 = vmatprep.subr.mxu0 %v2145
  %2710 = vmatpush1.msra.mxu0 %v2144
  %2711 = vmatprep.subr.mxu0 %v2137
  %2712 = vmatpush1.msra.mxu0 %v2136
  %2713 = vmatprep.subr.mxu0 %v2129
  %2714 = vmatpush1.msra.mxu0 %v2128
  %2715 = vmatprep.subr.mxu0 %v2121
  %2716 = vmatpush1.msra.mxu0 %v2120
  %2717 = vmatprep.subr.mxu0 %v2369
  %2718 = vmatpush2.msra.mxu0 %v2368
  %2719 = vmatprep.subr.mxu0 %v2361
  %2720 = vmatpush2.msra.mxu0 %v2360
  %2721 = vmatprep.subr.mxu0 %v2353
  %2722 = vmatpush2.msra.mxu0 %v2352
  %2723 = vmatprep.subr.mxu0 %v2345
  %2724 = vmatpush2.msra.mxu0 %v2344
  %2725 = vmatprep.subr.mxu0 %v2337
  %2726 = vmatpush2.msra.mxu0 %v2336
  %2727 = vmatprep.subr.mxu0 %v2329
  %2728 = vmatpush2.msra.mxu0 %v2328
  %2729 = vmatprep.subr.mxu0 %v2321
  %2730 = vmatpush2.msra.mxu0 %v2320
  %2731 = vmatprep.subr.mxu0 %v2313
  %2732 = vmatpush2.msra.mxu0 %v2312
  %2733 = vmatprep.subr.mxu0 %v2305
  %2734 = vmatpush2.msra.mxu0 %v2304
  %2735 = vmatprep.subr.mxu0 %v2297
  %2736 = vmatpush2.msra.mxu0 %v2296
  %2737 = vmatprep.subr.mxu0 %v2289
  %2738 = vmatpush2.msra.mxu0 %v2288
  %2739 = vmatprep.subr.mxu0 %v2281
  %2740 = vmatpush2.msra.mxu0 %v2280
  %2741 = vmatprep.subr.mxu0 %v2273
  %2742 = vmatpush2.msra.mxu0 %v2272
  %2743 = vmatprep.subr.mxu0 %v2265
  %2744 = vmatpush2.msra.mxu0 %v2264
  %2745 = vmatprep.subr.mxu0 %v2257
  %2746 = vmatpush2.msra.mxu0 %v2256
  %2747 = vmatprep.subr.mxu0 %v2249
  %2748 = vmatpush2.msra.mxu0 %v2248
  %2749 = vmatprep.mubr.f32.mxu0 %v2047
  %2750 = vmatmul.mubr.f32.gmra.mxu0 %v2045
  %v2751 = vpop.f32.mrf.mxu0
  %v2752 = vadd.f32 %v2621, %v2751
  %v2753 = vpop.f32.mrf.mxu0
  %v2754 = vadd.f32 %v2625, %v2753
  %2755 = vdwg.mxu0
  %2756 = vmatprep.subr.mxu0 %v2497
  %2757 = vmatpush1.msra.mxu0 %v2496
  %2758 = vmatprep.subr.mxu0 %v2489
  %2759 = vmatpush1.msra.mxu0 %v2488
  %2760 = vmatprep.subr.mxu0 %v2481
  %2761 = vmatpush1.msra.mxu0 %v2480
  %2762 = vmatprep.subr.mxu0 %v2473
  %2763 = vmatpush1.msra.mxu0 %v2472
  %2764 = vmatprep.subr.mxu0 %v2465
  %2765 = vmatpush1.msra.mxu0 %v2464
  %2766 = vmatprep.subr.mxu0 %v2457
  %2767 = vmatpush1.msra.mxu0 %v2456
  %2768 = vmatprep.subr.mxu0 %v2449
  %2769 = vmatpush1.msra.mxu0 %v2448
  %2770 = vmatprep.subr.mxu0 %v2441
  %2771 = vmatpush1.msra.mxu0 %v2440
  %2772 = vmatprep.subr.mxu0 %v2433
  %2773 = vmatpush1.msra.mxu0 %v2432
  %2774 = vmatprep.subr.mxu0 %v2425
  %2775 = vmatpush1.msra.mxu0 %v2424
  %2776 = vmatprep.subr.mxu0 %v2417
  %2777 = vmatpush1.msra.mxu0 %v2416
  %2778 = vmatprep.subr.mxu0 %v2409
  %2779 = vmatpush1.msra.mxu0 %v2408
  %2780 = vmatprep.subr.mxu0 %v2401
  %2781 = vmatpush1.msra.mxu0 %v2400
  %2782 = vmatprep.subr.mxu0 %v2393
  %2783 = vmatpush1.msra.mxu0 %v2392
  %2784 = vmatprep.subr.mxu0 %v2385
  %2785 = vmatpush1.msra.mxu0 %v2384
  %2786 = vmatprep.subr.mxu0 %v2377
  %2787 = vmatpush1.msra.mxu0 %v2376
  %2788 = vmatprep.subr.mxu0 0.0
  %2789 = vmatpush2.msra.mxu0 0.0
  %2790 = vmatprep.subr.mxu0 0.0
  %2791 = vmatpush2.msra.mxu0 0.0
  %2792 = vmatprep.subr.mxu0 %v2665
  %2793 = vmatpush2.msra.mxu0 %v2662
  %2794 = vmatprep.subr.mxu0 %v2601
  %2795 = vmatpush2.msra.mxu0 %v2600
  %2796 = vmatprep.subr.mxu0 %v2593
  %2797 = vmatpush2.msra.mxu0 %v2592
  %2798 = vmatprep.subr.mxu0 %v2585
  %2799 = vmatpush2.msra.mxu0 %v2584
  %2800 = vmatprep.subr.mxu0 %v2577
  %2801 = vmatpush2.msra.mxu0 %v2576
  %2802 = vmatprep.subr.mxu0 %v2569
  %2803 = vmatpush2.msra.mxu0 %v2568
  %2804 = vmatprep.subr.mxu0 %v2561
  %2805 = vmatpush2.msra.mxu0 %v2560
  %2806 = vmatprep.subr.mxu0 %v2553
  %2807 = vmatpush2.msra.mxu0 %v2552
  %2808 = vmatprep.subr.mxu0 %v2545
  %2809 = vmatpush2.msra.mxu0 %v2544
  %2810 = vmatprep.subr.mxu0 %v2537
  %2811 = vmatpush2.msra.mxu0 %v2536
  %2812 = vmatprep.subr.mxu0 %v2529
  %2813 = vmatpush2.msra.mxu0 %v2528
  %2814 = vmatprep.subr.mxu0 %v2521
  %2815 = vmatpush2.msra.mxu0 %v2520
  %2816 = vmatprep.subr.mxu0 %v2513
  %2817 = vmatpush2.msra.mxu0 %v2512
  %2818 = vmatprep.subr.mxu0 %v2505
  %2819 = vmatpush2.msra.mxu0 %v2504
  %2820 = vmatprep.mubr.f32.mxu0 %v2659
  %2821 = vmatmul.mubr.f32.gmra.mxu0 %v2116
  %v2822 = vpop.f32.mrf.mxu0
  %v2823 = vadd.f32 %v2752, %v2822
  %v2824 = vpop.f32.mrf.mxu0
  %v2825 = vadd.f32 %v2754, %v2824
  %2826 = vdwg.mxu0
  %2827 = vmatprep.subr.mxu0 %v2243
  %2828 = vmatpush1.msra.mxu0 %v2242
  %2829 = vmatprep.subr.mxu0 %v2235
  %2830 = vmatpush1.msra.mxu0 %v2234
  %2831 = vmatprep.subr.mxu0 %v2227
  %2832 = vmatpush1.msra.mxu0 %v2226
  %2833 = vmatprep.subr.mxu0 %v2219
  %2834 = vmatpush1.msra.mxu0 %v2218
  %2835 = vmatprep.subr.mxu0 %v2211
  %2836 = vmatpush1.msra.mxu0 %v2210
  %2837 = vmatprep.subr.mxu0 %v2203
  %2838 = vmatpush1.msra.mxu0 %v2202
  %2839 = vmatprep.subr.mxu0 %v2195
  %2840 = vmatpush1.msra.mxu0 %v2194
  %2841 = vmatprep.subr.mxu0 %v2187
  %2842 = vmatpush1.msra.mxu0 %v2186
  %2843 = vmatprep.subr.mxu0 %v2179
  %2844 = vmatpush1.msra.mxu0 %v2178
  %2845 = vmatprep.subr.mxu0 %v2171
  %2846 = vmatpush1.msra.mxu0 %v2170
  %2847 = vmatprep.subr.mxu0 %v2163
  %2848 = vmatpush1.msra.mxu0 %v2162
  %2849 = vmatprep.subr.mxu0 %v2155
  %2850 = vmatpush1.msra.mxu0 %v2154
  %2851 = vmatprep.subr.mxu0 %v2147
  %2852 = vmatpush1.msra.mxu0 %v2146
  %2853 = vmatprep.subr.mxu0 %v2139
  %2854 = vmatpush1.msra.mxu0 %v2138
  %2855 = vmatprep.subr.mxu0 %v2131
  %2856 = vmatpush1.msra.mxu0 %v2130
  %2857 = vmatprep.subr.mxu0 %v2123
  %2858 = vmatpush1.msra.mxu0 %v2122
  %2859 = vmatprep.subr.mxu0 %v2371
  %2860 = vmatpush2.msra.mxu0 %v2370
  %2861 = vmatprep.subr.mxu0 %v2363
  %2862 = vmatpush2.msra.mxu0 %v2362
  %2863 = vmatprep.subr.mxu0 %v2355
  %2864 = vmatpush2.msra.mxu0 %v2354
  %2865 = vmatprep.subr.mxu0 %v2347
  %2866 = vmatpush2.msra.mxu0 %v2346
  %2867 = vmatprep.subr.mxu0 %v2339
  %2868 = vmatpush2.msra.mxu0 %v2338
  %2869 = vmatprep.subr.mxu0 %v2331
  %2870 = vmatpush2.msra.mxu0 %v2330
  %2871 = vmatprep.subr.mxu0 %v2323
  %2872 = vmatpush2.msra.mxu0 %v2322
  %2873 = vmatprep.subr.mxu0 %v2315
  %2874 = vmatpush2.msra.mxu0 %v2314
  %2875 = vmatprep.subr.mxu0 %v2307
  %2876 = vmatpush2.msra.mxu0 %v2306
  %2877 = vmatprep.subr.mxu0 %v2299
  %2878 = vmatpush2.msra.mxu0 %v2298
  %2879 = vmatprep.subr.mxu0 %v2291
  %2880 = vmatpush2.msra.mxu0 %v2290
  %2881 = vmatprep.subr.mxu0 %v2283
  %2882 = vmatpush2.msra.mxu0 %v2282
  %2883 = vmatprep.subr.mxu0 %v2275
  %2884 = vmatpush2.msra.mxu0 %v2274
  %2885 = vmatprep.subr.mxu0 %v2267
  %2886 = vmatpush2.msra.mxu0 %v2266
  %2887 = vmatprep.subr.mxu0 %v2259
  %2888 = vmatpush2.msra.mxu0 %v2258
  %2889 = vmatprep.subr.mxu0 %v2251
  %2890 = vmatpush2.msra.mxu0 %v2250
  %2891 = vmatprep.mubr.f32.mxu0 %v2047
  %2892 = vmatmul.mubr.f32.gmra.mxu0 %v2045
  %v2893 = vpop.f32.mrf.mxu0
  %v2894 = vadd.f32 %v2629, %v2893
  %v2895 = vpop.f32.mrf.mxu0
  %v2896 = vadd.f32 %v2633, %v2895
  %2897 = vdwg.mxu0
  %2898 = vmatprep.subr.mxu0 %v2499
  %2899 = vmatpush1.msra.mxu0 %v2498
  %2900 = vmatprep.subr.mxu0 %v2491
  %2901 = vmatpush1.msra.mxu0 %v2490
  %2902 = vmatprep.subr.mxu0 %v2483
  %2903 = vmatpush1.msra.mxu0 %v2482
  %2904 = vmatprep.subr.mxu0 %v2475
  %2905 = vmatpush1.msra.mxu0 %v2474
  %2906 = vmatprep.subr.mxu0 %v2467
  %2907 = vmatpush1.msra.mxu0 %v2466
  %2908 = vmatprep.subr.mxu0 %v2459
  %2909 = vmatpush1.msra.mxu0 %v2458
  %2910 = vmatprep.subr.mxu0 %v2451
  %2911 = vmatpush1.msra.mxu0 %v2450
  %2912 = vmatprep.subr.mxu0 %v2443
  %2913 = vmatpush1.msra.mxu0 %v2442
  %2914 = vmatprep.subr.mxu0 %v2435
  %2915 = vmatpush1.msra.mxu0 %v2434
  %2916 = vmatprep.subr.mxu0 %v2427
  %2917 = vmatpush1.msra.mxu0 %v2426
  %2918 = vmatprep.subr.mxu0 %v2419
  %2919 = vmatpush1.msra.mxu0 %v2418
  %2920 = vmatprep.subr.mxu0 %v2411
  %2921 = vmatpush1.msra.mxu0 %v2410
  %2922 = vmatprep.subr.mxu0 %v2403
  %2923 = vmatpush1.msra.mxu0 %v2402
  %2924 = vmatprep.subr.mxu0 %v2395
  %2925 = vmatpush1.msra.mxu0 %v2394
  %2926 = vmatprep.subr.mxu0 %v2387
  %2927 = vmatpush1.msra.mxu0 %v2386
  %2928 = vmatprep.subr.mxu0 %v2379
  %2929 = vmatpush1.msra.mxu0 %v2378
  %2930 = vmatprep.subr.mxu0 0.0
  %2931 = vmatpush2.msra.mxu0 0.0
  %2932 = vmatprep.subr.mxu0 0.0
  %2933 = vmatpush2.msra.mxu0 0.0
  %2934 = vmatprep.subr.mxu0 %v2671
  %2935 = vmatpush2.msra.mxu0 %v2668
  %2936 = vmatprep.subr.mxu0 %v2603
  %2937 = vmatpush2.msra.mxu0 %v2602
  %2938 = vmatprep.subr.mxu0 %v2595
  %2939 = vmatpush2.msra.mxu0 %v2594
  %2940 = vmatprep.subr.mxu0 %v2587
  %2941 = vmatpush2.msra.mxu0 %v2586
  %2942 = vmatprep.subr.mxu0 %v2579
  %2943 = vmatpush2.msra.mxu0 %v2578
  %2944 = vmatprep.subr.mxu0 %v2571
  %2945 = vmatpush2.msra.mxu0 %v2570
  %2946 = vmatprep.subr.mxu0 %v2563
  %2947 = vmatpush2.msra.mxu0 %v2562
  %2948 = vmatprep.subr.mxu0 %v2555
  %2949 = vmatpush2.msra.mxu0 %v2554
  %2950 = vmatprep.subr.mxu0 %v2547
  %2951 = vmatpush2.msra.mxu0 %v2546
  %2952 = vmatprep.subr.mxu0 %v2539
  %2953 = vmatpush2.msra.mxu0 %v2538
  %2954 = vmatprep.subr.mxu0 %v2531
  %2955 = vmatpush2.msra.mxu0 %v2530
  %2956 = vmatprep.subr.mxu0 %v2523
  %2957 = vmatpush2.msra.mxu0 %v2522
  %2958 = vmatprep.subr.mxu0 %v2515
  %2959 = vmatpush2.msra.mxu0 %v2514
  %2960 = vmatprep.subr.mxu0 %v2507
  %2961 = vmatpush2.msra.mxu0 %v2506
  %2962 = vmatprep.mubr.f32.mxu0 %v2659
  %2963 = vmatmul.mubr.f32.gmra.mxu0 %v2116
  %v2964 = vpop.f32.mrf.mxu0
  %v2965 = vadd.f32 %v2894, %v2964
  %v2966 = vpop.f32.mrf.mxu0
  %v2967 = vadd.f32 %v2896, %v2966
  %2968 = vdwg.mxu0
  %2969 = vmatprep.subr.mxu0 %v2245
  %2970 = vmatpush1.msra.mxu0 %v2244
  %2971 = vmatprep.subr.mxu0 %v2237
  %2972 = vmatpush1.msra.mxu0 %v2236
  %2973 = vmatprep.subr.mxu0 %v2229
  %2974 = vmatpush1.msra.mxu0 %v2228
  %2975 = vmatprep.subr.mxu0 %v2221
  %2976 = vmatpush1.msra.mxu0 %v2220
  %2977 = vmatprep.subr.mxu0 %v2213
  %2978 = vmatpush1.msra.mxu0 %v2212
  %2979 = vmatprep.subr.mxu0 %v2205
  %2980 = vmatpush1.msra.mxu0 %v2204
  %2981 = vmatprep.subr.mxu0 %v2197
  %2982 = vmatpush1.msra.mxu0 %v2196
  %2983 = vmatprep.subr.mxu0 %v2189
  %2984 = vmatpush1.msra.mxu0 %v2188
  %2985 = vmatprep.subr.mxu0 %v2181
  %2986 = vmatpush1.msra.mxu0 %v2180
  %2987 = vmatprep.subr.mxu0 %v2173
  %2988 = vmatpush1.msra.mxu0 %v2172
  %2989 = vmatprep.subr.mxu0 %v2165
  %2990 = vmatpush1.msra.mxu0 %v2164
  %2991 = vmatprep.subr.mxu0 %v2157
  %2992 = vmatpush1.msra.mxu0 %v2156
  %2993 = vmatprep.subr.mxu0 %v2149
  %2994 = vmatpush1.msra.mxu0 %v2148
  %2995 = vmatprep.subr.mxu0 %v2141
  %2996 = vmatpush1.msra.mxu0 %v2140
  %2997 = vmatprep.subr.mxu0 %v2133
  %2998 = vmatpush1.msra.mxu0 %v2132
  %2999 = vmatprep.subr.mxu0 %v2125
  %3000 = vmatpush1.msra.mxu0 %v2124
  %3001 = vmatprep.subr.mxu0 %v2373
  %3002 = vmatpush2.msra.mxu0 %v2372
  %3003 = vmatprep.subr.mxu0 %v2365
  %3004 = vmatpush2.msra.mxu0 %v2364
  %3005 = vmatprep.subr.mxu0 %v2357
  %3006 = vmatpush2.msra.mxu0 %v2356
  %3007 = vmatprep.subr.mxu0 %v2349
  %3008 = vmatpush2.msra.mxu0 %v2348
  %3009 = vmatprep.subr.mxu0 %v2341
  %3010 = vmatpush2.msra.mxu0 %v2340
  %3011 = vmatprep.subr.mxu0 %v2333
  %3012 = vmatpush2.msra.mxu0 %v2332
  %3013 = vmatprep.subr.mxu0 %v2325
  %3014 = vmatpush2.msra.mxu0 %v2324
  %3015 = vmatprep.subr.mxu0 %v2317
  %3016 = vmatpush2.msra.mxu0 %v2316
  %3017 = vmatprep.subr.mxu0 %v2309
  %3018 = vmatpush2.msra.mxu0 %v2308
  %3019 = vmatprep.subr.mxu0 %v2301
  %3020 = vmatpush2.msra.mxu0 %v2300
  %3021 = vmatprep.subr.mxu0 %v2293
  %3022 = vmatpush2.msra.mxu0 %v2292
  %3023 = vmatprep.subr.mxu0 %v2285
  %3024 = vmatpush2.msra.mxu0 %v2284
  %3025 = vmatprep.subr.mxu0 %v2277
  %3026 = vmatpush2.msra.mxu0 %v2276
  %3027 = vmatprep.subr.mxu0 %v2269
  %3028 = vmatpush2.msra.mxu0 %v2268
  %3029 = vmatprep.subr.mxu0 %v2261
  %3030 = vmatpush2.msra.mxu0 %v2260
  %3031 = vmatprep.subr.mxu0 %v2253
  %3032 = vmatpush2.msra.mxu0 %v2252
  %3033 = vmatprep.mubr.f32.mxu0 %v2047
  %3034 = vmatmul.mubr.f32.gmra.mxu0 %v2045
  %v3035 = vpop.f32.mrf.mxu0
  %v3036 = vadd.f32 %v2637, %v3035
  %v3037 = vpop.f32.mrf.mxu0
  %v3038 = vadd.f32 %v2641, %v3037
  %3039 = vdwg.mxu0
  %3040 = vmatprep.subr.mxu0 %v2501
  %3041 = vmatpush1.msra.mxu0 %v2500
  %3042 = vmatprep.subr.mxu0 %v2493
  %3043 = vmatpush1.msra.mxu0 %v2492
  %3044 = vmatprep.subr.mxu0 %v2485
  %3045 = vmatpush1.msra.mxu0 %v2484
  %3046 = vmatprep.subr.mxu0 %v2477
  %3047 = vmatpush1.msra.mxu0 %v2476
  %3048 = vmatprep.subr.mxu0 %v2469
  %3049 = vmatpush1.msra.mxu0 %v2468
  %3050 = vmatprep.subr.mxu0 %v2461
  %3051 = vmatpush1.msra.mxu0 %v2460
  %3052 = vmatprep.subr.mxu0 %v2453
  %3053 = vmatpush1.msra.mxu0 %v2452
  %3054 = vmatprep.subr.mxu0 %v2445
  %3055 = vmatpush1.msra.mxu0 %v2444
  %3056 = vmatprep.subr.mxu0 %v2437
  %3057 = vmatpush1.msra.mxu0 %v2436
  %3058 = vmatprep.subr.mxu0 %v2429
  %3059 = vmatpush1.msra.mxu0 %v2428
  %3060 = vmatprep.subr.mxu0 %v2421
  %3061 = vmatpush1.msra.mxu0 %v2420
  %3062 = vmatprep.subr.mxu0 %v2413
  %3063 = vmatpush1.msra.mxu0 %v2412
  %3064 = vmatprep.subr.mxu0 %v2405
  %3065 = vmatpush1.msra.mxu0 %v2404
  %3066 = vmatprep.subr.mxu0 %v2397
  %3067 = vmatpush1.msra.mxu0 %v2396
  %3068 = vmatprep.subr.mxu0 %v2389
  %3069 = vmatpush1.msra.mxu0 %v2388
  %3070 = vmatprep.subr.mxu0 %v2381
  %3071 = vmatpush1.msra.mxu0 %v2380
  %3072 = vmatprep.subr.mxu0 0.0
  %3073 = vmatpush2.msra.mxu0 0.0
  %3074 = vmatprep.subr.mxu0 0.0
  %3075 = vmatpush2.msra.mxu0 0.0
  %3076 = vmatprep.subr.mxu0 %v2677
  %3077 = vmatpush2.msra.mxu0 %v2674
  %3078 = vmatprep.subr.mxu0 %v2605
  %3079 = vmatpush2.msra.mxu0 %v2604
  %3080 = vmatprep.subr.mxu0 %v2597
  %3081 = vmatpush2.msra.mxu0 %v2596
  %3082 = vmatprep.subr.mxu0 %v2589
  %3083 = vmatpush2.msra.mxu0 %v2588
  %3084 = vmatprep.subr.mxu0 %v2581
  %3085 = vmatpush2.msra.mxu0 %v2580
  %3086 = vmatprep.subr.mxu0 %v2573
  %3087 = vmatpush2.msra.mxu0 %v2572
  %3088 = vmatprep.subr.mxu0 %v2565
  %3089 = vmatpush2.msra.mxu0 %v2564
  %3090 = vmatprep.subr.mxu0 %v2557
  %3091 = vmatpush2.msra.mxu0 %v2556
  %3092 = vmatprep.subr.mxu0 %v2549
  %3093 = vmatpush2.msra.mxu0 %v2548
  %3094 = vmatprep.subr.mxu0 %v2541
  %3095 = vmatpush2.msra.mxu0 %v2540
  %3096 = vmatprep.subr.mxu0 %v2533
  %3097 = vmatpush2.msra.mxu0 %v2532
  %3098 = vmatprep.subr.mxu0 %v2525
  %3099 = vmatpush2.msra.mxu0 %v2524
  %3100 = vmatprep.subr.mxu0 %v2517
  %3101 = vmatpush2.msra.mxu0 %v2516
  %3102 = vmatprep.subr.mxu0 %v2509
  %3103 = vmatpush2.msra.mxu0 %v2508
  %3104 = vmatprep.mubr.f32.mxu0 %v2659
  %3105 = vmatmul.mubr.f32.gmra.mxu0 %v2116
  %v3106 = vpop.f32.mrf.mxu0
  %v3107 = vadd.f32 %v3036, %v3106
  %v3108 = vpop.f32.mrf.mxu0
  %v3109 = vadd.f32 %v3038, %v3108
  %3110 = vdwg.mxu0
  %3111 = vmatprep.subr.mxu0 %v2247
  %3112 = vmatpush1.msra.mxu0 %v2246
  %3113 = vmatprep.subr.mxu0 %v2239
  %3114 = vmatpush1.msra.mxu0 %v2238
  %3115 = vmatprep.subr.mxu0 %v2231
  %3116 = vmatpush1.msra.mxu0 %v2230
  %3117 = vmatprep.subr.mxu0 %v2223
  %3118 = vmatpush1.msra.mxu0 %v2222
  %3119 = vmatprep.subr.mxu0 %v2215
  %3120 = vmatpush1.msra.mxu0 %v2214
  %3121 = vmatprep.subr.mxu0 %v2207
  %3122 = vmatpush1.msra.mxu0 %v2206
  %3123 = vmatprep.subr.mxu0 %v2199
  %3124 = vmatpush1.msra.mxu0 %v2198
  %3125 = vmatprep.subr.mxu0 %v2191
  %3126 = vmatpush1.msra.mxu0 %v2190
  %3127 = vmatprep.subr.mxu0 %v2183
  %3128 = vmatpush1.msra.mxu0 %v2182
  %3129 = vmatprep.subr.mxu0 %v2175
  %3130 = vmatpush1.msra.mxu0 %v2174
  %3131 = vmatprep.subr.mxu0 %v2167
  %3132 = vmatpush1.msra.mxu0 %v2166
  %3133 = vmatprep.subr.mxu0 %v2159
  %3134 = vmatpush1.msra.mxu0 %v2158
  %3135 = vmatprep.subr.mxu0 %v2151
  %3136 = vmatpush1.msra.mxu0 %v2150
  %3137 = vmatprep.subr.mxu0 %v2143
  %3138 = vmatpush1.msra.mxu0 %v2142
  %3139 = vmatprep.subr.mxu0 %v2135
  %3140 = vmatpush1.msra.mxu0 %v2134
  %3141 = vmatprep.subr.mxu0 %v2127
  %3142 = vmatpush1.msra.mxu0 %v2126
  %3143 = vmatprep.subr.mxu0 %v2375
  %3144 = vmatpush2.msra.mxu0 %v2374
  %3145 = vmatprep.subr.mxu0 %v2367
  %3146 = vmatpush2.msra.mxu0 %v2366
  %3147 = vmatprep.subr.mxu0 %v2359
  %3148 = vmatpush2.msra.mxu0 %v2358
  %3149 = vmatprep.subr.mxu0 %v2351
  %3150 = vmatpush2.msra.mxu0 %v2350
  %3151 = vmatprep.subr.mxu0 %v2343
  %3152 = vmatpush2.msra.mxu0 %v2342
  %3153 = vmatprep.subr.mxu0 %v2335
  %3154 = vmatpush2.msra.mxu0 %v2334
  %3155 = vmatprep.subr.mxu0 %v2327
  %3156 = vmatpush2.msra.mxu0 %v2326
  %3157 = vmatprep.subr.mxu0 %v2319
  %3158 = vmatpush2.msra.mxu0 %v2318
  %3159 = vmatprep.subr.mxu0 %v2311
  %3160 = vmatpush2.msra.mxu0 %v2310
  %3161 = vmatprep.subr.mxu0 %v2303
  %3162 = vmatpush2.msra.mxu0 %v2302
  %3163 = vmatprep.subr.mxu0 %v2295
  %3164 = vmatpush2.msra.mxu0 %v2294
  %3165 = vmatprep.subr.mxu0 %v2287
  %3166 = vmatpush2.msra.mxu0 %v2286
  %3167 = vmatprep.subr.mxu0 %v2279
  %3168 = vmatpush2.msra.mxu0 %v2278
  %3169 = vmatprep.subr.mxu0 %v2271
  %3170 = vmatpush2.msra.mxu0 %v2270
  %3171 = vmatprep.subr.mxu0 %v2263
  %3172 = vmatpush2.msra.mxu0 %v2262
  %3173 = vmatprep.subr.mxu0 %v2255
  %3174 = vmatpush2.msra.mxu0 %v2254
  %3175 = vmatprep.mubr.f32.mxu0 %v2047
  %3176 = vmatmul.mubr.f32.gmra.mxu0 %v2045
  %v3177 = vpop.f32.mrf.mxu0
  %v3178 = vadd.f32 %v2645, %v3177
  %v3179 = vpop.f32.mrf.mxu0
  %v3180 = vadd.f32 %v2649, %v3179
  %3181 = vdwg.mxu0
  %3182 = vmatprep.subr.mxu0 %v2503
  %3183 = vmatpush1.msra.mxu0 %v2502
  %3184 = vmatprep.subr.mxu0 %v2495
  %3185 = vmatpush1.msra.mxu0 %v2494
  %3186 = vmatprep.subr.mxu0 %v2487
  %3187 = vmatpush1.msra.mxu0 %v2486
  %3188 = vmatprep.subr.mxu0 %v2479
  %3189 = vmatpush1.msra.mxu0 %v2478
  %3190 = vmatprep.subr.mxu0 %v2471
  %3191 = vmatpush1.msra.mxu0 %v2470
  %3192 = vmatprep.subr.mxu0 %v2463
  %3193 = vmatpush1.msra.mxu0 %v2462
  %3194 = vmatprep.subr.mxu0 %v2455
  %3195 = vmatpush1.msra.mxu0 %v2454
  %3196 = vmatprep.subr.mxu0 %v2447
  %3197 = vmatpush1.msra.mxu0 %v2446
  %3198 = vmatprep.subr.mxu0 %v2439
  %3199 = vmatpush1.msra.mxu0 %v2438
  %3200 = vmatprep.subr.mxu0 %v2431
  %3201 = vmatpush1.msra.mxu0 %v2430
  %3202 = vmatprep.subr.mxu0 %v2423
  %3203 = vmatpush1.msra.mxu0 %v2422
  %3204 = vmatprep.subr.mxu0 %v2415
  %3205 = vmatpush1.msra.mxu0 %v2414
  %3206 = vmatprep.subr.mxu0 %v2407
  %3207 = vmatpush1.msra.mxu0 %v2406
  %3208 = vmatprep.subr.mxu0 %v2399
  %3209 = vmatpush1.msra.mxu0 %v2398
  %3210 = vmatprep.subr.mxu0 %v2391
  %3211 = vmatpush1.msra.mxu0 %v2390
  %3212 = vmatprep.subr.mxu0 %v2383
  %3213 = vmatpush1.msra.mxu0 %v2382
  %3214 = vmatprep.subr.mxu0 0.0
  %3215 = vmatpush2.msra.mxu0 0.0
  %3216 = vmatprep.subr.mxu0 0.0
  %3217 = vmatpush2.msra.mxu0 0.0
  %3218 = vmatprep.subr.mxu0 %v2683
  %3219 = vmatpush2.msra.mxu0 %v2680
  %3220 = vmatprep.subr.mxu0 %v2607
  %3221 = vmatpush2.msra.mxu0 %v2606
  %3222 = vmatprep.subr.mxu0 %v2599
  %3223 = vmatpush2.msra.mxu0 %v2598
  %3224 = vmatprep.subr.mxu0 %v2591
  %3225 = vmatpush2.msra.mxu0 %v2590
  %3226 = vmatprep.subr.mxu0 %v2583
  %3227 = vmatpush2.msra.mxu0 %v2582
  %3228 = vmatprep.subr.mxu0 %v2575
  %3229 = vmatpush2.msra.mxu0 %v2574
  %3230 = vmatprep.subr.mxu0 %v2567
  %3231 = vmatpush2.msra.mxu0 %v2566
  %3232 = vmatprep.subr.mxu0 %v2559
  %3233 = vmatpush2.msra.mxu0 %v2558
  %3234 = vmatprep.subr.mxu0 %v2551
  %3235 = vmatpush2.msra.mxu0 %v2550
  %3236 = vmatprep.subr.mxu0 %v2543
  %3237 = vmatpush2.msra.mxu0 %v2542
  %3238 = vmatprep.subr.mxu0 %v2535
  %3239 = vmatpush2.msra.mxu0 %v2534
  %3240 = vmatprep.subr.mxu0 %v2527
  %3241 = vmatpush2.msra.mxu0 %v2526
  %3242 = vmatprep.subr.mxu0 %v2519
  %3243 = vmatpush2.msra.mxu0 %v2518
  %3244 = vmatprep.subr.mxu0 %v2511
  %3245 = vmatpush2.msra.mxu0 %v2510
  %3246 = vmatprep.mubr.f32.mxu0 %v2659
  %3247 = vmatmul.mubr.f32.gmra.mxu0 %v2116
  %v3248 = vpop.f32.mrf.mxu0
  %v3249 = vadd.f32 %v3178, %v3248
  %v3250 = vpop.f32.mrf.mxu0
  %v3251 = vadd.f32 %v3180, %v3250
  %3252 = vdwg.mxu0
  %v3253 = vmax.f32 %v2823, 0.0
  %v3254 = vmax.f32 %v2825, 0.0
  %v3255 = vmax.f32 %v2965, 0.0
  %v3256 = vmax.f32 %v2967, 0.0
  %v3257 = vmax.f32 %v3107, 0.0
  %v3258 = vmax.f32 %v3109, 0.0
  %v3259 = vmax.f32 %v3249, 0.0
  %v3260 = vmax.f32 %v3251, 0.0
  %v3261 = vld [vmem:[%s12] sm:$0xff]
  %v3262 = vld [vmem:[%s12 + $0x8] sm:$0xff]
  %v3263 = vld [vmem:[%s12 + $0x10] sm:$0xff]
  %v3264 = vld [vmem:[%s12 + $0x18] sm:$0xff]
  %v3265 = vld [vmem:[%s12 + $0x20] sm:$0xff]
  %v3266 = vld [vmem:[%s12 + $0x28] sm:$0xff]
  %v3267 = vld [vmem:[%s12 + $0x30] sm:$0xff]
  %v3268 = vld [vmem:[%s12 + $0x38] sm:$0xff]
  %v3269 = vld [vmem:[%s12 + $0x40] sm:$0xff]
  %v3270 = vld [vmem:[%s12 + $0x48] sm:$0xff]
  %v3271 = vld [vmem:[%s12 + $0x50] sm:$0xff]
  %v3272 = vld [vmem:[%s12 + $0x58] sm:$0xff]
  %v3273 = vld [vmem:[%s12 + $0x60] sm:$0xff]
  %v3274 = vld [vmem:[%s12 + $0x68] sm:$0xff]
  %v3275 = vld [vmem:[%s12 + $0x70] sm:$0xff]
  %v3276 = vld [vmem:[%s12 + $0x78] sm:$0xff]
  %v3277 = vld [vmem:[%s12 + $0x80] sm:$0xff]
  %v3278 = vld [vmem:[%s12 + $0x88] sm:$0xff]
  %v3279 = vld [vmem:[%s12 + $0x90] sm:$0xff]
  %v3280 = vld [vmem:[%s12 + $0x98] sm:$0xff]
  %v3281 = vld [vmem:[%s12 + $0xa0] sm:$0xff]
  %v3282 = vld [vmem:[%s12 + $0xa8] sm:$0xff]
  %v3283 = vld [vmem:[%s12 + $0xb0] sm:$0xff]
  %v3284 = vld [vmem:[%s12 + $0xb8] sm:$0xff]
  %v3285 = vld [vmem:[%s12 + $0xc0] sm:$0xff]
  %v3286 = vld [vmem:[%s12 + $0xc8] sm:$0xff]
  %v3287 = vld [vmem:[%s12 + $0xd0] sm:$0xff]
  %v3288 = vld [vmem:[%s12 + $0xd8] sm:$0xff]
  %v3289 = vld [vmem:[%s12 + $0xe0] sm:$0xff]
  %v3290 = vld [vmem:[%s12 + $0xe8] sm:$0xff]
  %v3291 = vld [vmem:[%s12 + $0xf0] sm:$0xff]
  %v3292 = vld [vmem:[%s12 + $0xf8] sm:$0xff]
  %v3293 = vld [vmem:[%s12 + $0x100] sm:$0xff]
  %v3294 = vld [vmem:[%s12 + $0x108] sm:$0xff]
  %v3295 = vld [vmem:[%s12 + $0x110] sm:$0xff]
  %v3296 = vld [vmem:[%s12 + $0x118] sm:$0xff]
  %v3297 = vld [vmem:[%s12 + $0x120] sm:$0xff]
  %v3298 = vld [vmem:[%s12 + $0x128] sm:$0xff]
  %v3299 = vld [vmem:[%s12 + $0x130] sm:$0xff]
  %v3300 = vld [vmem:[%s12 + $0x138] sm:$0xff]
  %v3301 = vld [vmem:[%s12 + $0x140] sm:$0xff]
  %v3302 = vld [vmem:[%s12 + $0x148] sm:$0xff]
  %v3303 = vld [vmem:[%s12 + $0x150] sm:$0xff]
  %v3304 = vld [vmem:[%s12 + $0x158] sm:$0xff]
  %v3305 = vld [vmem:[%s12 + $0x160] sm:$0xff]
  %v3306 = vld [vmem:[%s12 + $0x168] sm:$0xff]
  %v3307 = vld [vmem:[%s12 + $0x170] sm:$0xff]
  %v3308 = vld [vmem:[%s12 + $0x178] sm:$0xff]
  %v3309 = vld [vmem:[%s12 + $0x180] sm:$0xff]
  %v3310 = vld [vmem:[%s12 + $0x188] sm:$0xff]
  %v3311 = vld [vmem:[%s12 + $0x190] sm:$0xff]
  %v3312 = vld [vmem:[%s12 + $0x198] sm:$0xff]
  %v3313 = vld [vmem:[%s12 + $0x1a0] sm:$0xff]
  %v3314 = vld [vmem:[%s12 + $0x1a8] sm:$0xff]
  %v3315 = vld [vmem:[%s12 + $0x1b0] sm:$0xff]
  %v3316 = vld [vmem:[%s12 + $0x1b8] sm:$0xff]
  %v3317 = vld [vmem:[%s12 + $0x1c0] sm:$0xff]
  %v3318 = vld [vmem:[%s12 + $0x1c8] sm:$0xff]
  %v3319 = vld [vmem:[%s12 + $0x1d0] sm:$0xff]
  %v3320 = vld [vmem:[%s12 + $0x1d8] sm:$0xff]
  %v3321 = vld [vmem:[%s12 + $0x1e0] sm:$0xff]
  %v3322 = vld [vmem:[%s12 + $0x1e8] sm:$0xff]
  %v3323 = vld [vmem:[%s12 + $0x1f0] sm:$0xff]
  %v3324 = vld [vmem:[%s12 + $0x1f8] sm:$0xff]
  %v3325 = vld [vmem:[%s12 + $0x200] sm:$0xff]
  %v3326 = vld [vmem:[%s12 + $0x208] sm:$0xff]
  %v3327 = vld [vmem:[%s12 + $0x210] sm:$0xff]
  %v3328 = vld [vmem:[%s12 + $0x218] sm:$0xff]
  %v3329 = vld [vmem:[%s12 + $0x220] sm:$0xff]
  %v3330 = vld [vmem:[%s12 + $0x228] sm:$0xff]
  %v3331 = vld [vmem:[%s12 + $0x230] sm:$0xff]
  %v3332 = vld [vmem:[%s12 + $0x238] sm:$0xff]
  %v3333 = vld [vmem:[%s12 + $0x240] sm:$0xff]
  %v3334 = vld [vmem:[%s12 + $0x248] sm:$0xff]
  %v3335 = vld [vmem:[%s12 + $0x250] sm:$0xff]
  %v3336 = vld [vmem:[%s12 + $0x258] sm:$0xff]
  %v3337 = vld [vmem:[%s12 + $0x260] sm:$0xff]
  %v3338 = vld [vmem:[%s12 + $0x268] sm:$0xff]
  %v3339 = vld [vmem:[%s12 + $0x270] sm:$0xff]
  %v3340 = vld [vmem:[%s12 + $0x278] sm:$0xff]
  %v3341 = vld [vmem:[%s12 + $0x280] sm:$0xff]
  %v3342 = vld [vmem:[%s12 + $0x288] sm:$0xff]
  %v3343 = vld [vmem:[%s12 + $0x290] sm:$0xff]
  %v3344 = vld [vmem:[%s12 + $0x298] sm:$0xff]
  %v3345 = vld [vmem:[%s12 + $0x2a0] sm:$0xff]
  %v3346 = vld [vmem:[%s12 + $0x2a8] sm:$0xff]
  %v3347 = vld [vmem:[%s12 + $0x2b0] sm:$0xff]
  %v3348 = vld [vmem:[%s12 + $0x2b8] sm:$0xff]
  %v3349 = vld [vmem:[%s12 + $0x2c0] sm:$0xff]
  %v3350 = vld [vmem:[%s12 + $0x2c8] sm:$0xff]
  %v3351 = vld [vmem:[%s12 + $0x2d0] sm:$0xff]
  %v3352 = vld [vmem:[%s12 + $0x2d8] sm:$0xff]
  %v3353 = vld [vmem:[%s12 + $0x2e0] sm:$0xff]
  %v3354 = vld [vmem:[%s12 + $0x2e8] sm:$0xff]
  %v3355 = vld [vmem:[%s12 + $0x2f0] sm:$0xff]
  %v3356 = vld [vmem:[%s12 + $0x2f8] sm:$0xff]
  %v3357 = vld [vmem:[%s12 + $0x300] sm:$0xff]
  %v3358 = vld [vmem:[%s12 + $0x308] sm:$0xff]
  %v3359 = vld [vmem:[%s12 + $0x310] sm:$0xff]
  %v3360 = vld [vmem:[%s12 + $0x318] sm:$0xff]
  %v3361 = vld [vmem:[%s12 + $0x320] sm:$0xff]
  %v3362 = vld [vmem:[%s12 + $0x328] sm:$0xff]
  %v3363 = vld [vmem:[%s12 + $0x330] sm:$0xff]
  %v3364 = vld [vmem:[%s12 + $0x338] sm:$0xff]
  %v3365 = vld [vmem:[%s12 + $0x340] sm:$0xff]
  %v3366 = vld [vmem:[%s12 + $0x348] sm:$0xff]
  %v3367 = vld [vmem:[%s12 + $0x350] sm:$0xff]
  %v3368 = vld [vmem:[%s12 + $0x358] sm:$0xff]
  %v3369 = vld [vmem:[%s12 + $0x360] sm:$0xff]
  %v3370 = vld [vmem:[%s12 + $0x368] sm:$0xff]
  %v3371 = vld [vmem:[%s12 + $0x370] sm:$0xff]
  %v3372 = vld [vmem:[%s12 + $0x378] sm:$0xff]
  %v3373 = vld [vmem:[%s12 + $0x380] sm:$0xff]
  %v3374 = vld [vmem:[%s12 + $0x388] sm:$0xff]
  %v3375 = vld [vmem:[%s12 + $0x390] sm:$0xff]
  %v3376 = vld [vmem:[%s12 + $0x398] sm:$0xff]
  %v3377 = vld [vmem:[%s12 + $0x3a0] sm:$0xff]
  %v3378 = vld [vmem:[%s12 + $0x3a8] sm:$0xff]
  %v3379 = vld [vmem:[%s12 + $0x3b0] sm:$0xff]
  %v3380 = vld [vmem:[%s12 + $0x3b8] sm:$0xff]
  %v3381 = vld [vmem:[%s12 + $0x3c0] sm:$0xff]
  %v3382 = vld [vmem:[%s12 + $0x3c8] sm:$0xff]
  %v3383 = vld [vmem:[%s12 + $0x3d0] sm:$0xff]
  %v3384 = vld [vmem:[%s12 + $0x3d8] sm:$0xff]
  %v3385 = vld [vmem:[%s12 + $0x3e0] sm:$0xff]
  %v3386 = vld [vmem:[%s12 + $0x3e8] sm:$0xff]
  %v3387 = vld [vmem:[%s12 + $0x3f0] sm:$0xff]
  %v3388 = vld [vmem:[%s12 + $0x3f8] sm:$0xff]
  %v3389 = vld [vmem:[%s12 + $0x400] sm:$0xff]
  %v3390 = vld [vmem:[%s12 + $0x408] sm:$0xff]
  %v3391 = vld [vmem:[%s12 + $0x410] sm:$0xff]
  %v3392 = vld [vmem:[%s12 + $0x418] sm:$0xff]
  %v3393 = vld [vmem:[%s12 + $0x420] sm:$0xff]
  %v3394 = vld [vmem:[%s12 + $0x428] sm:$0xff]
  %v3395 = vld [vmem:[%s12 + $0x430] sm:$0xff]
  %v3396 = vld [vmem:[%s12 + $0x438] sm:$0xff]
  %v3397 = vld [vmem:[%s12 + $0x440] sm:$0xff]
  %v3398 = vld [vmem:[%s12 + $0x448] sm:$0xff]
  %v3399 = vld [vmem:[%s12 + $0x450] sm:$0xff]
  %v3400 = vld [vmem:[%s12 + $0x458] sm:$0xff]
  %v3401 = vld [vmem:[%s12 + $0x460] sm:$0xff]
  %v3402 = vld [vmem:[%s12 + $0x468] sm:$0xff]
  %v3403 = vld [vmem:[%s12 + $0x470] sm:$0xff]
  %v3404 = vld [vmem:[%s12 + $0x478] sm:$0xff]
  %v3405 = vld [vmem:[%s12 + $0x480] sm:$0xff]
  %v3406 = vld [vmem:[%s12 + $0x488] sm:$0xff]
  %v3407 = vld [vmem:[%s12 + $0x490] sm:$0xff]
  %v3408 = vld [vmem:[%s12 + $0x498] sm:$0xff]
  %v3409 = vld [vmem:[%s12 + $0x4a0] sm:$0xff]
  %v3410 = vld [vmem:[%s12 + $0x4a8] sm:$0xff]
  %v3411 = vld [vmem:[%s12 + $0x4b0] sm:$0xff]
  %v3412 = vld [vmem:[%s12 + $0x4b8] sm:$0xff]
  %v3413 = vld [vmem:[%s12 + $0x4c0] sm:$0xff]
  %v3414 = vld [vmem:[%s12 + $0x4c8] sm:$0xff]
  %v3415 = vld [vmem:[%s12 + $0x4d0] sm:$0xff]
  %v3416 = vld [vmem:[%s12 + $0x4d8] sm:$0xff]
  %v3417 = vld [vmem:[%s12 + $0x4e0] sm:$0xff]
  %v3418 = vld [vmem:[%s12 + $0x4e8] sm:$0xff]
  %v3419 = vld [vmem:[%s12 + $0x4f0] sm:$0xff]
  %v3420 = vld [vmem:[%s12 + $0x4f8] sm:$0xff]
  %v3421 = vld [vmem:[%s12 + $0x500] sm:$0xff]
  %v3422 = vld [vmem:[%s12 + $0x508] sm:$0xff]
  %v3423 = vld [vmem:[%s12 + $0x510] sm:$0xff]
  %v3424 = vld [vmem:[%s12 + $0x518] sm:$0xff]
  %v3425 = vld [vmem:[%s12 + $0x520] sm:$0xff]
  %v3426 = vld [vmem:[%s12 + $0x528] sm:$0xff]
  %v3427 = vld [vmem:[%s12 + $0x530] sm:$0xff]
  %v3428 = vld [vmem:[%s12 + $0x538] sm:$0xff]
  %v3429 = vld [vmem:[%s12 + $0x540] sm:$0xff]
  %v3430 = vld [vmem:[%s12 + $0x548] sm:$0xff]
  %v3431 = vld [vmem:[%s12 + $0x550] sm:$0xff]
  %v3432 = vld [vmem:[%s12 + $0x558] sm:$0xff]
  %v3433 = vld [vmem:[%s12 + $0x560] sm:$0xff]
  %v3434 = vld [vmem:[%s12 + $0x568] sm:$0xff]
  %v3435 = vld [vmem:[%s12 + $0x570] sm:$0xff]
  %v3436 = vld [vmem:[%s12 + $0x578] sm:$0xff]
  %v3437 = vld [vmem:[%s12 + $0x580] sm:$0xff]
  %v3438 = vld [vmem:[%s12 + $0x588] sm:$0xff]
  %v3439 = vld [vmem:[%s12 + $0x590] sm:$0xff]
  %v3440 = vld [vmem:[%s12 + $0x598] sm:$0xff]
  %v3441 = vld [vmem:[%s12 + $0x5a0] sm:$0xff]
  %v3442 = vld [vmem:[%s12 + $0x5a8] sm:$0xff]
  %v3443 = vld [vmem:[%s12 + $0x5b0] sm:$0xff]
  %v3444 = vld [vmem:[%s12 + $0x5b8] sm:$0xff]
  %v3445 = vld [vmem:[%s12 + $0x5c0] sm:$0xff]
  %v3446 = vld [vmem:[%s12 + $0x5c8] sm:$0xff]
  %v3447 = vld [vmem:[%s12 + $0x5d0] sm:$0xff]
  %v3448 = vld [vmem:[%s12 + $0x5d8] sm:$0xff]
  %v3449 = vld [vmem:[%s12 + $0x5e0] sm:$0xff]
  %v3450 = vld [vmem:[%s12 + $0x5e8] sm:$0xff]
  %v3451 = vld [vmem:[%s12 + $0x5f0] sm:$0xff]
  %v3452 = vld [vmem:[%s12 + $0x5f8] sm:$0xff]
  %v3453 = vld [vmem:[%s12 + $0x600] sm:$0xff]
  %v3454 = vld [vmem:[%s12 + $0x608] sm:$0xff]
  %v3455 = vld [vmem:[%s12 + $0x610] sm:$0xff]
  %v3456 = vld [vmem:[%s12 + $0x618] sm:$0xff]
  %v3457 = vld [vmem:[%s12 + $0x620] sm:$0xff]
  %v3458 = vld [vmem:[%s12 + $0x628] sm:$0xff]
  %v3459 = vld [vmem:[%s12 + $0x630] sm:$0xff]
  %v3460 = vld [vmem:[%s12 + $0x638] sm:$0xff]
  %v3461 = vld [vmem:[%s12 + $0x640] sm:$0xff]
  %v3462 = vld [vmem:[%s12 + $0x648] sm:$0xff]
  %v3463 = vld [vmem:[%s12 + $0x650] sm:$0xff]
  %v3464 = vld [vmem:[%s12 + $0x658] sm:$0xff]
  %v3465 = vld [vmem:[%s12 + $0x660] sm:$0xff]
  %v3466 = vld [vmem:[%s12 + $0x668] sm:$0xff]
  %v3467 = vld [vmem:[%s12 + $0x670] sm:$0xff]
  %v3468 = vld [vmem:[%s12 + $0x678] sm:$0xff]
  %v3469 = vld [vmem:[%s12 + $0x680] sm:$0xff]
  %v3470 = vld [vmem:[%s12 + $0x688] sm:$0xff]
  %v3471 = vld [vmem:[%s12 + $0x690] sm:$0xff]
  %v3472 = vld [vmem:[%s12 + $0x698] sm:$0xff]
  %v3473 = vld [vmem:[%s12 + $0x6a0] sm:$0xff]
  %v3474 = vld [vmem:[%s12 + $0x6a8] sm:$0xff]
  %v3475 = vld [vmem:[%s12 + $0x6b0] sm:$0xff]
  %v3476 = vld [vmem:[%s12 + $0x6b8] sm:$0xff]
  %v3477 = vld [vmem:[%s12 + $0x6c0] sm:$0xff]
  %v3478 = vld [vmem:[%s12 + $0x6c8] sm:$0xff]
  %v3479 = vld [vmem:[%s12 + $0x6d0] sm:$0xff]
  %v3480 = vld [vmem:[%s12 + $0x6d8] sm:$0xff]
  %v3481 = vld [vmem:[%s12 + $0x6e0] sm:$0xff]
  %v3482 = vld [vmem:[%s12 + $0x6e8] sm:$0xff]
  %v3483 = vld [vmem:[%s12 + $0x6f0] sm:$0xff]
  %v3484 = vld [vmem:[%s12 + $0x6f8] sm:$0xff]
  %v3485 = vld [vmem:[%s12 + $0x700] sm:$0xff]
  %v3486 = vld [vmem:[%s12 + $0x708] sm:$0xff]
  %v3487 = vld [vmem:[%s12 + $0x710] sm:$0xff]
  %v3488 = vld [vmem:[%s12 + $0x718] sm:$0xff]
  %v3489 = vld [vmem:[%s12 + $0x720] sm:$0xff]
  %v3490 = vld [vmem:[%s12 + $0x728] sm:$0xff]
  %v3491 = vld [vmem:[%s12 + $0x730] sm:$0xff]
  %v3492 = vld [vmem:[%s12 + $0x738] sm:$0xff]
  %v3493 = vld [vmem:[%s12 + $0x740] sm:$0xff]
  %v3494 = vld [vmem:[%s12 + $0x748] sm:$0xff]
  %v3495 = vld [vmem:[%s12 + $0x750] sm:$0xff]
  %v3496 = vld [vmem:[%s12 + $0x758] sm:$0xff]
  %v3497 = vld [vmem:[%s12 + $0x760] sm:$0xff]
  %v3498 = vld [vmem:[%s12 + $0x768] sm:$0xff]
  %v3499 = vld [vmem:[%s12 + $0x770] sm:$0xff]
  %v3500 = vld [vmem:[%s12 + $0x778] sm:$0xff]
  %v3501 = vld [vmem:[%s12 + $0x780] sm:$0xff]
  %v3502 = vld [vmem:[%s12 + $0x788] sm:$0xff]
  %v3503 = vld [vmem:[%s12 + $0x790] sm:$0xff]
  %v3504 = vld [vmem:[%s12 + $0x798] sm:$0xff]
  %v3505 = vld [vmem:[%s12 + $0x7a0] sm:$0xf]
  %v3506 = vld [vmem:[%s12 + $0x7a8] sm:$0xf]
  %v3507 = vld [vmem:[%s13] sm:$0x3]
  %v3509 = vlaneseq
  %v3510 = vshrl.u32 %v3509, 7
  %v3511 = vsub.s32 0, %v3510
  %v3512 = vrot.slane %v3507, %v3511
  %v3513 = vlaneseq
  %v3514 = vshrl.u32 %v3513, 7
  %v3515 = vsub.s32 1, %v3514
  %v3516 = vrot.slane %v3507, %v3515
  %v3520 = vsel %vm1128, %v3260, 0
  %v3523 = vsel %vm297, %v3505, 0
  %v3526 = vsel %vm297, %v3506, 0
  %3528 = vmatprep.subr.mxu0 %v3292
  %3529 = vmatpush1.msra.mxu0 %v3291
  %3530 = vmatprep.subr.mxu0 %v3290
  %3531 = vmatpush1.msra.mxu0 %v3289
  %3532 = vmatprep.subr.mxu0 %v3288
  %3533 = vmatpush1.msra.mxu0 %v3287
  %3534 = vmatprep.subr.mxu0 %v3286
  %3535 = vmatpush1.msra.mxu0 %v3285
  %3536 = vmatprep.subr.mxu0 %v3284
  %3537 = vmatpush1.msra.mxu0 %v3283
  %3538 = vmatprep.subr.mxu0 %v3282
  %3539 = vmatpush1.msra.mxu0 %v3281
  %3540 = vmatprep.subr.mxu0 %v3280
  %3541 = vmatpush1.msra.mxu0 %v3279
  %3542 = vmatprep.subr.mxu0 %v3278
  %3543 = vmatpush1.msra.mxu0 %v3277
  %3544 = vmatprep.subr.mxu0 %v3276
  %3545 = vmatpush1.msra.mxu0 %v3275
  %3546 = vmatprep.subr.mxu0 %v3274
  %3547 = vmatpush1.msra.mxu0 %v3273
  %3548 = vmatprep.subr.mxu0 %v3272
  %3549 = vmatpush1.msra.mxu0 %v3271
  %3550 = vmatprep.subr.mxu0 %v3270
  %3551 = vmatpush1.msra.mxu0 %v3269
  %3552 = vmatprep.subr.mxu0 %v3268
  %3553 = vmatpush1.msra.mxu0 %v3267
  %3554 = vmatprep.subr.mxu0 %v3266
  %3555 = vmatpush1.msra.mxu0 %v3265
  %3556 = vmatprep.subr.mxu0 %v3264
  %3557 = vmatpush1.msra.mxu0 %v3263
  %3558 = vmatprep.subr.mxu0 %v3262
  %3559 = vmatpush1.msra.mxu0 %v3261
  %3560 = vmatprep.subr.mxu0 %v3324
  %3561 = vmatpush2.msra.mxu0 %v3323
  %3562 = vmatprep.subr.mxu0 %v3322
  %3563 = vmatpush2.msra.mxu0 %v3321
  %3564 = vmatprep.subr.mxu0 %v3320
  %3565 = vmatpush2.msra.mxu0 %v3319
  %3566 = vmatprep.subr.mxu0 %v3318
  %3567 = vmatpush2.msra.mxu0 %v3317
  %3568 = vmatprep.subr.mxu0 %v3316
  %3569 = vmatpush2.msra.mxu0 %v3315
  %3570 = vmatprep.subr.mxu0 %v3314
  %3571 = vmatpush2.msra.mxu0 %v3313
  %3572 = vmatprep.subr.mxu0 %v3312
  %3573 = vmatpush2.msra.mxu0 %v3311
  %3574 = vmatprep.subr.mxu0 %v3310
  %3575 = vmatpush2.msra.mxu0 %v3309
  %3576 = vmatprep.subr.mxu0 %v3308
  %3577 = vmatpush2.msra.mxu0 %v3307
  %3578 = vmatprep.subr.mxu0 %v3306
  %3579 = vmatpush2.msra.mxu0 %v3305
  %3580 = vmatprep.subr.mxu0 %v3304
  %3581 = vmatpush2.msra.mxu0 %v3303
  %3582 = vmatprep.subr.mxu0 %v3302
  %3583 = vmatpush2.msra.mxu0 %v3301
  %3584 = vmatprep.subr.mxu0 %v3300
  %3585 = vmatpush2.msra.mxu0 %v3299
  %3586 = vmatprep.subr.mxu0 %v3298
  %3587 = vmatpush2.msra.mxu0 %v3297
  %3588 = vmatprep.subr.mxu0 %v3296
  %3589 = vmatpush2.msra.mxu0 %v3295
  %3590 = vmatprep.subr.mxu0 %v3294
  %3591 = vmatpush2.msra.mxu0 %v3293
  %3592 = vmatprep.mubr.f32.mxu0 %v3254
  %3593 = vmatmul.mubr.f32.gmra.mxu0 %v3253
  %v3594 = vpop.f32.mrf.mxu0
  %v3595 = vadd.f32 %v3512, %v3594
  %v3596 = vpop.f32.mrf.mxu0
  %v3597 = vadd.f32 %v3516, %v3596
  %3598 = vdwg.mxu0
  %3599 = vmatprep.subr.mxu0 %v3356
  %3600 = vmatpush1.msra.mxu0 %v3355
  %3601 = vmatprep.subr.mxu0 %v3354
  %3602 = vmatpush1.msra.mxu0 %v3353
  %3603 = vmatprep.subr.mxu0 %v3352
  %3604 = vmatpush1.msra.mxu0 %v3351
  %3605 = vmatprep.subr.mxu0 %v3350
  %3606 = vmatpush1.msra.mxu0 %v3349
  %3607 = vmatprep.subr.mxu0 %v3348
  %3608 = vmatpush1.msra.mxu0 %v3347
  %3609 = vmatprep.subr.mxu0 %v3346
  %3610 = vmatpush1.msra.mxu0 %v3345
  %3611 = vmatprep.subr.mxu0 %v3344
  %3612 = vmatpush1.msra.mxu0 %v3343
  %3613 = vmatprep.subr.mxu0 %v3342
  %3614 = vmatpush1.msra.mxu0 %v3341
  %3615 = vmatprep.subr.mxu0 %v3340
  %3616 = vmatpush1.msra.mxu0 %v3339
  %3617 = vmatprep.subr.mxu0 %v3338
  %3618 = vmatpush1.msra.mxu0 %v3337
  %3619 = vmatprep.subr.mxu0 %v3336
  %3620 = vmatpush1.msra.mxu0 %v3335
  %3621 = vmatprep.subr.mxu0 %v3334
  %3622 = vmatpush1.msra.mxu0 %v3333
  %3623 = vmatprep.subr.mxu0 %v3332
  %3624 = vmatpush1.msra.mxu0 %v3331
  %3625 = vmatprep.subr.mxu0 %v3330
  %3626 = vmatpush1.msra.mxu0 %v3329
  %3627 = vmatprep.subr.mxu0 %v3328
  %3628 = vmatpush1.msra.mxu0 %v3327
  %3629 = vmatprep.subr.mxu0 %v3326
  %3630 = vmatpush1.msra.mxu0 %v3325
  %3631 = vmatprep.subr.mxu0 %v3388
  %3632 = vmatpush2.msra.mxu0 %v3387
  %3633 = vmatprep.subr.mxu0 %v3386
  %3634 = vmatpush2.msra.mxu0 %v3385
  %3635 = vmatprep.subr.mxu0 %v3384
  %3636 = vmatpush2.msra.mxu0 %v3383
  %3637 = vmatprep.subr.mxu0 %v3382
  %3638 = vmatpush2.msra.mxu0 %v3381
  %3639 = vmatprep.subr.mxu0 %v3380
  %3640 = vmatpush2.msra.mxu0 %v3379
  %3641 = vmatprep.subr.mxu0 %v3378
  %3642 = vmatpush2.msra.mxu0 %v3377
  %3643 = vmatprep.subr.mxu0 %v3376
  %3644 = vmatpush2.msra.mxu0 %v3375
  %3645 = vmatprep.subr.mxu0 %v3374
  %3646 = vmatpush2.msra.mxu0 %v3373
  %3647 = vmatprep.subr.mxu0 %v3372
  %3648 = vmatpush2.msra.mxu0 %v3371
  %3649 = vmatprep.subr.mxu0 %v3370
  %3650 = vmatpush2.msra.mxu0 %v3369
  %3651 = vmatprep.subr.mxu0 %v3368
  %3652 = vmatpush2.msra.mxu0 %v3367
  %3653 = vmatprep.subr.mxu0 %v3366
  %3654 = vmatpush2.msra.mxu0 %v3365
  %3655 = vmatprep.subr.mxu0 %v3364
  %3656 = vmatpush2.msra.mxu0 %v3363
  %3657 = vmatprep.subr.mxu0 %v3362
  %3658 = vmatpush2.msra.mxu0 %v3361
  %3659 = vmatprep.subr.mxu0 %v3360
  %3660 = vmatpush2.msra.mxu0 %v3359
  %3661 = vmatprep.subr.mxu0 %v3358
  %3662 = vmatpush2.msra.mxu0 %v3357
  %3663 = vmatprep.mubr.f32.mxu0 %v3256
  %3664 = vmatmul.mubr.f32.gmra.mxu0 %v3255
  %v3665 = vpop.f32.mrf.mxu0
  %v3666 = vadd.f32 %v3595, %v3665
  %v3667 = vpop.f32.mrf.mxu0
  %v3668 = vadd.f32 %v3597, %v3667
  %3669 = vdwg.mxu0
  %3670 = vmatprep.subr.mxu0 %v3420
  %3671 = vmatpush1.msra.mxu0 %v3419
  %3672 = vmatprep.subr.mxu0 %v3418
  %3673 = vmatpush1.msra.mxu0 %v3417
  %3674 = vmatprep.subr.mxu0 %v3416
  %3675 = vmatpush1.msra.mxu0 %v3415
  %3676 = vmatprep.subr.mxu0 %v3414
  %3677 = vmatpush1.msra.mxu0 %v3413
  %3678 = vmatprep.subr.mxu0 %v3412
  %3679 = vmatpush1.msra.mxu0 %v3411
  %3680 = vmatprep.subr.mxu0 %v3410
  %3681 = vmatpush1.msra.mxu0 %v3409
  %3682 = vmatprep.subr.mxu0 %v3408
  %3683 = vmatpush1.msra.mxu0 %v3407
  %3684 = vmatprep.subr.mxu0 %v3406
  %3685 = vmatpush1.msra.mxu0 %v3405
  %3686 = vmatprep.subr.mxu0 %v3404
  %3687 = vmatpush1.msra.mxu0 %v3403
  %3688 = vmatprep.subr.mxu0 %v3402
  %3689 = vmatpush1.msra.mxu0 %v3401
  %3690 = vmatprep.subr.mxu0 %v3400
  %3691 = vmatpush1.msra.mxu0 %v3399
  %3692 = vmatprep.subr.mxu0 %v3398
  %3693 = vmatpush1.msra.mxu0 %v3397
  %3694 = vmatprep.subr.mxu0 %v3396
  %3695 = vmatpush1.msra.mxu0 %v3395
  %3696 = vmatprep.subr.mxu0 %v3394
  %3697 = vmatpush1.msra.mxu0 %v3393
  %3698 = vmatprep.subr.mxu0 %v3392
  %3699 = vmatpush1.msra.mxu0 %v3391
  %3700 = vmatprep.subr.mxu0 %v3390
  %3701 = vmatpush1.msra.mxu0 %v3389
  %3702 = vmatprep.subr.mxu0 %v3452
  %3703 = vmatpush2.msra.mxu0 %v3451
  %3704 = vmatprep.subr.mxu0 %v3450
  %3705 = vmatpush2.msra.mxu0 %v3449
  %3706 = vmatprep.subr.mxu0 %v3448
  %3707 = vmatpush2.msra.mxu0 %v3447
  %3708 = vmatprep.subr.mxu0 %v3446
  %3709 = vmatpush2.msra.mxu0 %v3445
  %3710 = vmatprep.subr.mxu0 %v3444
  %3711 = vmatpush2.msra.mxu0 %v3443
  %3712 = vmatprep.subr.mxu0 %v3442
  %3713 = vmatpush2.msra.mxu0 %v3441
  %3714 = vmatprep.subr.mxu0 %v3440
  %3715 = vmatpush2.msra.mxu0 %v3439
  %3716 = vmatprep.subr.mxu0 %v3438
  %3717 = vmatpush2.msra.mxu0 %v3437
  %3718 = vmatprep.subr.mxu0 %v3436
  %3719 = vmatpush2.msra.mxu0 %v3435
  %3720 = vmatprep.subr.mxu0 %v3434
  %3721 = vmatpush2.msra.mxu0 %v3433
  %3722 = vmatprep.subr.mxu0 %v3432
  %3723 = vmatpush2.msra.mxu0 %v3431
  %3724 = vmatprep.subr.mxu0 %v3430
  %3725 = vmatpush2.msra.mxu0 %v3429
  %3726 = vmatprep.subr.mxu0 %v3428
  %3727 = vmatpush2.msra.mxu0 %v3427
  %3728 = vmatprep.subr.mxu0 %v3426
  %3729 = vmatpush2.msra.mxu0 %v3425
  %3730 = vmatprep.subr.mxu0 %v3424
  %3731 = vmatpush2.msra.mxu0 %v3423
  %3732 = vmatprep.subr.mxu0 %v3422
  %3733 = vmatpush2.msra.mxu0 %v3421
  %3734 = vmatprep.mubr.f32.mxu0 %v3258
  %3735 = vmatmul.mubr.f32.gmra.mxu0 %v3257
  %v3736 = vpop.f32.mrf.mxu0
  %v3737 = vadd.f32 %v3666, %v3736
  %v3738 = vpop.f32.mrf.mxu0
  %v3739 = vadd.f32 %v3668, %v3738
  %3740 = vdwg.mxu0
  %3741 = vmatprep.subr.mxu0 %v3484
  %3742 = vmatpush1.msra.mxu0 %v3483
  %3743 = vmatprep.subr.mxu0 %v3482
  %3744 = vmatpush1.msra.mxu0 %v3481
  %3745 = vmatprep.subr.mxu0 %v3480
  %3746 = vmatpush1.msra.mxu0 %v3479
  %3747 = vmatprep.subr.mxu0 %v3478
  %3748 = vmatpush1.msra.mxu0 %v3477
  %3749 = vmatprep.subr.mxu0 %v3476
  %3750 = vmatpush1.msra.mxu0 %v3475
  %3751 = vmatprep.subr.mxu0 %v3474
  %3752 = vmatpush1.msra.mxu0 %v3473
  %3753 = vmatprep.subr.mxu0 %v3472
  %3754 = vmatpush1.msra.mxu0 %v3471
  %3755 = vmatprep.subr.mxu0 %v3470
  %3756 = vmatpush1.msra.mxu0 %v3469
  %3757 = vmatprep.subr.mxu0 %v3468
  %3758 = vmatpush1.msra.mxu0 %v3467
  %3759 = vmatprep.subr.mxu0 %v3466
  %3760 = vmatpush1.msra.mxu0 %v3465
  %3761 = vmatprep.subr.mxu0 %v3464
  %3762 = vmatpush1.msra.mxu0 %v3463
  %3763 = vmatprep.subr.mxu0 %v3462
  %3764 = vmatpush1.msra.mxu0 %v3461
  %3765 = vmatprep.subr.mxu0 %v3460
  %3766 = vmatpush1.msra.mxu0 %v3459
  %3767 = vmatprep.subr.mxu0 %v3458
  %3768 = vmatpush1.msra.mxu0 %v3457
  %3769 = vmatprep.subr.mxu0 %v3456
  %3770 = vmatpush1.msra.mxu0 %v3455
  %3771 = vmatprep.subr.mxu0 %v3454
  %3772 = vmatpush1.msra.mxu0 %v3453
  %3773 = vmatprep.subr.mxu0 0.0
  %3774 = vmatpush2.msra.mxu0 0.0
  %3775 = vmatprep.subr.mxu0 0.0
  %3776 = vmatpush2.msra.mxu0 0.0
  %3777 = vmatprep.subr.mxu0 0.0
  %3778 = vmatpush2.msra.mxu0 0.0
  %3779 = vmatprep.subr.mxu0 0.0
  %3780 = vmatpush2.msra.mxu0 0.0
  %3781 = vmatprep.subr.mxu0 0.0
  %3782 = vmatpush2.msra.mxu0 0.0
  %3783 = vmatprep.subr.mxu0 %v3526
  %3784 = vmatpush2.msra.mxu0 %v3523
  %3785 = vmatprep.subr.mxu0 %v3504
  %3786 = vmatpush2.msra.mxu0 %v3503
  %3787 = vmatprep.subr.mxu0 %v3502
  %3788 = vmatpush2.msra.mxu0 %v3501
  %3789 = vmatprep.subr.mxu0 %v3500
  %3790 = vmatpush2.msra.mxu0 %v3499
  %3791 = vmatprep.subr.mxu0 %v3498
  %3792 = vmatpush2.msra.mxu0 %v3497
  %3793 = vmatprep.subr.mxu0 %v3496
  %3794 = vmatpush2.msra.mxu0 %v3495
  %3795 = vmatprep.subr.mxu0 %v3494
  %3796 = vmatpush2.msra.mxu0 %v3493
  %3797 = vmatprep.subr.mxu0 %v3492
  %3798 = vmatpush2.msra.mxu0 %v3491
  %3799 = vmatprep.subr.mxu0 %v3490
  %3800 = vmatpush2.msra.mxu0 %v3489
  %3801 = vmatprep.subr.mxu0 %v3488
  %3802 = vmatpush2.msra.mxu0 %v3487
  %3803 = vmatprep.subr.mxu0 %v3486
  %3804 = vmatpush2.msra.mxu0 %v3485
  %3805 = vmatprep.mubr.f32.mxu0 %v3520
  %3806 = vmatmul.mubr.f32.gmra.mxu0 %v3259
  %v3807 = vpop.f32.mrf.mxu0
  %v3808 = vadd.f32 %v3737, %v3807
  %v3809 = vpop.f32.mrf.mxu0
  %v3810 = vadd.f32 %v3739, %v3809
  %3811 = vdwg.mxu0
  %v3812 = vmax.f32 %v3808, 0.0
  %v3813 = vmax.f32 %v3810, 0.0
  %3814 = vst [vmem:[%s15] sm:$0xff] %v3812
  %3815 = vst.msk [vmem:[%s15 + $0x8] sm:$0xff] %vm293, %v3813
  // Predicated region
  $region58: #{vae_forward.1} parent=0 // pred_check
    _
  $region59: #{vae_forward.1} parent=0 // pred_check_branch
    %3817 = sbr.rel (0) target = $region61
  $region60: #{vae_forward.1} parent=0 // pred_region
    _
  $region61: #{vae_forward.1} parent=0 // pred_fallthru
    _
  // Predicated region
  $region62: #{vae_forward.1} parent=0 // pred_check
    _
  $region63: #{vae_forward.1} parent=0 // pred_check_branch
    %3819 = sbr.rel (0) target = $region65
  $region64: #{vae_forward.1} parent=0 // pred_region
    _
  $region65: #{vae_forward.1} parent=0 // pred_fallthru
    _
  // Predicated region
  $region66: #{vae_forward.1} parent=0 // pred_check
    _
  $region67: #{vae_forward.1} parent=0 // pred_check_branch
    %3821 = sbr.rel (0) target = $region69
  $region68: #{vae_forward.1} parent=0 // pred_region
    _
  $region69: #{vae_forward.1} parent=0 // pred_fallthru
    _
  // Predicated region
  $region70: #{vae_forward.1} parent=0 // pred_check
    _
  $region71: #{vae_forward.1} parent=0 // pred_check_branch
    %3823 = sbr.rel (0) target = $region73
  $region72: #{vae_forward.1} parent=0 // pred_region
    _
  $region73: #{vae_forward.1} parent=0 // pred_fallthru
    _

</llo_original>
